<compile_context>
chip_gen: v5e
topology: v5e:2x2
jax: 0.10.0
libtpu: 0.0.40
codegen_flags: <defaults>
</compile_context>

<pallas_src>
import math
import functools

import jax
import jax.numpy as jnp
from jax import lax
from jax.experimental import pallas as pl
from jax.experimental.pallas import tpu as pltpu

# ----- small compat shims (older jax releases) ------------------------------
_CompilerParams = getattr(pltpu, "CompilerParams", None) or getattr(
    pltpu, "TPUCompilerParams", None)
_pl_reciprocal = getattr(pl, "reciprocal", None)
if _pl_reciprocal is None:                      # pragma: no cover
    def _pl_reciprocal(x, approx=False):
        return 1.0 / x


# ------------------------------ fused kernel --------------------------------

def _decoder_stack_kernel(
    # activations
    tgt_ref, mem_ref,
    # self-attention (fused QKV, scale folded into Q) + norm1
    sa_wqkv_ref, sa_bqkv_ref, sa_wo_ref, sa_bo_ref, ln1_w_ref, ln1_b_ref,
    # cross-attention (Q from tgt, fused KV from memory) + norm2
    ca_wq_ref, ca_bq_ref, ca_wkv_ref, ca_bkv_ref, ca_wo_ref, ca_bo_ref,
    ln2_w_ref, ln2_b_ref,
    # feed-forward + norm3
    ff_w1_ref, ff_b1_ref, ff_w2_ref, ff_b2_ref, ln3_w_ref, ln3_b_ref,
    # final decoder norm
    fin_w_ref, fin_b_ref,
    # output
    o_ref,
    # scratch: running activation carried across the (arbitrary) layer grid axis
    x_scratch,
    *, nhead, eps, has_final_norm):

    layer = pl.program_id(1)
    n_layers = pl.num_programs(1)

    # (re)initialize the carried activation at layer 0 of every batch element
    @pl.when(layer == 0)
    def _():
        x_scratch[...] = tgt_ref[0].astype(jnp.float32)

    x = x_scratch[...]                      # (Lq, E) f32, resident in VMEM
    mem = mem_ref[0].astype(jnp.float32)    # (Lk, E)
    e = x.shape[-1]
    dh = e // nhead

    def layer_norm(v, w_ref, b_ref):
        mu = jnp.mean(v, axis=-1, keepdims=True)
        var = jnp.mean((v - mu) ** 2, axis=-1, keepdims=True)
        return (v - mu) * lax.rsqrt(var + eps) * w_ref[0] + b_ref[0]

    def attend_project(q, k, v, wo, bo):
        """Multi-head attention core fused with the output projection.

        q, k, v: (L, E) with heads packed along the last dim; the 1/sqrt(dh)
        scale is already folded into q.  Instead of concatenating head outputs,
        each head is pushed through its slice of Wo and summed.
        """
        out = None
        for h in range(nhead):
            sl = slice(h * dh, (h + 1) * dh)
            # q_h @ k_h^T without an explicit transpose (contract last dims)
            s = lax.dot_general(q[:, sl], k[:, sl],
                                (((1,), (1,)), ((), ())),
                                preferred_element_type=jnp.float32)
            m = jnp.max(s, axis=-1, keepdims=True)
            p = jnp.exp(s - m)
            p = p * _pl_reciprocal(jnp.sum(p, axis=-1, keepdims=True), approx=True)
            head = jnp.dot(p, v[:, sl], preferred_element_type=jnp.float32)
            term = jnp.dot(head, wo[sl, :], preferred_element_type=jnp.float32)
            out = term if out is None else out + term
        return out + bo

    # ---------------- self-attention block ----------------
    qkv = jnp.dot(x, sa_wqkv_ref[0],
                  preferred_element_type=jnp.float32) + sa_bqkv_ref[0]
    sa = attend_project(qkv[:, :e], qkv[:, e:2 * e], qkv[:, 2 * e:],
                        sa_wo_ref[0], sa_bo_ref[0])
    x = layer_norm(x + sa, ln1_w_ref, ln1_b_ref)

    # ---------------- cross-attention block ----------------
    q = jnp.dot(x, ca_wq_ref[0],
                preferred_element_type=jnp.float32) + ca_bq_ref[0]
    kv = jnp.dot(mem, ca_wkv_ref[0],
                 preferred_element_type=jnp.float32) + ca_bkv_ref[0]
    ca = attend_project(q, kv[:, :e], kv[:, e:], ca_wo_ref[0], ca_bo_ref[0])
    x = layer_norm(x + ca, ln2_w_ref, ln2_b_ref)

    # ---------------- feed-forward block ----------------
    h1 = jnp.dot(x, ff_w1_ref[0],
                 preferred_element_type=jnp.float32) + ff_b1_ref[0]
    h1 = jnp.maximum(h1, 0.0)
    ff = jnp.dot(h1, ff_w2_ref[0],
                 preferred_element_type=jnp.float32) + ff_b2_ref[0]
    x = layer_norm(x + ff, ln3_w_ref, ln3_b_ref)

    x_scratch[...] = x

    # last layer: apply the decoder-level norm (if any) and store the output
    @pl.when(layer == n_layers - 1)
    def _():
        y = x
        if has_final_norm:
            mu = jnp.mean(y, axis=-1, keepdims=True)
            var = jnp.mean((y - mu) ** 2, axis=-1, keepdims=True)
            y = (y - mu) * lax.rsqrt(var + eps) * fin_w_ref[...] + fin_b_ref[...]
        o_ref[0] = y.astype(o_ref.dtype)


# ----------------------- parameter prep (layout plumbing) --------------------

_WEIGHT_ORDER = (
    "sa_wqkv", "sa_bqkv", "sa_wo", "sa_bo", "ln1_w", "ln1_b",
    "ca_wq", "ca_bq", "ca_wkv", "ca_bkv", "ca_wo", "ca_bo", "ln2_w", "ln2_b",
    "ff_w1", "ff_b1", "ff_w2", "ff_b2", "ln3_w", "ln3_b",
)


def prepare_decoder_params(layer_params, norm_params, d_model, nhead):
    """Pre-transpose to (in, out), fuse QKV / KV, fold the 1/sqrt(dh) attention
    scale into the Q projection, and stack every per-layer tensor along a leading
    layer axis so the whole stack feeds one pallas_call."""
    e = d_model
    scale = 1.0 / math.sqrt(e // nhead)

    def per_layer(p):
        sa, ca = p["self_attn"], p["multihead_attn"]
        w, b = sa["in_proj_weight"], sa["in_proj_bias"]            # (3E, E), (3E,)
        sa_wqkv = jnp.concatenate([w[:e] * scale, w[e:]], axis=0).T    # (E, 3E)
        sa_bqkv = jnp.concatenate([b[:e] * scale, b[e:]], axis=0)[None, :]
        w, b = ca["in_proj_weight"], ca["in_proj_bias"]
        return dict(
            sa_wqkv=sa_wqkv, sa_bqkv=sa_bqkv,
            sa_wo=sa["out_proj_weight"].T, sa_bo=sa["out_proj_bias"][None, :],
            ln1_w=p["norm1_w"][None, :], ln1_b=p["norm1_b"][None, :],
            ca_wq=(w[:e] * scale).T, ca_bq=(b[:e] * scale)[None, :],
            ca_wkv=w[e:].T, ca_bkv=b[e:][None, :],
            ca_wo=ca["out_proj_weight"].T, ca_bo=ca["out_proj_bias"][None, :],
            ln2_w=p["norm2_w"][None, :], ln2_b=p["norm2_b"][None, :],
            ff_w1=p["linear1_w"].T, ff_b1=p["linear1_b"][None, :],
            ff_w2=p["linear2_w"].T, ff_b2=p["linear2_b"][None, :],
            ln3_w=p["norm3_w"][None, :], ln3_b=p["norm3_b"][None, :],
        )

    per = [per_layer(p) for p in layer_params]
    stacked = {k: jnp.stack([d[k] for d in per], axis=0) for k in _WEIGHT_ORDER}
    if norm_params is not None:
        stacked["fin_w"] = norm_params["w"][None, :]
        stacked["fin_b"] = norm_params["b"][None, :]
    else:
        stacked["fin_w"] = jnp.ones((1, e), jnp.float32)
        stacked["fin_b"] = jnp.zeros((1, e), jnp.float32)
    return stacked


# ------------------------------ forward wrapper ------------------------------

def make_decoder_forward(nhead, has_final_norm, eps=1e-5):
    kernel = functools.partial(_decoder_stack_kernel, nhead=nhead, eps=eps,
                               has_final_norm=has_final_norm)

    @jax.jit
    def forward(tgt, memory, params):
        # PyTorch convention: (seq_len, batch, d_model) -> batch-major for the kernel
        lq, bsz, e = tgt.shape
        lk = memory.shape[0]
        n_layers = params["sa_wqkv"].shape[0]

        tgt_b = jnp.transpose(tgt, (1, 0, 2))      # (B, Lq, E)
        mem_b = jnp.transpose(memory, (1, 0, 2))   # (B, Lk, E)

        tok_map = lambda b, l: (b, 0, 0)           # per-batch block, constant over layers
        lay_map = lambda b, l: (l, 0, 0)           # per-layer weights
        fin_map = lambda b, l: (0, 0)              # final norm (single block)

        in_specs = [pl.BlockSpec((1, lq, e), tok_map),
                    pl.BlockSpec((1, lk, e), tok_map)]
        inputs = [tgt_b, mem_b]
        for name in _WEIGHT_ORDER:
            arr = params[name]
            in_specs.append(pl.BlockSpec((1,) + arr.shape[1:], lay_map))
            inputs.append(arr)
        for name in ("fin_w", "fin_b"):
            in_specs.append(pl.BlockSpec(params[name].shape, fin_map))
            inputs.append(params[name])

        out = pl.pallas_call(
            kernel,
            out_shape=jax.ShapeDtypeStruct((bsz, lq, e), tgt.dtype),
            grid_spec=pltpu.PrefetchScalarGridSpec(
                num_scalar_prefetch=0,
                grid=(bsz, n_layers),
                in_specs=in_specs,
                out_specs=pl.BlockSpec((1, lq, e), tok_map),
                scratch_shapes=[pltpu.VMEM((lq, e), jnp.float32)],
            ),
            compiler_params=_CompilerParams(
                dimension_semantics=("parallel", "arbitrary")),
        )(*inputs)
        return jnp.transpose(out, (1, 0, 2))       # back to (Lq, B, E)

    return forward


# ------------------------------ parameter init -------------------------------

def init_decoder_layer_params(key, d_model, nhead, dim_ff, dtype=jnp.float32):
    ks = jax.random.split(key, 8)

    def xavier(k, shape):
        fan_out, fan_in = shape
        bound = math.sqrt(6.0 / (fan_in + fan_out))
        return jax.random.uniform(k, shape, dtype, -bound, bound)

    def mha_params(k1, k2):
        return {
            "in_proj_weight": xavier(k1, (3 * d_model, d_model)),
            "in_proj_bias": jnp.zeros((3 * d_model,), dtype),
            "out_proj_weight": xavier(k2, (d_model, d_model)),
            "out_proj_bias": jnp.zeros((d_model,), dtype),
        }

    return {
        "self_attn": mha_params(ks[0], ks[1]),
        "multihead_attn": mha_params(ks[2], ks[3]),
        "linear1_w": xavier(ks[4], (dim_ff, d_model)),
        "linear1_b": jnp.zeros((dim_ff,), dtype),
        "linear2_w": xavier(ks[5], (d_model, dim_ff)),
        "linear2_b": jnp.zeros((d_model,), dtype),
        "norm1_w": jnp.ones((d_model,), dtype), "norm1_b": jnp.zeros((d_model,), dtype),
        "norm2_w": jnp.ones((d_model,), dtype), "norm2_b": jnp.zeros((d_model,), dtype),
        "norm3_w": jnp.ones((d_model,), dtype), "norm3_b": jnp.zeros((d_model,), dtype),
    }


# ----------------------------- pure-JAX reference ----------------------------

def reference_forward(tgt, memory, layer_params, norm_params, nhead):
    def ln(x, w, b, eps=1e-5):
        mu = x.mean(-1, keepdims=True)
        var = ((x - mu) ** 2).mean(-1, keepdims=True)
        return (x - mu) / jnp.sqrt(var + eps) * w + b

    def mha(q_in, kv_in, p):
        lq, bsz, e = q_in.shape
        lk = kv_in.shape[0]
        h, dh = nhead, q_in.shape[-1] // nhead
        w, bb = p["in_proj_weight"], p["in_proj_bias"]
        q = q_in @ w[:e].T + bb[:e]
        k = kv_in @ w[e:2 * e].T + bb[e:2 * e]
        v = kv_in @ w[2 * e:].T + bb[2 * e:]
        q = q.reshape(lq, bsz * h, dh).transpose(1, 0, 2) * (1.0 / math.sqrt(dh))
        k = k.reshape(lk, bsz * h, dh).transpose(1, 0, 2)
        v = v.reshape(lk, bsz * h, dh).transpose(1, 0, 2)
        s = jnp.einsum("bqd,bkd->bqk", q, k)
        a = jax.nn.softmax(s, axis=-1)
        o = jnp.einsum("bqk,bkd->bqd", a, v)
        o = o.transpose(1, 0, 2).reshape(lq, bsz, e)
        return o @ p["out_proj_weight"].T + p["out_proj_bias"]

    x = tgt
    for p in layer_params:
        x = ln(x + mha(x, x, p["self_attn"]), p["norm1_w"], p["norm1_b"])
        x = ln(x + mha(x, memory, p["multihead_attn"]), p["norm2_w"], p["norm2_b"])
        ff = jnp.maximum(x @ p["linear1_w"].T + p["linear1_b"], 0.0)
        ff = ff @ p["linear2_w"].T + p["linear2_b"]
        x = ln(x + ff, p["norm3_w"], p["norm3_b"])
    if norm_params is not None:
        x = ln(x, norm_params["w"], norm_params["b"])
    return x


# ----------------------------------- main ------------------------------------

if __name__ == "__main__":
    d_model, nhead, dim_ff, num_layers = 32, 4, 64, 2
    tgt_len, mem_len, batch = 8, 8, 2

    key = jax.random.PRNGKey(0)
    k_tgt, k_mem, k_par = jax.random.split(key, 3)

    # PyTorch Transformer convention: (seq_len, batch, d_model)
    tgt = jax.random.normal(k_tgt, (tgt_len, batch, d_model), jnp.float32)
    memory = jax.random.normal(k_mem, (mem_len, batch, d_model), jnp.float32)

    layer_keys = jax.random.split(k_par, num_layers)
    layer_params = [init_decoder_layer_params(layer_keys[i], d_model, nhead, dim_ff)
                    for i in range(num_layers)]
    norm_params = {"w": jnp.ones((d_model,), jnp.float32),
                   "b": jnp.zeros((d_model,), jnp.float32)}

    params = prepare_decoder_params(layer_params, norm_params, d_model, nhead)
    forward = make_decoder_forward(nhead=nhead, has_final_norm=True)

    out = jax.block_until_ready(forward(tgt, memory, params))
    assert out.shape == (tgt_len, batch, d_model)
    assert bool(jnp.all(jnp.isfinite(out)))

    ref = reference_forward(tgt, memory, layer_params, norm_params, nhead)
    max_err = float(jnp.max(jnp.abs(out - ref)))
    assert max_err < 5e-2, f"mismatch vs pure-JAX reference: {max_err}"

    print("KERNEL_OK")
</pallas_src>

<mosaic_0001>
module attributes {stable_mosaic.version = 11 : i64} {
  func.func @_decoder_stack_kernel(%arg0: i32, %arg1: i32, %arg2: memref<1x8x32xf32, #tpu.memory_space<vmem>>, %arg3: memref<1x8x32xf32, #tpu.memory_space<vmem>>, %arg4: memref<1x32x96xf32, #tpu.memory_space<vmem>>, %arg5: memref<1x1x96xf32, #tpu.memory_space<vmem>>, %arg6: memref<1x32x32xf32, #tpu.memory_space<vmem>>, %arg7: memref<1x1x32xf32, #tpu.memory_space<vmem>>, %arg8: memref<1x1x32xf32, #tpu.memory_space<vmem>>, %arg9: memref<1x1x32xf32, #tpu.memory_space<vmem>>, %arg10: memref<1x32x32xf32, #tpu.memory_space<vmem>>, %arg11: memref<1x1x32xf32, #tpu.memory_space<vmem>>, %arg12: memref<1x32x64xf32, #tpu.memory_space<vmem>>, %arg13: memref<1x1x64xf32, #tpu.memory_space<vmem>>, %arg14: memref<1x32x32xf32, #tpu.memory_space<vmem>>, %arg15: memref<1x1x32xf32, #tpu.memory_space<vmem>>, %arg16: memref<1x1x32xf32, #tpu.memory_space<vmem>>, %arg17: memref<1x1x32xf32, #tpu.memory_space<vmem>>, %arg18: memref<1x32x64xf32, #tpu.memory_space<vmem>>, %arg19: memref<1x1x64xf32, #tpu.memory_space<vmem>>, %arg20: memref<1x64x32xf32, #tpu.memory_space<vmem>>, %arg21: memref<1x1x32xf32, #tpu.memory_space<vmem>>, %arg22: memref<1x1x32xf32, #tpu.memory_space<vmem>>, %arg23: memref<1x1x32xf32, #tpu.memory_space<vmem>>, %arg24: memref<1x32xf32, #tpu.memory_space<vmem>>, %arg25: memref<1x32xf32, #tpu.memory_space<vmem>>, %arg26: memref<1x8x32xf32, #tpu.memory_space<vmem>>, %arg27: memref<8x32xf32, #tpu.memory_space<vmem>>) attributes {dimension_semantics = [#tpu.dimension_semantics<parallel>, #tpu.dimension_semantics<arbitrary>], iteration_bounds = array<i64: 2, 2>, scalar_prefetch = 0 : i64, scratch_operands = 1 : i64, tpu.core_type = #tpu.core_type<tc>, window_params = [{transform_indices = @transform_0, window_bounds = array<i64: 1, 8, 32>}, {transform_indices = @transform_1, window_bounds = array<i64: 1, 8, 32>}, {transform_indices = @transform_2, window_bounds = array<i64: 1, 32, 96>}, {transform_indices = @transform_3, window_bounds = array<i64: 1, 1, 96>}, {transform_indices = @transform_4, window_bounds = array<i64: 1, 32, 32>}, {transform_indices = @transform_5, window_bounds = array<i64: 1, 1, 32>}, {transform_indices = @transform_6, window_bounds = array<i64: 1, 1, 32>}, {transform_indices = @transform_7, window_bounds = array<i64: 1, 1, 32>}, {transform_indices = @transform_8, window_bounds = array<i64: 1, 32, 32>}, {transform_indices = @transform_9, window_bounds = array<i64: 1, 1, 32>}, {transform_indices = @transform_10, window_bounds = array<i64: 1, 32, 64>}, {transform_indices = @transform_11, window_bounds = array<i64: 1, 1, 64>}, {transform_indices = @transform_12, window_bounds = array<i64: 1, 32, 32>}, {transform_indices = @transform_13, window_bounds = array<i64: 1, 1, 32>}, {transform_indices = @transform_14, window_bounds = array<i64: 1, 1, 32>}, {transform_indices = @transform_15, window_bounds = array<i64: 1, 1, 32>}, {transform_indices = @transform_16, window_bounds = array<i64: 1, 32, 64>}, {transform_indices = @transform_17, window_bounds = array<i64: 1, 1, 64>}, {transform_indices = @transform_18, window_bounds = array<i64: 1, 64, 32>}, {transform_indices = @transform_19, window_bounds = array<i64: 1, 1, 32>}, {transform_indices = @transform_20, window_bounds = array<i64: 1, 1, 32>}, {transform_indices = @transform_21, window_bounds = array<i64: 1, 1, 32>}, {pipeline_mode = #tpu.pipeline_mode<synchronous>, transform_indices = @transform_22, window_bounds = array<i64: 1, 32>}, {pipeline_mode = #tpu.pipeline_mode<synchronous>, transform_indices = @transform_23, window_bounds = array<i64: 1, 32>}, {transform_indices = @transform_24, window_bounds = array<i64: 1, 8, 32>}]} {
    %c0_i32 = arith.constant 0 : i32
    %0 = arith.cmpi eq, %arg1, %c0_i32 : i32
    %1 = arith.extui %0 : i1 to i32
    %c0_i32_0 = arith.constant 0 : i32
    %2 = arith.cmpi ne, %1, %c0_i32_0 : i32
    scf.if %2 {
      %c0_128 = arith.constant 0 : index
      %c0_129 = arith.constant 0 : index
      %c0_130 = arith.constant 0 : index
      %287 = vector.load %arg2[%c0_128, %c0_129, %c0_130] : memref<1x8x32xf32, #tpu.memory_space<vmem>>, vector<1x8x32xf32>
      %288 = vector.shape_cast %287 : vector<1x8x32xf32> to vector<8x32xf32>
      %c0_131 = arith.constant 0 : index
      %c0_132 = arith.constant 0 : index
      %289 = vector.load %arg27[%c0_131, %c0_132] : memref<8x32xf32, #tpu.memory_space<vmem>>, vector<8x32xf32>
      tpu.vector_store %arg27[%c0_131, %c0_132], %288 {strides = array<i32>} : memref<8x32xf32, #tpu.memory_space<vmem>>, vector<8x32xf32>,
    } else {
    }
    %c0 = arith.constant 0 : index
    %c0_1 = arith.constant 0 : index
    %3 = vector.load %arg27[%c0, %c0_1] : memref<8x32xf32, #tpu.memory_space<vmem>>, vector<8x32xf32>
    %c0_2 = arith.constant 0 : index
    %c0_3 = arith.constant 0 : index
    %c0_4 = arith.constant 0 : index
    %4 = vector.load %arg3[%c0_2, %c0_3, %c0_4] : memref<1x8x32xf32, #tpu.memory_space<vmem>>, vector<1x8x32xf32>
    %5 = vector.shape_cast %4 : vector<1x8x32xf32> to vector<8x32xf32>
    %c0_5 = arith.constant 0 : index
    %c0_6 = arith.constant 0 : index
    %c0_7 = arith.constant 0 : index
    %6 = vector.load %arg4[%c0_5, %c0_6, %c0_7] : memref<1x32x96xf32, #tpu.memory_space<vmem>>, vector<1x32x96xf32>
    %7 = vector.shape_cast %6 : vector<1x32x96xf32> to vector<32x96xf32>
    %cst = arith.constant dense<0.000000e+00> : vector<8x96xf32>
    %8 = tpu.matmul %3, %7, %cst {dimension_numbers = #tpu.dot_dimension_numbers<[1], [0], [0], [1], [0, 0, 1, 1], [], []>} : vector<8x32xf32>, vector<32x96xf32>, vector<8x96xf32> -> vector<8x96xf32>
    %c0_8 = arith.constant 0 : index
    %c0_9 = arith.constant 0 : index
    %c0_10 = arith.constant 0 : index
    %9 = vector.load %arg5[%c0_8, %c0_9, %c0_10] : memref<1x1x96xf32, #tpu.memory_space<vmem>>, vector<1x1x96xf32>
    %10 = vector.shape_cast %9 : vector<1x1x96xf32> to vector<1x96xf32>
    %11 = vector.broadcast %10 : vector<1x96xf32> to vector<8x96xf32>
    %12 = arith.addf %8, %11 : vector<8x96xf32>
    %13 = vector.extract_strided_slice %12 {offsets = [0, 0], sizes = [8, 32], strides = [1, 1]} : vector<8x96xf32> to vector<8x32xf32>
    %14 = vector.extract_strided_slice %12 {offsets = [0, 32], sizes = [8, 32], strides = [1, 1]} : vector<8x96xf32> to vector<8x32xf32>
    %15 = vector.extract_strided_slice %12 {offsets = [0, 64], sizes = [8, 32], strides = [1, 1]} : vector<8x96xf32> to vector<8x32xf32>
    %c0_11 = arith.constant 0 : index
    %c0_12 = arith.constant 0 : index
    %c0_13 = arith.constant 0 : index
    %16 = vector.load %arg6[%c0_11, %c0_12, %c0_13] : memref<1x32x32xf32, #tpu.memory_space<vmem>>, vector<1x32x32xf32>
    %17 = vector.shape_cast %16 : vector<1x32x32xf32> to vector<32x32xf32>
    %c0_14 = arith.constant 0 : index
    %c0_15 = arith.constant 0 : index
    %c0_16 = arith.constant 0 : index
    %18 = vector.load %arg7[%c0_14, %c0_15, %c0_16] : memref<1x1x32xf32, #tpu.memory_space<vmem>>, vector<1x1x32xf32>
    %19 = vector.shape_cast %18 : vector<1x1x32xf32> to vector<1x32xf32>
    %20 = vector.extract_strided_slice %13 {offsets = [0, 0], sizes = [8, 8], strides = [1, 1]} : vector<8x32xf32> to vector<8x8xf32>
    %21 = vector.extract_strided_slice %14 {offsets = [0, 0], sizes = [8, 8], strides = [1, 1]} : vector<8x32xf32> to vector<8x8xf32>
    %cst_17 = arith.constant dense<0.000000e+00> : vector<8x8xf32>
    %22 = tpu.matmul %20, %21, %cst_17 {dimension_numbers = #tpu.dot_dimension_numbers<[1], [1], [0], [0], [0, 0, 1, 0], [], []>} : vector<8x8xf32>, vector<8x8xf32>, vector<8x8xf32> -> vector<8x8xf32>
    %cst_18 = arith.constant dense<0xFF800000> : vector<8xf32>
    %23 = vector.multi_reduction <maximumf>, %22, %cst_18 [1] : vector<8x8xf32> to vector<8xf32>
    %24 = vector.shape_cast %23 : vector<8xf32> to vector<8x1xf32>
    %25 = vector.broadcast %24 : vector<8x1xf32> to vector<8x8xf32>
    %26 = arith.subf %22, %25 : vector<8x8xf32>
    %27 = math.exp %26 : vector<8x8xf32>
    %cst_19 = arith.constant dense<0.000000e+00> : vector<8xf32>
    %28 = vector.multi_reduction <add>, %27, %cst_19 [1] : vector<8x8xf32> to vector<8xf32>
    %29 = vector.shape_cast %28 : vector<8xf32> to vector<8x1xf32>
    %30 = tpu.reciprocal %29 {approx = true} : vector<8x1xf32> -> vector<8x1xf32>
    %31 = vector.broadcast %30 : vector<8x1xf32> to vector<8x8xf32>
    %32 = arith.mulf %27, %31 : vector<8x8xf32>
    %33 = vector.extract_strided_slice %15 {offsets = [0, 0], sizes = [8, 8], strides = [1, 1]} : vector<8x32xf32> to vector<8x8xf32>
    %cst_20 = arith.constant dense<0.000000e+00> : vector<8x8xf32>
    %34 = tpu.matmul %32, %33, %cst_20 {dimension_numbers = #tpu.dot_dimension_numbers<[1], [0], [0], [1], [0, 0, 1, 1], [], []>} : vector<8x8xf32>, vector<8x8xf32>, vector<8x8xf32> -> vector<8x8xf32>
    %35 = vector.extract_strided_slice %17 {offsets = [0, 0], sizes = [8, 32], strides = [1, 1]} : vector<32x32xf32> to vector<8x32xf32>
    %cst_21 = arith.constant dense<0.000000e+00> : vector<8x32xf32>
    %36 = tpu.matmul %34, %35, %cst_21 {dimension_numbers = #tpu.dot_dimension_numbers<[1], [0], [0], [1], [0, 0, 1, 1], [], []>} : vector<8x8xf32>, vector<8x32xf32>, vector<8x32xf32> -> vector<8x32xf32>
    %37 = vector.extract_strided_slice %13 {offsets = [0, 8], sizes = [8, 8], strides = [1, 1]} : vector<8x32xf32> to vector<8x8xf32>
    %38 = vector.extract_strided_slice %14 {offsets = [0, 8], sizes = [8, 8], strides = [1, 1]} : vector<8x32xf32> to vector<8x8xf32>
    %cst_22 = arith.constant dense<0.000000e+00> : vector<8x8xf32>
    %39 = tpu.matmul %37, %38, %cst_22 {dimension_numbers = #tpu.dot_dimension_numbers<[1], [1], [0], [0], [0, 0, 1, 0], [], []>} : vector<8x8xf32>, vector<8x8xf32>, vector<8x8xf32> -> vector<8x8xf32>
    %cst_23 = arith.constant dense<0xFF800000> : vector<8xf32>
    %40 = vector.multi_reduction <maximumf>, %39, %cst_23 [1] : vector<8x8xf32> to vector<8xf32>
    %41 = vector.shape_cast %40 : vector<8xf32> to vector<8x1xf32>
    %42 = vector.broadcast %41 : vector<8x1xf32> to vector<8x8xf32>
    %43 = arith.subf %39, %42 : vector<8x8xf32>
    %44 = math.exp %43 : vector<8x8xf32>
    %cst_24 = arith.constant dense<0.000000e+00> : vector<8xf32>
    %45 = vector.multi_reduction <add>, %44, %cst_24 [1] : vector<8x8xf32> to vector<8xf32>
    %46 = vector.shape_cast %45 : vector<8xf32> to vector<8x1xf32>
    %47 = tpu.reciprocal %46 {approx = true} : vector<8x1xf32> -> vector<8x1xf32>
    %48 = vector.broadcast %47 : vector<8x1xf32> to vector<8x8xf32>
    %49 = arith.mulf %44, %48 : vector<8x8xf32>
    %50 = vector.extract_strided_slice %15 {offsets = [0, 8], sizes = [8, 8], strides = [1, 1]} : vector<8x32xf32> to vector<8x8xf32>
    %cst_25 = arith.constant dense<0.000000e+00> : vector<8x8xf32>
    %51 = tpu.matmul %49, %50, %cst_25 {dimension_numbers = #tpu.dot_dimension_numbers<[1], [0], [0], [1], [0, 0, 1, 1], [], []>} : vector<8x8xf32>, vector<8x8xf32>, vector<8x8xf32> -> vector<8x8xf32>
    %52 = vector.extract_strided_slice %17 {offsets = [8, 0], sizes = [8, 32], strides = [1, 1]} : vector<32x32xf32> to vector<8x32xf32>
    %cst_26 = arith.constant dense<0.000000e+00> : vector<8x32xf32>
    %53 = tpu.matmul %51, %52, %cst_26 {dimension_numbers = #tpu.dot_dimension_numbers<[1], [0], [0], [1], [0, 0, 1, 1], [], []>} : vector<8x8xf32>, vector<8x32xf32>, vector<8x32xf32> -> vector<8x32xf32>
    %54 = arith.addf %36, %53 : vector<8x32xf32>
    %55 = vector.extract_strided_slice %13 {offsets = [0, 16], sizes = [8, 8], strides = [1, 1]} : vector<8x32xf32> to vector<8x8xf32>
    %56 = vector.extract_strided_slice %14 {offsets = [0, 16], sizes = [8, 8], strides = [1, 1]} : vector<8x32xf32> to vector<8x8xf32>
    %cst_27 = arith.constant dense<0.000000e+00> : vector<8x8xf32>
    %57 = tpu.matmul %55, %56, %cst_27 {dimension_numbers = #tpu.dot_dimension_numbers<[1], [1], [0], [0], [0, 0, 1, 0], [], []>} : vector<8x8xf32>, vector<8x8xf32>, vector<8x8xf32> -> vector<8x8xf32>
    %cst_28 = arith.constant dense<0xFF800000> : vector<8xf32>
    %58 = vector.multi_reduction <maximumf>, %57, %cst_28 [1] : vector<8x8xf32> to vector<8xf32>
    %59 = vector.shape_cast %58 : vector<8xf32> to vector<8x1xf32>
    %60 = vector.broadcast %59 : vector<8x1xf32> to vector<8x8xf32>
    %61 = arith.subf %57, %60 : vector<8x8xf32>
    %62 = math.exp %61 : vector<8x8xf32>
    %cst_29 = arith.constant dense<0.000000e+00> : vector<8xf32>
    %63 = vector.multi_reduction <add>, %62, %cst_29 [1] : vector<8x8xf32> to vector<8xf32>
    %64 = vector.shape_cast %63 : vector<8xf32> to vector<8x1xf32>
    %65 = tpu.reciprocal %64 {approx = true} : vector<8x1xf32> -> vector<8x1xf32>
    %66 = vector.broadcast %65 : vector<8x1xf32> to vector<8x8xf32>
    %67 = arith.mulf %62, %66 : vector<8x8xf32>
    %68 = vector.extract_strided_slice %15 {offsets = [0, 16], sizes = [8, 8], strides = [1, 1]} : vector<8x32xf32> to vector<8x8xf32>
    %cst_30 = arith.constant dense<0.000000e+00> : vector<8x8xf32>
    %69 = tpu.matmul %67, %68, %cst_30 {dimension_numbers = #tpu.dot_dimension_numbers<[1], [0], [0], [1], [0, 0, 1, 1], [], []>} : vector<8x8xf32>, vector<8x8xf32>, vector<8x8xf32> -> vector<8x8xf32>
    %70 = vector.extract_strided_slice %17 {offsets = [16, 0], sizes = [8, 32], strides = [1, 1]} : vector<32x32xf32> to vector<8x32xf32>
    %cst_31 = arith.constant dense<0.000000e+00> : vector<8x32xf32>
    %71 = tpu.matmul %69, %70, %cst_31 {dimension_numbers = #tpu.dot_dimension_numbers<[1], [0], [0], [1], [0, 0, 1, 1], [], []>} : vector<8x8xf32>, vector<8x32xf32>, vector<8x32xf32> -> vector<8x32xf32>
    %72 = arith.addf %54, %71 : vector<8x32xf32>
    %73 = vector.extract_strided_slice %13 {offsets = [0, 24], sizes = [8, 8], strides = [1, 1]} : vector<8x32xf32> to vector<8x8xf32>
    %74 = vector.extract_strided_slice %14 {offsets = [0, 24], sizes = [8, 8], strides = [1, 1]} : vector<8x32xf32> to vector<8x8xf32>
    %cst_32 = arith.constant dense<0.000000e+00> : vector<8x8xf32>
    %75 = tpu.matmul %73, %74, %cst_32 {dimension_numbers = #tpu.dot_dimension_numbers<[1], [1], [0], [0], [0, 0, 1, 0], [], []>} : vector<8x8xf32>, vector<8x8xf32>, vector<8x8xf32> -> vector<8x8xf32>
    %cst_33 = arith.constant dense<0xFF800000> : vector<8xf32>
    %76 = vector.multi_reduction <maximumf>, %75, %cst_33 [1] : vector<8x8xf32> to vector<8xf32>
    %77 = vector.shape_cast %76 : vector<8xf32> to vector<8x1xf32>
    %78 = vector.broadcast %77 : vector<8x1xf32> to vector<8x8xf32>
    %79 = arith.subf %75, %78 : vector<8x8xf32>
    %80 = math.exp %79 : vector<8x8xf32>
    %cst_34 = arith.constant dense<0.000000e+00> : vector<8xf32>
    %81 = vector.multi_reduction <add>, %80, %cst_34 [1] : vector<8x8xf32> to vector<8xf32>
    %82 = vector.shape_cast %81 : vector<8xf32> to vector<8x1xf32>
    %83 = tpu.reciprocal %82 {approx = true} : vector<8x1xf32> -> vector<8x1xf32>
    %84 = vector.broadcast %83 : vector<8x1xf32> to vector<8x8xf32>
    %85 = arith.mulf %80, %84 : vector<8x8xf32>
    %86 = vector.extract_strided_slice %15 {offsets = [0, 24], sizes = [8, 8], strides = [1, 1]} : vector<8x32xf32> to vector<8x8xf32>
    %cst_35 = arith.constant dense<0.000000e+00> : vector<8x8xf32>
    %87 = tpu.matmul %85, %86, %cst_35 {dimension_numbers = #tpu.dot_dimension_numbers<[1], [0], [0], [1], [0, 0, 1, 1], [], []>} : vector<8x8xf32>, vector<8x8xf32>, vector<8x8xf32> -> vector<8x8xf32>
    %88 = vector.extract_strided_slice %17 {offsets = [24, 0], sizes = [8, 32], strides = [1, 1]} : vector<32x32xf32> to vector<8x32xf32>
    %cst_36 = arith.constant dense<0.000000e+00> : vector<8x32xf32>
    %89 = tpu.matmul %87, %88, %cst_36 {dimension_numbers = #tpu.dot_dimension_numbers<[1], [0], [0], [1], [0, 0, 1, 1], [], []>} : vector<8x8xf32>, vector<8x32xf32>, vector<8x32xf32> -> vector<8x32xf32>
    %90 = arith.addf %72, %89 : vector<8x32xf32>
    %91 = vector.broadcast %19 : vector<1x32xf32> to vector<8x32xf32>
    %92 = arith.addf %90, %91 : vector<8x32xf32>
    %93 = arith.addf %3, %92 : vector<8x32xf32>
    %cst_37 = arith.constant dense<0.000000e+00> : vector<8xf32>
    %94 = vector.multi_reduction <add>, %93, %cst_37 [1] : vector<8x32xf32> to vector<8xf32>
    %95 = vector.shape_cast %94 : vector<8xf32> to vector<8x1xf32>
    %cst_38 = arith.constant 3.200000e+01 : f32
    %96 = vector.broadcast %cst_38 : f32 to vector<8x1xf32>
    %97 = arith.divf %95, %96 : vector<8x1xf32>
    %98 = vector.broadcast %97 : vector<8x1xf32> to vector<8x32xf32>
    %99 = arith.subf %93, %98 : vector<8x32xf32>
    %100 = arith.mulf %99, %99 : vector<8x32xf32>
    %cst_39 = arith.constant dense<0.000000e+00> : vector<8xf32>
    %101 = vector.multi_reduction <add>, %100, %cst_39 [1] : vector<8x32xf32> to vector<8xf32>
    %102 = vector.shape_cast %101 : vector<8xf32> to vector<8x1xf32>
    %cst_40 = arith.constant 3.200000e+01 : f32
    %103 = vector.broadcast %cst_40 : f32 to vector<8x1xf32>
    %104 = arith.divf %102, %103 : vector<8x1xf32>
    %105 = vector.broadcast %97 : vector<8x1xf32> to vector<8x32xf32>
    %106 = arith.subf %93, %105 : vector<8x32xf32>
    %cst_41 = arith.constant 9.99999974E-6 : f32
    %107 = vector.broadcast %cst_41 : f32 to vector<8x1xf32>
    %108 = arith.addf %104, %107 : vector<8x1xf32>
    %109 = math.rsqrt %108 : vector<8x1xf32>
    %110 = vector.broadcast %109 : vector<8x1xf32> to vector<8x32xf32>
    %111 = arith.mulf %106, %110 : vector<8x32xf32>
    %c0_42 = arith.constant 0 : index
    %c0_43 = arith.constant 0 : index
    %c0_44 = arith.constant 0 : index
    %112 = vector.load %arg8[%c0_42, %c0_43, %c0_44] : memref<1x1x32xf32, #tpu.memory_space<vmem>>, vector<1x1x32xf32>
    %113 = vector.shape_cast %112 : vector<1x1x32xf32> to vector<1x32xf32>
    %114 = vector.broadcast %113 : vector<1x32xf32> to vector<8x32xf32>
    %115 = arith.mulf %111, %114 : vector<8x32xf32>
    %c0_45 = arith.constant 0 : index
    %c0_46 = arith.constant 0 : index
    %c0_47 = arith.constant 0 : index
    %116 = vector.load %arg9[%c0_45, %c0_46, %c0_47] : memref<1x1x32xf32, #tpu.memory_space<vmem>>, vector<1x1x32xf32>
    %117 = vector.shape_cast %116 : vector<1x1x32xf32> to vector<1x32xf32>
    %118 = vector.broadcast %117 : vector<1x32xf32> to vector<8x32xf32>
    %119 = arith.addf %115, %118 : vector<8x32xf32>
    %c0_48 = arith.constant 0 : index
    %c0_49 = arith.constant 0 : index
    %c0_50 = arith.constant 0 : index
    %120 = vector.load %arg10[%c0_48, %c0_49, %c0_50] : memref<1x32x32xf32, #tpu.memory_space<vmem>>, vector<1x32x32xf32>
    %121 = vector.shape_cast %120 : vector<1x32x32xf32> to vector<32x32xf32>
    %cst_51 = arith.constant dense<0.000000e+00> : vector<8x32xf32>
    %122 = tpu.matmul %119, %121, %cst_51 {dimension_numbers = #tpu.dot_dimension_numbers<[1], [0], [0], [1], [0, 0, 1, 1], [], []>} : vector<8x32xf32>, vector<32x32xf32>, vector<8x32xf32> -> vector<8x32xf32>
    %c0_52 = arith.constant 0 : index
    %c0_53 = arith.constant 0 : index
    %c0_54 = arith.constant 0 : index
    %123 = vector.load %arg11[%c0_52, %c0_53, %c0_54] : memref<1x1x32xf32, #tpu.memory_space<vmem>>, vector<1x1x32xf32>
    %124 = vector.shape_cast %123 : vector<1x1x32xf32> to vector<1x32xf32>
    %125 = vector.broadcast %124 : vector<1x32xf32> to vector<8x32xf32>
    %126 = arith.addf %122, %125 : vector<8x32xf32>
    %c0_55 = arith.constant 0 : index
    %c0_56 = arith.constant 0 : index
    %c0_57 = arith.constant 0 : index
    %127 = vector.load %arg12[%c0_55, %c0_56, %c0_57] : memref<1x32x64xf32, #tpu.memory_space<vmem>>, vector<1x32x64xf32>
    %128 = vector.shape_cast %127 : vector<1x32x64xf32> to vector<32x64xf32>
    %cst_58 = arith.constant dense<0.000000e+00> : vector<8x64xf32>
    %129 = tpu.matmul %5, %128, %cst_58 {dimension_numbers = #tpu.dot_dimension_numbers<[1], [0], [0], [1], [0, 0, 1, 1], [], []>} : vector<8x32xf32>, vector<32x64xf32>, vector<8x64xf32> -> vector<8x64xf32>
    %c0_59 = arith.constant 0 : index
    %c0_60 = arith.constant 0 : index
    %c0_61 = arith.constant 0 : index
    %130 = vector.load %arg13[%c0_59, %c0_60, %c0_61] : memref<1x1x64xf32, #tpu.memory_space<vmem>>, vector<1x1x64xf32>
    %131 = vector.shape_cast %130 : vector<1x1x64xf32> to vector<1x64xf32>
    %132 = vector.broadcast %131 : vector<1x64xf32> to vector<8x64xf32>
    %133 = arith.addf %129, %132 : vector<8x64xf32>
    %134 = vector.extract_strided_slice %133 {offsets = [0, 0], sizes = [8, 32], strides = [1, 1]} : vector<8x64xf32> to vector<8x32xf32>
    %135 = vector.extract_strided_slice %133 {offsets = [0, 32], sizes = [8, 32], strides = [1, 1]} : vector<8x64xf32> to vector<8x32xf32>
    %c0_62 = arith.constant 0 : index
    %c0_63 = arith.constant 0 : index
    %c0_64 = arith.constant 0 : index
    %136 = vector.load %arg14[%c0_62, %c0_63, %c0_64] : memref<1x32x32xf32, #tpu.memory_space<vmem>>, vector<1x32x32xf32>
    %137 = vector.shape_cast %136 : vector<1x32x32xf32> to vector<32x32xf32>
    %c0_65 = arith.constant 0 : index
    %c0_66 = arith.constant 0 : index
    %c0_67 = arith.constant 0 : index
    %138 = vector.load %arg15[%c0_65, %c0_66, %c0_67] : memref<1x1x32xf32, #tpu.memory_space<vmem>>, vector<1x1x32xf32>
    %139 = vector.shape_cast %138 : vector<1x1x32xf32> to vector<1x32xf32>
    %140 = vector.extract_strided_slice %126 {offsets = [0, 0], sizes = [8, 8], strides = [1, 1]} : vector<8x32xf32> to vector<8x8xf32>
    %141 = vector.extract_strided_slice %134 {offsets = [0, 0], sizes = [8, 8], strides = [1, 1]} : vector<8x32xf32> to vector<8x8xf32>
    %cst_68 = arith.constant dense<0.000000e+00> : vector<8x8xf32>
    %142 = tpu.matmul %140, %141, %cst_68 {dimension_numbers = #tpu.dot_dimension_numbers<[1], [1], [0], [0], [0, 0, 1, 0], [], []>} : vector<8x8xf32>, vector<8x8xf32>, vector<8x8xf32> -> vector<8x8xf32>
    %cst_69 = arith.constant dense<0xFF800000> : vector<8xf32>
    %143 = vector.multi_reduction <maximumf>, %142, %cst_69 [1] : vector<8x8xf32> to vector<8xf32>
    %144 = vector.shape_cast %143 : vector<8xf32> to vector<8x1xf32>
    %145 = vector.broadcast %144 : vector<8x1xf32> to vector<8x8xf32>
    %146 = arith.subf %142, %145 : vector<8x8xf32>
    %147 = math.exp %146 : vector<8x8xf32>
    %cst_70 = arith.constant dense<0.000000e+00> : vector<8xf32>
    %148 = vector.multi_reduction <add>, %147, %cst_70 [1] : vector<8x8xf32> to vector<8xf32>
    %149 = vector.shape_cast %148 : vector<8xf32> to vector<8x1xf32>
    %150 = tpu.reciprocal %149 {approx = true} : vector<8x1xf32> -> vector<8x1xf32>
    %151 = vector.broadcast %150 : vector<8x1xf32> to vector<8x8xf32>
    %152 = arith.mulf %147, %151 : vector<8x8xf32>
    %153 = vector.extract_strided_slice %135 {offsets = [0, 0], sizes = [8, 8], strides = [1, 1]} : vector<8x32xf32> to vector<8x8xf32>
    %cst_71 = arith.constant dense<0.000000e+00> : vector<8x8xf32>
    %154 = tpu.matmul %152, %153, %cst_71 {dimension_numbers = #tpu.dot_dimension_numbers<[1], [0], [0], [1], [0, 0, 1, 1], [], []>} : vector<8x8xf32>, vector<8x8xf32>, vector<8x8xf32> -> vector<8x8xf32>
    %155 = vector.extract_strided_slice %137 {offsets = [0, 0], sizes = [8, 32], strides = [1, 1]} : vector<32x32xf32> to vector<8x32xf32>
    %cst_72 = arith.constant dense<0.000000e+00> : vector<8x32xf32>
    %156 = tpu.matmul %154, %155, %cst_72 {dimension_numbers = #tpu.dot_dimension_numbers<[1], [0], [0], [1], [0, 0, 1, 1], [], []>} : vector<8x8xf32>, vector<8x32xf32>, vector<8x32xf32> -> vector<8x32xf32>
    %157 = vector.extract_strided_slice %126 {offsets = [0, 8], sizes = [8, 8], strides = [1, 1]} : vector<8x32xf32> to vector<8x8xf32>
    %158 = vector.extract_strided_slice %134 {offsets = [0, 8], sizes = [8, 8], strides = [1, 1]} : vector<8x32xf32> to vector<8x8xf32>
    %cst_73 = arith.constant dense<0.000000e+00> : vector<8x8xf32>
    %159 = tpu.matmul %157, %158, %cst_73 {dimension_numbers = #tpu.dot_dimension_numbers<[1], [1], [0], [0], [0, 0, 1, 0], [], []>} : vector<8x8xf32>, vector<8x8xf32>, vector<8x8xf32> -> vector<8x8xf32>
    %cst_74 = arith.constant dense<0xFF800000> : vector<8xf32>
    %160 = vector.multi_reduction <maximumf>, %159, %cst_74 [1] : vector<8x8xf32> to vector<8xf32>
    %161 = vector.shape_cast %160 : vector<8xf32> to vector<8x1xf32>
    %162 = vector.broadcast %161 : vector<8x1xf32> to vector<8x8xf32>
    %163 = arith.subf %159, %162 : vector<8x8xf32>
    %164 = math.exp %163 : vector<8x8xf32>
    %cst_75 = arith.constant dense<0.000000e+00> : vector<8xf32>
    %165 = vector.multi_reduction <add>, %164, %cst_75 [1] : vector<8x8xf32> to vector<8xf32>
    %166 = vector.shape_cast %165 : vector<8xf32> to vector<8x1xf32>
    %167 = tpu.reciprocal %166 {approx = true} : vector<8x1xf32> -> vector<8x1xf32>
    %168 = vector.broadcast %167 : vector<8x1xf32> to vector<8x8xf32>
    %169 = arith.mulf %164, %168 : vector<8x8xf32>
    %170 = vector.extract_strided_slice %135 {offsets = [0, 8], sizes = [8, 8], strides = [1, 1]} : vector<8x32xf32> to vector<8x8xf32>
    %cst_76 = arith.constant dense<0.000000e+00> : vector<8x8xf32>
    %171 = tpu.matmul %169, %170, %cst_76 {dimension_numbers = #tpu.dot_dimension_numbers<[1], [0], [0], [1], [0, 0, 1, 1], [], []>} : vector<8x8xf32>, vector<8x8xf32>, vector<8x8xf32> -> vector<8x8xf32>
    %172 = vector.extract_strided_slice %137 {offsets = [8, 0], sizes = [8, 32], strides = [1, 1]} : vector<32x32xf32> to vector<8x32xf32>
    %cst_77 = arith.constant dense<0.000000e+00> : vector<8x32xf32>
    %173 = tpu.matmul %171, %172, %cst_77 {dimension_numbers = #tpu.dot_dimension_numbers<[1], [0], [0], [1], [0, 0, 1, 1], [], []>} : vector<8x8xf32>, vector<8x32xf32>, vector<8x32xf32> -> vector<8x32xf32>
    %174 = arith.addf %156, %173 : vector<8x32xf32>
    %175 = vector.extract_strided_slice %126 {offsets = [0, 16], sizes = [8, 8], strides = [1, 1]} : vector<8x32xf32> to vector<8x8xf32>
    %176 = vector.extract_strided_slice %134 {offsets = [0, 16], sizes = [8, 8], strides = [1, 1]} : vector<8x32xf32> to vector<8x8xf32>
    %cst_78 = arith.constant dense<0.000000e+00> : vector<8x8xf32>
    %177 = tpu.matmul %175, %176, %cst_78 {dimension_numbers = #tpu.dot_dimension_numbers<[1], [1], [0], [0], [0, 0, 1, 0], [], []>} : vector<8x8xf32>, vector<8x8xf32>, vector<8x8xf32> -> vector<8x8xf32>
    %cst_79 = arith.constant dense<0xFF800000> : vector<8xf32>
    %178 = vector.multi_reduction <maximumf>, %177, %cst_79 [1] : vector<8x8xf32> to vector<8xf32>
    %179 = vector.shape_cast %178 : vector<8xf32> to vector<8x1xf32>
    %180 = vector.broadcast %179 : vector<8x1xf32> to vector<8x8xf32>
    %181 = arith.subf %177, %180 : vector<8x8xf32>
    %182 = math.exp %181 : vector<8x8xf32>
    %cst_80 = arith.constant dense<0.000000e+00> : vector<8xf32>
    %183 = vector.multi_reduction <add>, %182, %cst_80 [1] : vector<8x8xf32> to vector<8xf32>
    %184 = vector.shape_cast %183 : vector<8xf32> to vector<8x1xf32>
    %185 = tpu.reciprocal %184 {approx = true} : vector<8x1xf32> -> vector<8x1xf32>
    %186 = vector.broadcast %185 : vector<8x1xf32> to vector<8x8xf32>
    %187 = arith.mulf %182, %186 : vector<8x8xf32>
    %188 = vector.extract_strided_slice %135 {offsets = [0, 16], sizes = [8, 8], strides = [1, 1]} : vector<8x32xf32> to vector<8x8xf32>
    %cst_81 = arith.constant dense<0.000000e+00> : vector<8x8xf32>
    %189 = tpu.matmul %187, %188, %cst_81 {dimension_numbers = #tpu.dot_dimension_numbers<[1], [0], [0], [1], [0, 0, 1, 1], [], []>} : vector<8x8xf32>, vector<8x8xf32>, vector<8x8xf32> -> vector<8x8xf32>
    %190 = vector.extract_strided_slice %137 {offsets = [16, 0], sizes = [8, 32], strides = [1, 1]} : vector<32x32xf32> to vector<8x32xf32>
    %cst_82 = arith.constant dense<0.000000e+00> : vector<8x32xf32>
    %191 = tpu.matmul %189, %190, %cst_82 {dimension_numbers = #tpu.dot_dimension_numbers<[1], [0], [0], [1], [0, 0, 1, 1], [], []>} : vector<8x8xf32>, vector<8x32xf32>, vector<8x32xf32> -> vector<8x32xf32>
    %192 = arith.addf %174, %191 : vector<8x32xf32>
    %193 = vector.extract_strided_slice %126 {offsets = [0, 24], sizes = [8, 8], strides = [1, 1]} : vector<8x32xf32> to vector<8x8xf32>
    %194 = vector.extract_strided_slice %134 {offsets = [0, 24], sizes = [8, 8], strides = [1, 1]} : vector<8x32xf32> to vector<8x8xf32>
    %cst_83 = arith.constant dense<0.000000e+00> : vector<8x8xf32>
    %195 = tpu.matmul %193, %194, %cst_83 {dimension_numbers = #tpu.dot_dimension_numbers<[1], [1], [0], [0], [0, 0, 1, 0], [], []>} : vector<8x8xf32>, vector<8x8xf32>, vector<8x8xf32> -> vector<8x8xf32>
    %cst_84 = arith.constant dense<0xFF800000> : vector<8xf32>
    %196 = vector.multi_reduction <maximumf>, %195, %cst_84 [1] : vector<8x8xf32> to vector<8xf32>
    %197 = vector.shape_cast %196 : vector<8xf32> to vector<8x1xf32>
    %198 = vector.broadcast %197 : vector<8x1xf32> to vector<8x8xf32>
    %199 = arith.subf %195, %198 : vector<8x8xf32>
    %200 = math.exp %199 : vector<8x8xf32>
    %cst_85 = arith.constant dense<0.000000e+00> : vector<8xf32>
    %201 = vector.multi_reduction <add>, %200, %cst_85 [1] : vector<8x8xf32> to vector<8xf32>
    %202 = vector.shape_cast %201 : vector<8xf32> to vector<8x1xf32>
    %203 = tpu.reciprocal %202 {approx = true} : vector<8x1xf32> -> vector<8x1xf32>
    %204 = vector.broadcast %203 : vector<8x1xf32> to vector<8x8xf32>
    %205 = arith.mulf %200, %204 : vector<8x8xf32>
    %206 = vector.extract_strided_slice %135 {offsets = [0, 24], sizes = [8, 8], strides = [1, 1]} : vector<8x32xf32> to vector<8x8xf32>
    %cst_86 = arith.constant dense<0.000000e+00> : vector<8x8xf32>
    %207 = tpu.matmul %205, %206, %cst_86 {dimension_numbers = #tpu.dot_dimension_numbers<[1], [0], [0], [1], [0, 0, 1, 1], [], []>} : vector<8x8xf32>, vector<8x8xf32>, vector<8x8xf32> -> vector<8x8xf32>
    %208 = vector.extract_strided_slice %137 {offsets = [24, 0], sizes = [8, 32], strides = [1, 1]} : vector<32x32xf32> to vector<8x32xf32>
    %cst_87 = arith.constant dense<0.000000e+00> : vector<8x32xf32>
    %209 = tpu.matmul %207, %208, %cst_87 {dimension_numbers = #tpu.dot_dimension_numbers<[1], [0], [0], [1], [0, 0, 1, 1], [], []>} : vector<8x8xf32>, vector<8x32xf32>, vector<8x32xf32> -> vector<8x32xf32>
    %210 = arith.addf %192, %209 : vector<8x32xf32>
    %211 = vector.broadcast %139 : vector<1x32xf32> to vector<8x32xf32>
    %212 = arith.addf %210, %211 : vector<8x32xf32>
    %213 = arith.addf %119, %212 : vector<8x32xf32>
    %cst_88 = arith.constant dense<0.000000e+00> : vector<8xf32>
    %214 = vector.multi_reduction <add>, %213, %cst_88 [1] : vector<8x32xf32> to vector<8xf32>
    %215 = vector.shape_cast %214 : vector<8xf32> to vector<8x1xf32>
    %cst_89 = arith.constant 3.200000e+01 : f32
    %216 = vector.broadcast %cst_89 : f32 to vector<8x1xf32>
    %217 = arith.divf %215, %216 : vector<8x1xf32>
    %218 = vector.broadcast %217 : vector<8x1xf32> to vector<8x32xf32>
    %219 = arith.subf %213, %218 : vector<8x32xf32>
    %220 = arith.mulf %219, %219 : vector<8x32xf32>
    %cst_90 = arith.constant dense<0.000000e+00> : vector<8xf32>
    %221 = vector.multi_reduction <add>, %220, %cst_90 [1] : vector<8x32xf32> to vector<8xf32>
    %222 = vector.shape_cast %221 : vector<8xf32> to vector<8x1xf32>
    %cst_91 = arith.constant 3.200000e+01 : f32
    %223 = vector.broadcast %cst_91 : f32 to vector<8x1xf32>
    %224 = arith.divf %222, %223 : vector<8x1xf32>
    %225 = vector.broadcast %217 : vector<8x1xf32> to vector<8x32xf32>
    %226 = arith.subf %213, %225 : vector<8x32xf32>
    %cst_92 = arith.constant 9.99999974E-6 : f32
    %227 = vector.broadcast %cst_92 : f32 to vector<8x1xf32>
    %228 = arith.addf %224, %227 : vector<8x1xf32>
    %229 = math.rsqrt %228 : vector<8x1xf32>
    %230 = vector.broadcast %229 : vector<8x1xf32> to vector<8x32xf32>
    %231 = arith.mulf %226, %230 : vector<8x32xf32>
    %c0_93 = arith.constant 0 : index
    %c0_94 = arith.constant 0 : index
    %c0_95 = arith.constant 0 : index
    %232 = vector.load %arg16[%c0_93, %c0_94, %c0_95] : memref<1x1x32xf32, #tpu.memory_space<vmem>>, vector<1x1x32xf32>
    %233 = vector.shape_cast %232 : vector<1x1x32xf32> to vector<1x32xf32>
    %234 = vector.broadcast %233 : vector<1x32xf32> to vector<8x32xf32>
    %235 = arith.mulf %231, %234 : vector<8x32xf32>
    %c0_96 = arith.constant 0 : index
    %c0_97 = arith.constant 0 : index
    %c0_98 = arith.constant 0 : index
    %236 = vector.load %arg17[%c0_96, %c0_97, %c0_98] : memref<1x1x32xf32, #tpu.memory_space<vmem>>, vector<1x1x32xf32>
    %237 = vector.shape_cast %236 : vector<1x1x32xf32> to vector<1x32xf32>
    %238 = vector.broadcast %237 : vector<1x32xf32> to vector<8x32xf32>
    %239 = arith.addf %235, %238 : vector<8x32xf32>
    %c0_99 = arith.constant 0 : index
    %c0_100 = arith.constant 0 : index
    %c0_101 = arith.constant 0 : index
    %240 = vector.load %arg18[%c0_99, %c0_100, %c0_101] : memref<1x32x64xf32, #tpu.memory_space<vmem>>, vector<1x32x64xf32>
    %241 = vector.shape_cast %240 : vector<1x32x64xf32> to vector<32x64xf32>
    %cst_102 = arith.constant dense<0.000000e+00> : vector<8x64xf32>
    %242 = tpu.matmul %239, %241, %cst_102 {dimension_numbers = #tpu.dot_dimension_numbers<[1], [0], [0], [1], [0, 0, 1, 1], [], []>} : vector<8x32xf32>, vector<32x64xf32>, vector<8x64xf32> -> vector<8x64xf32>
    %c0_103 = arith.constant 0 : index
    %c0_104 = arith.constant 0 : index
    %c0_105 = arith.constant 0 : index
    %243 = vector.load %arg19[%c0_103, %c0_104, %c0_105] : memref<1x1x64xf32, #tpu.memory_space<vmem>>, vector<1x1x64xf32>
    %244 = vector.shape_cast %243 : vector<1x1x64xf32> to vector<1x64xf32>
    %245 = vector.broadcast %244 : vector<1x64xf32> to vector<8x64xf32>
    %246 = arith.addf %242, %245 : vector<8x64xf32>
    %cst_106 = arith.constant 0.000000e+00 : f32
    %247 = vector.broadcast %cst_106 : f32 to vector<8x64xf32>
    %248 = arith.maximumf %246, %247 : vector<8x64xf32>
    %c0_107 = arith.constant 0 : index
    %c0_108 = arith.constant 0 : index
    %c0_109 = arith.constant 0 : index
    %249 = vector.load %arg20[%c0_107, %c0_108, %c0_109] : memref<1x64x32xf32, #tpu.memory_space<vmem>>, vector<1x64x32xf32>
    %250 = vector.shape_cast %249 : vector<1x64x32xf32> to vector<64x32xf32>
    %cst_110 = arith.constant dense<0.000000e+00> : vector<8x32xf32>
    %251 = tpu.matmul %248, %250, %cst_110 {dimension_numbers = #tpu.dot_dimension_numbers<[1], [0], [0], [1], [0, 0, 1, 1], [], []>} : vector<8x64xf32>, vector<64x32xf32>, vector<8x32xf32> -> vector<8x32xf32>
    %c0_111 = arith.constant 0 : index
    %c0_112 = arith.constant 0 : index
    %c0_113 = arith.constant 0 : index
    %252 = vector.load %arg21[%c0_111, %c0_112, %c0_113] : memref<1x1x32xf32, #tpu.memory_space<vmem>>, vector<1x1x32xf32>
    %253 = vector.shape_cast %252 : vector<1x1x32xf32> to vector<1x32xf32>
    %254 = vector.broadcast %253 : vector<1x32xf32> to vector<8x32xf32>
    %255 = arith.addf %251, %254 : vector<8x32xf32>
    %256 = arith.addf %239, %255 : vector<8x32xf32>
    %cst_114 = arith.constant dense<0.000000e+00> : vector<8xf32>
    %257 = vector.multi_reduction <add>, %256, %cst_114 [1] : vector<8x32xf32> to vector<8xf32>
    %258 = vector.shape_cast %257 : vector<8xf32> to vector<8x1xf32>
    %cst_115 = arith.constant 3.200000e+01 : f32
    %259 = vector.broadcast %cst_115 : f32 to vector<8x1xf32>
    %260 = arith.divf %258, %259 : vector<8x1xf32>
    %261 = vector.broadcast %260 : vector<8x1xf32> to vector<8x32xf32>
    %262 = arith.subf %256, %261 : vector<8x32xf32>
    %263 = arith.mulf %262, %262 : vector<8x32xf32>
    %cst_116 = arith.constant dense<0.000000e+00> : vector<8xf32>
    %264 = vector.multi_reduction <add>, %263, %cst_116 [1] : vector<8x32xf32> to vector<8xf32>
    %265 = vector.shape_cast %264 : vector<8xf32> to vector<8x1xf32>
    %cst_117 = arith.constant 3.200000e+01 : f32
    %266 = vector.broadcast %cst_117 : f32 to vector<8x1xf32>
    %267 = arith.divf %265, %266 : vector<8x1xf32>
    %268 = vector.broadcast %260 : vector<8x1xf32> to vector<8x32xf32>
    %269 = arith.subf %256, %268 : vector<8x32xf32>
    %cst_118 = arith.constant 9.99999974E-6 : f32
    %270 = vector.broadcast %cst_118 : f32 to vector<8x1xf32>
    %271 = arith.addf %267, %270 : vector<8x1xf32>
    %272 = math.rsqrt %271 : vector<8x1xf32>
    %273 = vector.broadcast %272 : vector<8x1xf32> to vector<8x32xf32>
    %274 = arith.mulf %269, %273 : vector<8x32xf32>
    %c0_119 = arith.constant 0 : index
    %c0_120 = arith.constant 0 : index
    %c0_121 = arith.constant 0 : index
    %275 = vector.load %arg22[%c0_119, %c0_120, %c0_121] : memref<1x1x32xf32, #tpu.memory_space<vmem>>, vector<1x1x32xf32>
    %276 = vector.shape_cast %275 : vector<1x1x32xf32> to vector<1x32xf32>
    %277 = vector.broadcast %276 : vector<1x32xf32> to vector<8x32xf32>
    %278 = arith.mulf %274, %277 : vector<8x32xf32>
    %c0_122 = arith.constant 0 : index
    %c0_123 = arith.constant 0 : index
    %c0_124 = arith.constant 0 : index
    %279 = vector.load %arg23[%c0_122, %c0_123, %c0_124] : memref<1x1x32xf32, #tpu.memory_space<vmem>>, vector<1x1x32xf32>
    %280 = vector.shape_cast %279 : vector<1x1x32xf32> to vector<1x32xf32>
    %281 = vector.broadcast %280 : vector<1x32xf32> to vector<8x32xf32>
    %282 = arith.addf %278, %281 : vector<8x32xf32>
    %c0_125 = arith.constant 0 : index
    %c0_126 = arith.constant 0 : index
    %283 = vector.load %arg27[%c0_125, %c0_126] : memref<8x32xf32, #tpu.memory_space<vmem>>, vector<8x32xf32>
    tpu.vector_store %arg27[%c0_125, %c0_126], %282 {strides = array<i32>} : memref<8x32xf32, #tpu.memory_space<vmem>>, vector<8x32xf32>,
    %c1_i32 = arith.constant 1 : i32
    %284 = arith.cmpi eq, %arg1, %c1_i32 : i32
    %285 = arith.extui %284 : i1 to i32
    %c0_i32_127 = arith.constant 0 : i32
    %286 = arith.cmpi ne, %285, %c0_i32_127 : i32
    scf.if %286 {
      %cst_128 = arith.constant dense<0.000000e+00> : vector<8xf32>
      %287 = vector.multi_reduction <add>, %282, %cst_128 [1] : vector<8x32xf32> to vector<8xf32>
      %288 = vector.shape_cast %287 : vector<8xf32> to vector<8x1xf32>
      %cst_129 = arith.constant 3.200000e+01 : f32
      %289 = vector.broadcast %cst_129 : f32 to vector<8x1xf32>
      %290 = arith.divf %288, %289 : vector<8x1xf32>
      %291 = vector.broadcast %290 : vector<8x1xf32> to vector<8x32xf32>
      %292 = arith.subf %282, %291 : vector<8x32xf32>
      %293 = arith.mulf %292, %292 : vector<8x32xf32>
      %cst_130 = arith.constant dense<0.000000e+00> : vector<8xf32>
      %294 = vector.multi_reduction <add>, %293, %cst_130 [1] : vector<8x32xf32> to vector<8xf32>
      %295 = vector.shape_cast %294 : vector<8xf32> to vector<8x1xf32>
      %cst_131 = arith.constant 3.200000e+01 : f32
      %296 = vector.broadcast %cst_131 : f32 to vector<8x1xf32>
      %297 = arith.divf %295, %296 : vector<8x1xf32>
      %298 = vector.broadcast %290 : vector<8x1xf32> to vector<8x32xf32>
      %299 = arith.subf %282, %298 : vector<8x32xf32>
      %cst_132 = arith.constant 9.99999974E-6 : f32
      %300 = vector.broadcast %cst_132 : f32 to vector<8x1xf32>
      %301 = arith.addf %297, %300 : vector<8x1xf32>
      %302 = math.rsqrt %301 : vector<8x1xf32>
      %303 = vector.broadcast %302 : vector<8x1xf32> to vector<8x32xf32>
      %304 = arith.mulf %299, %303 : vector<8x32xf32>
      %c0_133 = arith.constant 0 : index
      %c0_134 = arith.constant 0 : index
      %305 = vector.load %arg24[%c0_133, %c0_134] : memref<1x32xf32, #tpu.memory_space<vmem>>, vector<1x32xf32>
      %306 = vector.broadcast %305 : vector<1x32xf32> to vector<8x32xf32>
      %307 = arith.mulf %304, %306 : vector<8x32xf32>
      %c0_135 = arith.constant 0 : index
      %c0_136 = arith.constant 0 : index
      %308 = vector.load %arg25[%c0_135, %c0_136] : memref<1x32xf32, #tpu.memory_space<vmem>>, vector<1x32xf32>
      %309 = vector.broadcast %308 : vector<1x32xf32> to vector<8x32xf32>
      %310 = arith.addf %307, %309 : vector<8x32xf32>
      %c0_137 = arith.constant 0 : index
      %c0_138 = arith.constant 0 : index
      %c0_139 = arith.constant 0 : index
      %311 = vector.load %arg26[%c0_137, %c0_138, %c0_139] : memref<1x8x32xf32, #tpu.memory_space<vmem>>, vector<1x8x32xf32>
      %312 = vector.shape_cast %311 : vector<1x8x32xf32> to vector<8x32xf32>
      %313 = vector.shape_cast %310 : vector<8x32xf32> to vector<1x8x32xf32>
      tpu.vector_store %arg26[%c0_137, %c0_138, %c0_139], %313 {strides = array<i32>} : memref<1x8x32xf32, #tpu.memory_space<vmem>>, vector<1x8x32xf32>,
    } else {
    }
    return
  }
  func.func @transform_0(%arg0: i32, %arg1: i32) -> (i32, i32, i32) {
    %c0_i32 = arith.constant 0 : i32
    %c0_i32_0 = arith.constant 0 : i32
    %c0_i32_1 = arith.constant 0 : i32
    return %arg0, %c0_i32, %c0_i32_0 : i32, i32, i32
  }
  func.func @transform_1(%arg0: i32, %arg1: i32) -> (i32, i32, i32) {
    %c0_i32 = arith.constant 0 : i32
    %c0_i32_0 = arith.constant 0 : i32
    %c0_i32_1 = arith.constant 0 : i32
    return %arg0, %c0_i32, %c0_i32_0 : i32, i32, i32
  }
  func.func @transform_2(%arg0: i32, %arg1: i32) -> (i32, i32, i32) {
    %c0_i32 = arith.constant 0 : i32
    %c0_i32_0 = arith.constant 0 : i32
    %c0_i32_1 = arith.constant 0 : i32
    return %arg1, %c0_i32, %c0_i32_0 : i32, i32, i32
  }
  func.func @transform_3(%arg0: i32, %arg1: i32) -> (i32, i32, i32) {
    %c0_i32 = arith.constant 0 : i32
    %c0_i32_0 = arith.constant 0 : i32
    %c0_i32_1 = arith.constant 0 : i32
    return %arg1, %c0_i32, %c0_i32_0 : i32, i32, i32
  }
  func.func @transform_4(%arg0: i32, %arg1: i32) -> (i32, i32, i32) {
    %c0_i32 = arith.constant 0 : i32
    %c0_i32_0 = arith.constant 0 : i32
    %c0_i32_1 = arith.constant 0 : i32
    return %arg1, %c0_i32, %c0_i32_0 : i32, i32, i32
  }
  func.func @transform_5(%arg0: i32, %arg1: i32) -> (i32, i32, i32) {
    %c0_i32 = arith.constant 0 : i32
    %c0_i32_0 = arith.constant 0 : i32
    %c0_i32_1 = arith.constant 0 : i32
    return %arg1, %c0_i32, %c0_i32_0 : i32, i32, i32
  }
  func.func @transform_6(%arg0: i32, %arg1: i32) -> (i32, i32, i32) {
    %c0_i32 = arith.constant 0 : i32
    %c0_i32_0 = arith.constant 0 : i32
    %c0_i32_1 = arith.constant 0 : i32
    return %arg1, %c0_i32, %c0_i32_0 : i32, i32, i32
  }
  func.func @transform_7(%arg0: i32, %arg1: i32) -> (i32, i32, i32) {
    %c0_i32 = arith.constant 0 : i32
    %c0_i32_0 = arith.constant 0 : i32
    %c0_i32_1 = arith.constant 0 : i32
    return %arg1, %c0_i32, %c0_i32_0 : i32, i32, i32
  }
  func.func @transform_8(%arg0: i32, %arg1: i32) -> (i32, i32, i32) {
    %c0_i32 = arith.constant 0 : i32
    %c0_i32_0 = arith.constant 0 : i32
    %c0_i32_1 = arith.constant 0 : i32
    return %arg1, %c0_i32, %c0_i32_0 : i32, i32, i32
  }
  func.func @transform_9(%arg0: i32, %arg1: i32) -> (i32, i32, i32) {
    %c0_i32 = arith.constant 0 : i32
    %c0_i32_0 = arith.constant 0 : i32
    %c0_i32_1 = arith.constant 0 : i32
    return %arg1, %c0_i32, %c0_i32_0 : i32, i32, i32
  }
  func.func @transform_10(%arg0: i32, %arg1: i32) -> (i32, i32, i32) {
    %c0_i32 = arith.constant 0 : i32
    %c0_i32_0 = arith.constant 0 : i32
    %c0_i32_1 = arith.constant 0 : i32
    return %arg1, %c0_i32, %c0_i32_0 : i32, i32, i32
  }
  func.func @transform_11(%arg0: i32, %arg1: i32) -> (i32, i32, i32) {
    %c0_i32 = arith.constant 0 : i32
    %c0_i32_0 = arith.constant 0 : i32
    %c0_i32_1 = arith.constant 0 : i32
    return %arg1, %c0_i32, %c0_i32_0 : i32, i32, i32
  }
  func.func @transform_12(%arg0: i32, %arg1: i32) -> (i32, i32, i32) {
    %c0_i32 = arith.constant 0 : i32
    %c0_i32_0 = arith.constant 0 : i32
    %c0_i32_1 = arith.constant 0 : i32
    return %arg1, %c0_i32, %c0_i32_0 : i32, i32, i32
  }
  func.func @transform_13(%arg0: i32, %arg1: i32) -> (i32, i32, i32) {
    %c0_i32 = arith.constant 0 : i32
    %c0_i32_0 = arith.constant 0 : i32
    %c0_i32_1 = arith.constant 0 : i32
    return %arg1, %c0_i32, %c0_i32_0 : i32, i32, i32
  }
  func.func @transform_14(%arg0: i32, %arg1: i32) -> (i32, i32, i32) {
    %c0_i32 = arith.constant 0 : i32
    %c0_i32_0 = arith.constant 0 : i32
    %c0_i32_1 = arith.constant 0 : i32
    return %arg1, %c0_i32, %c0_i32_0 : i32, i32, i32
  }
  func.func @transform_15(%arg0: i32, %arg1: i32) -> (i32, i32, i32) {
    %c0_i32 = arith.constant 0 : i32
    %c0_i32_0 = arith.constant 0 : i32
    %c0_i32_1 = arith.constant 0 : i32
    return %arg1, %c0_i32, %c0_i32_0 : i32, i32, i32
  }
  func.func @transform_16(%arg0: i32, %arg1: i32) -> (i32, i32, i32) {
    %c0_i32 = arith.constant 0 : i32
    %c0_i32_0 = arith.constant 0 : i32
    %c0_i32_1 = arith.constant 0 : i32
    return %arg1, %c0_i32, %c0_i32_0 : i32, i32, i32
  }
  func.func @transform_17(%arg0: i32, %arg1: i32) -> (i32, i32, i32) {
    %c0_i32 = arith.constant 0 : i32
    %c0_i32_0 = arith.constant 0 : i32
    %c0_i32_1 = arith.constant 0 : i32
    return %arg1, %c0_i32, %c0_i32_0 : i32, i32, i32
  }
  func.func @transform_18(%arg0: i32, %arg1: i32) -> (i32, i32, i32) {
    %c0_i32 = arith.constant 0 : i32
    %c0_i32_0 = arith.constant 0 : i32
    %c0_i32_1 = arith.constant 0 : i32
    return %arg1, %c0_i32, %c0_i32_0 : i32, i32, i32
  }
  func.func @transform_19(%arg0: i32, %arg1: i32) -> (i32, i32, i32) {
    %c0_i32 = arith.constant 0 : i32
    %c0_i32_0 = arith.constant 0 : i32
    %c0_i32_1 = arith.constant 0 : i32
    return %arg1, %c0_i32, %c0_i32_0 : i32, i32, i32
  }
  func.func @transform_20(%arg0: i32, %arg1: i32) -> (i32, i32, i32) {
    %c0_i32 = arith.constant 0 : i32
    %c0_i32_0 = arith.constant 0 : i32
    %c0_i32_1 = arith.constant 0 : i32
    return %arg1, %c0_i32, %c0_i32_0 : i32, i32, i32
  }
  func.func @transform_21(%arg0: i32, %arg1: i32) -> (i32, i32, i32) {
    %c0_i32 = arith.constant 0 : i32
    %c0_i32_0 = arith.constant 0 : i32
    %c0_i32_1 = arith.constant 0 : i32
    return %arg1, %c0_i32, %c0_i32_0 : i32, i32, i32
  }
  func.func @transform_22(%arg0: i32, %arg1: i32) -> (i32, i32) {
    %c0_i32 = arith.constant 0 : i32
    %c0_i32_0 = arith.constant 0 : i32
    %c0_i32_1 = arith.constant 0 : i32
    return %c0_i32, %c0_i32_0 : i32, i32
  }
  func.func @transform_23(%arg0: i32, %arg1: i32) -> (i32, i32) {
    %c0_i32 = arith.constant 0 : i32
    %c0_i32_0 = arith.constant 0 : i32
    %c0_i32_1 = arith.constant 0 : i32
    return %c0_i32, %c0_i32_0 : i32, i32
  }
  func.func @transform_24(%arg0: i32, %arg1: i32) -> (i32, i32, i32) {
    %c0_i32 = arith.constant 0 : i32
    %c0_i32_0 = arith.constant 0 : i32
    %c0_i32_1 = arith.constant 0 : i32
    return %arg0, %c0_i32, %c0_i32_0 : i32, i32, i32
  }
}

</mosaic_0001>

<llo_original>
// kernel: forward.1
$region0: #{forward.1}
  #allocation0 [shape = 'u32[]', space=smem, size = 0x4, offset = 0x4, fixed_abs, tag = 'smem constant byte address 0x4 - core index']
  #allocation1 [shape = 'u32[72,128]{1,0:T(1,128)}', space=vmem, size = 0x9000, scoped, tag = 'internal scratch']
  #allocation2 [shape = 'f32[8,32]{1,0:T(8,128)}', space=vmem, size = 0x1000, scoped, tag = 'scratch operand']
  %s0 = inlined_call_operand.vmem [shape: f32[2,8,32], index: 0, kind: input, shape index: {}]
  %s1 = inlined_call_operand.vmem [shape: f32[2,8,32], index: 1, kind: input, shape index: {}]
  %s2 = inlined_call_operand.vmem [shape: f32[2,32,96], index: 2, kind: input, shape index: {}]
  %s3 = inlined_call_operand.vmem [shape: f32[2,1,96], index: 3, kind: input, shape index: {}]
  %s4 = inlined_call_operand.vmem [shape: f32[2,32,32], index: 4, kind: input, shape index: {}]
  %s5 = inlined_call_operand.vmem [shape: f32[2,1,32], index: 5, kind: input, shape index: {}]
  %s6 = inlined_call_operand.vmem [shape: f32[2,1,32], index: 6, kind: input, shape index: {}]
  %s7 = inlined_call_operand.vmem [shape: f32[2,1,32], index: 7, kind: input, shape index: {}]
  %s8 = inlined_call_operand.vmem [shape: f32[2,32,32], index: 8, kind: input, shape index: {}]
  %s9 = inlined_call_operand.vmem [shape: f32[2,1,32], index: 9, kind: input, shape index: {}]
  %s10 = inlined_call_operand.hbm [shape: f32[2,32,64], index: 10, kind: input, shape index: {}]
  %s11 = inlined_call_operand.hbm [shape: f32[2,1,64], index: 11, kind: input, shape index: {}]
  %s12 = inlined_call_operand.hbm [shape: f32[2,32,32], index: 12, kind: input, shape index: {}]
  %s13 = inlined_call_operand.hbm [shape: f32[2,1,32], index: 13, kind: input, shape index: {}]
  %s14 = inlined_call_operand.vmem [shape: f32[2,1,32], index: 14, kind: input, shape index: {}]
  %s15 = inlined_call_operand.vmem [shape: f32[2,1,32], index: 15, kind: input, shape index: {}]
  %s16 = inlined_call_operand.hbm [shape: f32[2,32,64], index: 16, kind: input, shape index: {}]
  %s17 = inlined_call_operand.hbm [shape: f32[2,1,64], index: 17, kind: input, shape index: {}]
  %s18 = inlined_call_operand.vmem [shape: f32[2,64,32], index: 18, kind: input, shape index: {}]
  %s19 = inlined_call_operand.hbm [shape: f32[2,1,32], index: 19, kind: input, shape index: {}]
  %s20 = inlined_call_operand.vmem [shape: f32[2,1,32], index: 20, kind: input, shape index: {}]
  %s21 = inlined_call_operand.hbm [shape: f32[2,1,32], index: 21, kind: input, shape index: {}]
  %s22 = inlined_call_operand.hbm [shape: f32[1,32], index: 22, kind: input, shape index: {}]
  %s23 = inlined_call_operand.hbm [shape: f32[1,32], index: 23, kind: input, shape index: {}]
  %s24 = inlined_call_operand.vmem [shape: f32[2,8,32], index: 24, kind: output, shape index: {}]
  %s25 = sld [smem:[#allocation0]]
  $region177: #{forward.1} parent=0
    _
  %s27 = ssub.s32 1, %s25
  %s28 = scalar_select 0, %s27, %s25
  $region1: #{forward.1} parent=0
    #allocation3 [shape = 'u8[32768]{0}', space=vmem, size = 0x8000, scoped, tag = 'input window, operand 10']
    #allocation4 [shape = 's32[2]{0}', space=sflag, size = 0x8, scoped, tag = 'scoped memory for forward.1']
    #allocation5 [shape = 'u8[1024]{0}', space=vmem, size = 0x400, scoped, tag = 'input window, operand 11']
    #allocation6 [shape = 's32[2]{0}', space=sflag, size = 0x8, scoped, tag = 'scoped memory for forward.1']
    #allocation7 [shape = 'u8[32768]{0}', space=vmem, size = 0x8000, scoped, tag = 'input window, operand 12']
    #allocation8 [shape = 'u8[1024]{0}', space=vmem, size = 0x400, scoped, tag = 'input window, operand 13']
    #allocation9 [shape = 's32[2]{0}', space=sflag, size = 0x8, scoped, tag = 'scoped memory for forward.1']
    #allocation10 [shape = 'u8[32768]{0}', space=vmem, size = 0x8000, scoped, tag = 'input window, operand 16']
    #allocation11 [shape = 'u8[1024]{0}', space=vmem, size = 0x400, scoped, tag = 'input window, operand 17']
    #allocation12 [shape = 's32[2]{0}', space=sflag, size = 0x8, scoped, tag = 'scoped memory for forward.1']
    #allocation13 [shape = 'u8[1024]{0}', space=vmem, size = 0x400, scoped, tag = 'input window, operand 19']
    #allocation14 [shape = 'u8[1024]{0}', space=vmem, size = 0x400, scoped, tag = 'input window, operand 21']
    #allocation15 [shape = 's32[2]{0}', space=sflag, size = 0x8, scoped, tag = 'scoped memory for forward.1']
    #allocation16 [shape = 'u8[512]{0}', space=vmem, size = 0x400, scoped, tag = 'input window, operand 22, single buffered']
    #allocation17 [shape = 'u8[512]{0}', space=vmem, size = 0x400, scoped, tag = 'input window, operand 23, single buffered']
    #allocation18 [shape = 's32[1]{0}', space=sflag, size = 0x4, scoped, tag = 'scoped memory for forward.1']
    %29 = vsyncpa [#allocation4], 0
    %s30 = scalar_lea.sflag [#allocation4], 1
    %31 = vsyncpa %s30, 0
    %32 = vsyncpa [#allocation6], 0
    %s33 = scalar_lea.sflag [#allocation6], 1
    %34 = vsyncpa %s33, 0
    %35 = vsyncpa [#allocation9], 0
    %s36 = scalar_lea.sflag [#allocation9], 1
    %37 = vsyncpa %s36, 0
    %38 = vsyncpa [#allocation12], 0
    %s39 = scalar_lea.sflag [#allocation12], 1
    %40 = vsyncpa %s39, 0
    %41 = vsyncpa [#allocation15], 0
    %s42 = scalar_lea.sflag [#allocation15], 1
    %43 = vsyncpa %s42, 0
    %44 = vsyncpa [#allocation18], 0
    loop: start=0, step=1, limit=6
    $region2: #{forward.1} parent=1 // loop_pre_header
      _
    $region3: #{forward.1} parent=1 // loop_header
      %s46 = sphi 0, %s50
      %p47 = scmp.ge.s32.totalorder %s46, 6
      %s53 = sphi 0, %s65
      %s54 = sphi 0, %s61
      %s55 = sphi 0, %s53
      %s56 = sphi 0, %s54
      %s57 = sphi 0, %s55
      %s58 = sphi 0, %s56
      %s68 = sphi 0, %s70
      %s71 = sphi 0, %s68
      %s72 = sphi 0, %s71
      %s88 = sphi 0, %s72
      %s94 = sphi 0, %s96
      %s97 = sphi 0, %s94
      %s98 = sphi 0, %s97
      %s114 = sphi 0, %s98
      %s120 = sphi 0, %s122
      %s123 = sphi 0, %s120
      %s124 = sphi 0, %s123
      %s140 = sphi 0, %s124
      %s146 = sphi 0, %s148
      %s149 = sphi 0, %s146
      %s150 = sphi 0, %s149
      %s166 = sphi 0, %s150
      %s172 = sphi 0, %s174
      %s175 = sphi 0, %s172
      %s176 = sphi 0, %s175
      %s192 = sphi 0, %s176
      %s198 = sphi 0, %s200
      %s201 = sphi 0, %s198
      %s202 = sphi 0, %s201
      %s218 = sphi 0, %s202
      %s224 = sphi 0, %s226
      %s227 = sphi 0, %s224
      %s228 = sphi 0, %s227
      %s244 = sphi 0, %s228
      %s250 = sphi 0, %s252
      %s253 = sphi 0, %s250
      %s254 = sphi 0, %s253
      %s270 = sphi 0, %s254
      %s276 = sphi 0, %s278
      %s279 = sphi 0, %s276
      %s280 = sphi 0, %s279
      %s296 = sphi 0, %s280
      %s302 = sphi 0, %s304
      %s305 = sphi 0, %s302
      %s306 = sphi 0, %s305
      %s322 = sphi 0, %s306
      %s328 = sphi 0, %s330
      %s331 = sphi 0, %s328
      %s332 = sphi 0, %s331
      %s348 = sphi 0, %s332
      %s354 = sphi 0, %s356
      %s357 = sphi 0, %s354
      %s358 = sphi 0, %s357
      %s374 = sphi 0, %s358
      %s380 = sphi 0, %s382
      %s383 = sphi 0, %s380
      %s384 = sphi 0, %s383
      %s400 = sphi 0, %s384
      %s406 = sphi 0, %s408
      %s409 = sphi 0, %s406
      %s410 = sphi 0, %s409
      %s426 = sphi 0, %s410
      %s432 = sphi 0, %s434
      %s435 = sphi 0, %s432
      %s436 = sphi 0, %s435
      %s452 = sphi 0, %s436
      %s458 = sphi 0, %s460
      %s461 = sphi 0, %s458
      %s462 = sphi 0, %s461
      %s478 = sphi 0, %s462
      %s484 = sphi 0, %s486
      %s487 = sphi 0, %s484
      %s488 = sphi 0, %s487
      %s504 = sphi 0, %s488
      %s510 = sphi 0, %s512
      %s513 = sphi 0, %s510
      %s514 = sphi 0, %s513
      %s530 = sphi 0, %s514
      %s536 = sphi 0, %s538
      %s539 = sphi 0, %s536
      %s540 = sphi 0, %s539
      %s556 = sphi 0, %s540
      %s562 = sphi 0, %s564
      %s565 = sphi 0, %s562
      %s566 = sphi 0, %s565
      %s582 = sphi 0, %s566
      %s588 = sphi 0, %s590
      %s591 = sphi 0, %s588
      %s592 = sphi 0, %s591
      %s608 = sphi 0, %s592
      %s614 = sphi 0, %s616
      %s617 = sphi 0, %s614
      %s618 = sphi 0, %s617
      %s634 = sphi 0, %s618
      %s638 = sphi 0, %s638
      %s640 = sphi 0, %s638
      %s641 = sphi 0, %s640
      %s655 = sphi 0, %s641
      %s659 = sphi 0, %s659
      %s661 = sphi 0, %s659
      %s662 = sphi 0, %s661
      %s676 = sphi 0, %s662
      %s682 = sphi 0, %s684
      %s685 = sphi 0, %s682
      %s686 = sphi 0, %s685
      %s702 = sphi 0, %s686
    $region4: #{forward.1} parent=1 // loop_header_branch
      %49 = sbr.rel (%p47) target = $region8
    $region5: #{forward.1} parent=1 // loop_body
      %s51 = ssub.s32 %s46, 1
      %s52 = ssub.s32 %s46, 2
      %s59 = sadd.s32 1, %s54
      %p60 = scmp.ge.s32.totalorder %s59, 2
      %s61 = scalar_select %p60, 0, %s59
      %s62 = sadd.s32 1, %s53
      %s63 = scalar_select %p60, %s62, %s53
      %p64 = scmp.ge.s32.totalorder %s63, 2
      %s65 = scalar_select %p64, 0, %s63
      %s66 = ssub.s32 %s53, %s65
      %p67 = scmp.eq.s32.totalorder %s66, 0
      %s69 = sadd.s32 %s68, 1
      %s70 = scalar_select %p67, %s68, %s69
      %p73 = pneg %p67
      %p74 = scmp.eq.s32.totalorder %s46, 3
      %p75 = por %p73, %p74
      %p76 = scmp.ne.s32.totalorder %s68, %s71
      %p77 = scmp.eq.s32.totalorder %s46, 0
      %p78 = por %p76, %p77
      %p79 = scmp.ne.s32.totalorder %s68, %s71
      %p80 = scmp.eq.s32.totalorder %s51, 3
      %p81 = por %p79, %p80
      %p82 = scmp.ne.s32.totalorder %s71, %s72
      %p83 = scmp.eq.s32.totalorder %s51, 0
      %p84 = por %p82, %p83
      %p85 = scmp.ne.s32.totalorder %s71, %s72
      %p86 = scmp.eq.s32.totalorder %s52, 3
      %p87 = por %p85, %p86
      %p89 = scmp.ne.s32.totalorder %s72, %s88
      %p90 = scmp.eq.s32.totalorder %s52, 0
      %p91 = por %p89, %p90
      %s92 = ssub.s32 %s53, %s65
      %p93 = scmp.eq.s32.totalorder %s92, 0
      %s95 = sadd.s32 %s94, 1
      %s96 = scalar_select %p93, %s94, %s95
      %p99 = pneg %p93
      %p100 = scmp.eq.s32.totalorder %s46, 3
      %p101 = por %p99, %p100
      %p102 = scmp.ne.s32.totalorder %s94, %s97
      %p103 = scmp.eq.s32.totalorder %s46, 0
      %p104 = por %p102, %p103
      %p105 = scmp.ne.s32.totalorder %s94, %s97
      %p106 = scmp.eq.s32.totalorder %s51, 3
      %p107 = por %p105, %p106
      %p108 = scmp.ne.s32.totalorder %s97, %s98
      %p109 = scmp.eq.s32.totalorder %s51, 0
      %p110 = por %p108, %p109
      %p111 = scmp.ne.s32.totalorder %s97, %s98
      %p112 = scmp.eq.s32.totalorder %s52, 3
      %p113 = por %p111, %p112
      %p115 = scmp.ne.s32.totalorder %s98, %s114
      %p116 = scmp.eq.s32.totalorder %s52, 0
      %p117 = por %p115, %p116
      %s118 = ssub.s32 %s54, %s61
      %p119 = scmp.eq.s32.totalorder %s118, 0
      %s121 = sadd.s32 %s120, 1
      %s122 = scalar_select %p119, %s120, %s121
      %p125 = pneg %p119
      %p126 = scmp.eq.s32.totalorder %s46, 3
      %p127 = por %p125, %p126
      %p128 = scmp.ne.s32.totalorder %s120, %s123
      %p129 = scmp.eq.s32.totalorder %s46, 0
      %p130 = por %p128, %p129
      %p131 = scmp.ne.s32.totalorder %s120, %s123
      %p132 = scmp.eq.s32.totalorder %s51, 3
      %p133 = por %p131, %p132
      %p134 = scmp.ne.s32.totalorder %s123, %s124
      %p135 = scmp.eq.s32.totalorder %s51, 0
      %p136 = por %p134, %p135
      %p137 = scmp.ne.s32.totalorder %s123, %s124
      %p138 = scmp.eq.s32.totalorder %s52, 3
      %p139 = por %p137, %p138
      %p141 = scmp.ne.s32.totalorder %s124, %s140
      %p142 = scmp.eq.s32.totalorder %s52, 0
      %p143 = por %p141, %p142
      %s144 = ssub.s32 %s54, %s61
      %p145 = scmp.eq.s32.totalorder %s144, 0
      %s147 = sadd.s32 %s146, 1
      %s148 = scalar_select %p145, %s146, %s147
      %p151 = pneg %p145
      %p152 = scmp.eq.s32.totalorder %s46, 3
      %p153 = por %p151, %p152
      %p154 = scmp.ne.s32.totalorder %s146, %s149
      %p155 = scmp.eq.s32.totalorder %s46, 0
      %p156 = por %p154, %p155
      %p157 = scmp.ne.s32.totalorder %s146, %s149
      %p158 = scmp.eq.s32.totalorder %s51, 3
      %p159 = por %p157, %p158
      %p160 = scmp.ne.s32.totalorder %s149, %s150
      %p161 = scmp.eq.s32.totalorder %s51, 0
      %p162 = por %p160, %p161
      %p163 = scmp.ne.s32.totalorder %s149, %s150
      %p164 = scmp.eq.s32.totalorder %s52, 3
      %p165 = por %p163, %p164
      %p167 = scmp.ne.s32.totalorder %s150, %s166
      %p168 = scmp.eq.s32.totalorder %s52, 0
      %p169 = por %p167, %p168
      %s170 = ssub.s32 %s54, %s61
      %p171 = scmp.eq.s32.totalorder %s170, 0
      %s173 = sadd.s32 %s172, 1
      %s174 = scalar_select %p171, %s172, %s173
      %p177 = pneg %p171
      %p178 = scmp.eq.s32.totalorder %s46, 3
      %p179 = por %p177, %p178
      %p180 = scmp.ne.s32.totalorder %s172, %s175
      %p181 = scmp.eq.s32.totalorder %s46, 0
      %p182 = por %p180, %p181
      %p183 = scmp.ne.s32.totalorder %s172, %s175
      %p184 = scmp.eq.s32.totalorder %s51, 3
      %p185 = por %p183, %p184
      %p186 = scmp.ne.s32.totalorder %s175, %s176
      %p187 = scmp.eq.s32.totalorder %s51, 0
      %p188 = por %p186, %p187
      %p189 = scmp.ne.s32.totalorder %s175, %s176
      %p190 = scmp.eq.s32.totalorder %s52, 3
      %p191 = por %p189, %p190
      %p193 = scmp.ne.s32.totalorder %s176, %s192
      %p194 = scmp.eq.s32.totalorder %s52, 0
      %p195 = por %p193, %p194
      %s196 = ssub.s32 %s54, %s61
      %p197 = scmp.eq.s32.totalorder %s196, 0
      %s199 = sadd.s32 %s198, 1
      %s200 = scalar_select %p197, %s198, %s199
      %p203 = pneg %p197
      %p204 = scmp.eq.s32.totalorder %s46, 3
      %p205 = por %p203, %p204
      %p206 = scmp.ne.s32.totalorder %s198, %s201
      %p207 = scmp.eq.s32.totalorder %s46, 0
      %p208 = por %p206, %p207
      %p209 = scmp.ne.s32.totalorder %s198, %s201
      %p210 = scmp.eq.s32.totalorder %s51, 3
      %p211 = por %p209, %p210
      %p212 = scmp.ne.s32.totalorder %s201, %s202
      %p213 = scmp.eq.s32.totalorder %s51, 0
      %p214 = por %p212, %p213
      %p215 = scmp.ne.s32.totalorder %s201, %s202
      %p216 = scmp.eq.s32.totalorder %s52, 3
      %p217 = por %p215, %p216
      %p219 = scmp.ne.s32.totalorder %s202, %s218
      %p220 = scmp.eq.s32.totalorder %s52, 0
      %p221 = por %p219, %p220
      %s222 = ssub.s32 %s54, %s61
      %p223 = scmp.eq.s32.totalorder %s222, 0
      %s225 = sadd.s32 %s224, 1
      %s226 = scalar_select %p223, %s224, %s225
      %p229 = pneg %p223
      %p230 = scmp.eq.s32.totalorder %s46, 3
      %p231 = por %p229, %p230
      %p232 = scmp.ne.s32.totalorder %s224, %s227
      %p233 = scmp.eq.s32.totalorder %s46, 0
      %p234 = por %p232, %p233
      %p235 = scmp.ne.s32.totalorder %s224, %s227
      %p236 = scmp.eq.s32.totalorder %s51, 3
      %p237 = por %p235, %p236
      %p238 = scmp.ne.s32.totalorder %s227, %s228
      %p239 = scmp.eq.s32.totalorder %s51, 0
      %p240 = por %p238, %p239
      %p241 = scmp.ne.s32.totalorder %s227, %s228
      %p242 = scmp.eq.s32.totalorder %s52, 3
      %p243 = por %p241, %p242
      %p245 = scmp.ne.s32.totalorder %s228, %s244
      %p246 = scmp.eq.s32.totalorder %s52, 0
      %p247 = por %p245, %p246
      %s248 = ssub.s32 %s54, %s61
      %p249 = scmp.eq.s32.totalorder %s248, 0
      %s251 = sadd.s32 %s250, 1
      %s252 = scalar_select %p249, %s250, %s251
      %p255 = pneg %p249
      %p256 = scmp.eq.s32.totalorder %s46, 3
      %p257 = por %p255, %p256
      %p258 = scmp.ne.s32.totalorder %s250, %s253
      %p259 = scmp.eq.s32.totalorder %s46, 0
      %p260 = por %p258, %p259
      %p261 = scmp.ne.s32.totalorder %s250, %s253
      %p262 = scmp.eq.s32.totalorder %s51, 3
      %p263 = por %p261, %p262
      %p264 = scmp.ne.s32.totalorder %s253, %s254
      %p265 = scmp.eq.s32.totalorder %s51, 0
      %p266 = por %p264, %p265
      %p267 = scmp.ne.s32.totalorder %s253, %s254
      %p268 = scmp.eq.s32.totalorder %s52, 3
      %p269 = por %p267, %p268
      %p271 = scmp.ne.s32.totalorder %s254, %s270
      %p272 = scmp.eq.s32.totalorder %s52, 0
      %p273 = por %p271, %p272
      %s274 = ssub.s32 %s54, %s61
      %p275 = scmp.eq.s32.totalorder %s274, 0
      %s277 = sadd.s32 %s276, 1
      %s278 = scalar_select %p275, %s276, %s277
      %p281 = pneg %p275
      %p282 = scmp.eq.s32.totalorder %s46, 3
      %p283 = por %p281, %p282
      %p284 = scmp.ne.s32.totalorder %s276, %s279
      %p285 = scmp.eq.s32.totalorder %s46, 0
      %p286 = por %p284, %p285
      %p287 = scmp.ne.s32.totalorder %s276, %s279
      %p288 = scmp.eq.s32.totalorder %s51, 3
      %p289 = por %p287, %p288
      %p290 = scmp.ne.s32.totalorder %s279, %s280
      %p291 = scmp.eq.s32.totalorder %s51, 0
      %p292 = por %p290, %p291
      %p293 = scmp.ne.s32.totalorder %s279, %s280
      %p294 = scmp.eq.s32.totalorder %s52, 3
      %p295 = por %p293, %p294
      %p297 = scmp.ne.s32.totalorder %s280, %s296
      %p298 = scmp.eq.s32.totalorder %s52, 0
      %p299 = por %p297, %p298
      %s300 = ssub.s32 %s54, %s61
      %p301 = scmp.eq.s32.totalorder %s300, 0
      %s303 = sadd.s32 %s302, 1
      %s304 = scalar_select %p301, %s302, %s303
      %p307 = pneg %p301
      %p308 = scmp.eq.s32.totalorder %s46, 3
      %p309 = por %p307, %p308
      %p310 = scmp.ne.s32.totalorder %s302, %s305
      %p311 = scmp.eq.s32.totalorder %s46, 0
      %p312 = por %p310, %p311
      %p313 = scmp.ne.s32.totalorder %s302, %s305
      %p314 = scmp.eq.s32.totalorder %s51, 3
      %p315 = por %p313, %p314
      %p316 = scmp.ne.s32.totalorder %s305, %s306
      %p317 = scmp.eq.s32.totalorder %s51, 0
      %p318 = por %p316, %p317
      %p319 = scmp.ne.s32.totalorder %s305, %s306
      %p320 = scmp.eq.s32.totalorder %s52, 3
      %p321 = por %p319, %p320
      %p323 = scmp.ne.s32.totalorder %s306, %s322
      %p324 = scmp.eq.s32.totalorder %s52, 0
      %p325 = por %p323, %p324
      %s326 = ssub.s32 %s54, %s61
      %p327 = scmp.eq.s32.totalorder %s326, 0
      %s329 = sadd.s32 %s328, 1
      %s330 = scalar_select %p327, %s328, %s329
      %p333 = pneg %p327
      %p334 = scmp.eq.s32.totalorder %s46, 3
      %p335 = por %p333, %p334
      %p336 = scmp.ne.s32.totalorder %s328, %s331
      %p337 = scmp.eq.s32.totalorder %s46, 0
      %p338 = por %p336, %p337
      %p339 = scmp.ne.s32.totalorder %s328, %s331
      %p340 = scmp.eq.s32.totalorder %s51, 3
      %p341 = por %p339, %p340
      %p342 = scmp.ne.s32.totalorder %s331, %s332
      %p343 = scmp.eq.s32.totalorder %s51, 0
      %p344 = por %p342, %p343
      %p345 = scmp.ne.s32.totalorder %s331, %s332
      %p346 = scmp.eq.s32.totalorder %s52, 3
      %p347 = por %p345, %p346
      %p349 = scmp.ne.s32.totalorder %s332, %s348
      %p350 = scmp.eq.s32.totalorder %s52, 0
      %p351 = por %p349, %p350
      %s352 = ssub.s32 %s54, %s61
      %p353 = scmp.eq.s32.totalorder %s352, 0
      %s355 = sadd.s32 %s354, 1
      %s356 = scalar_select %p353, %s354, %s355
      %p359 = pneg %p353
      %p360 = scmp.eq.s32.totalorder %s46, 3
      %p361 = por %p359, %p360
      %p362 = scmp.ne.s32.totalorder %s354, %s357
      %p363 = scmp.eq.s32.totalorder %s46, 0
      %p364 = por %p362, %p363
      %p365 = scmp.ne.s32.totalorder %s354, %s357
      %p366 = scmp.eq.s32.totalorder %s51, 3
      %p367 = por %p365, %p366
      %p368 = scmp.ne.s32.totalorder %s357, %s358
      %p369 = scmp.eq.s32.totalorder %s51, 0
      %p370 = por %p368, %p369
      %p371 = scmp.ne.s32.totalorder %s357, %s358
      %p372 = scmp.eq.s32.totalorder %s52, 3
      %p373 = por %p371, %p372
      %p375 = scmp.ne.s32.totalorder %s358, %s374
      %p376 = scmp.eq.s32.totalorder %s52, 0
      %p377 = por %p375, %p376
      %s378 = ssub.s32 %s54, %s61
      %p379 = scmp.eq.s32.totalorder %s378, 0
      %s381 = sadd.s32 %s380, 1
      %s382 = scalar_select %p379, %s380, %s381
      %p385 = pneg %p379
      %p386 = scmp.eq.s32.totalorder %s46, 3
      %p387 = por %p385, %p386
      %p388 = scmp.ne.s32.totalorder %s380, %s383
      %p389 = scmp.eq.s32.totalorder %s46, 0
      %p390 = por %p388, %p389
      %p391 = scmp.ne.s32.totalorder %s380, %s383
      %p392 = scmp.eq.s32.totalorder %s51, 3
      %p393 = por %p391, %p392
      %p394 = scmp.ne.s32.totalorder %s383, %s384
      %p395 = scmp.eq.s32.totalorder %s51, 0
      %p396 = por %p394, %p395
      %p397 = scmp.ne.s32.totalorder %s383, %s384
      %p398 = scmp.eq.s32.totalorder %s52, 3
      %p399 = por %p397, %p398
      %p401 = scmp.ne.s32.totalorder %s384, %s400
      %p402 = scmp.eq.s32.totalorder %s52, 0
      %p403 = por %p401, %p402
      %s404 = ssub.s32 %s54, %s61
      %p405 = scmp.eq.s32.totalorder %s404, 0
      %s407 = sadd.s32 %s406, 1
      %s408 = scalar_select %p405, %s406, %s407
      %p411 = pneg %p405
      %p412 = scmp.eq.s32.totalorder %s46, 3
      %p413 = por %p411, %p412
      %p414 = scmp.ne.s32.totalorder %s406, %s409
      %p415 = scmp.eq.s32.totalorder %s46, 0
      %p416 = por %p414, %p415
      %p417 = scmp.ne.s32.totalorder %s406, %s409
      %p418 = scmp.eq.s32.totalorder %s51, 3
      %p419 = por %p417, %p418
      %p420 = scmp.ne.s32.totalorder %s409, %s410
      %p421 = scmp.eq.s32.totalorder %s51, 0
      %p422 = por %p420, %p421
      %p423 = scmp.ne.s32.totalorder %s409, %s410
      %p424 = scmp.eq.s32.totalorder %s52, 3
      %p425 = por %p423, %p424
      %p427 = scmp.ne.s32.totalorder %s410, %s426
      %p428 = scmp.eq.s32.totalorder %s52, 0
      %p429 = por %p427, %p428
      %s430 = ssub.s32 %s54, %s61
      %p431 = scmp.eq.s32.totalorder %s430, 0
      %s433 = sadd.s32 %s432, 1
      %s434 = scalar_select %p431, %s432, %s433
      %p437 = pneg %p431
      %p438 = scmp.eq.s32.totalorder %s46, 3
      %p439 = por %p437, %p438
      %p440 = scmp.ne.s32.totalorder %s432, %s435
      %p441 = scmp.eq.s32.totalorder %s46, 0
      %p442 = por %p440, %p441
      %p443 = scmp.ne.s32.totalorder %s432, %s435
      %p444 = scmp.eq.s32.totalorder %s51, 3
      %p445 = por %p443, %p444
      %p446 = scmp.ne.s32.totalorder %s435, %s436
      %p447 = scmp.eq.s32.totalorder %s51, 0
      %p448 = por %p446, %p447
      %p449 = scmp.ne.s32.totalorder %s435, %s436
      %p450 = scmp.eq.s32.totalorder %s52, 3
      %p451 = por %p449, %p450
      %p453 = scmp.ne.s32.totalorder %s436, %s452
      %p454 = scmp.eq.s32.totalorder %s52, 0
      %p455 = por %p453, %p454
      %s456 = ssub.s32 %s54, %s61
      %p457 = scmp.eq.s32.totalorder %s456, 0
      %s459 = sadd.s32 %s458, 1
      %s460 = scalar_select %p457, %s458, %s459
      %p463 = pneg %p457
      %p464 = scmp.eq.s32.totalorder %s46, 3
      %p465 = por %p463, %p464
      %p466 = scmp.ne.s32.totalorder %s458, %s461
      %p467 = scmp.eq.s32.totalorder %s46, 0
      %p468 = por %p466, %p467
      %p469 = scmp.ne.s32.totalorder %s458, %s461
      %p470 = scmp.eq.s32.totalorder %s51, 3
      %p471 = por %p469, %p470
      %p472 = scmp.ne.s32.totalorder %s461, %s462
      %p473 = scmp.eq.s32.totalorder %s51, 0
      %p474 = por %p472, %p473
      %p475 = scmp.ne.s32.totalorder %s461, %s462
      %p476 = scmp.eq.s32.totalorder %s52, 3
      %p477 = por %p475, %p476
      %p479 = scmp.ne.s32.totalorder %s462, %s478
      %p480 = scmp.eq.s32.totalorder %s52, 0
      %p481 = por %p479, %p480
      %s482 = ssub.s32 %s54, %s61
      %p483 = scmp.eq.s32.totalorder %s482, 0
      %s485 = sadd.s32 %s484, 1
      %s486 = scalar_select %p483, %s484, %s485
      %p489 = pneg %p483
      %p490 = scmp.eq.s32.totalorder %s46, 3
      %p491 = por %p489, %p490
      %p492 = scmp.ne.s32.totalorder %s484, %s487
      %p493 = scmp.eq.s32.totalorder %s46, 0
      %p494 = por %p492, %p493
      %p495 = scmp.ne.s32.totalorder %s484, %s487
      %p496 = scmp.eq.s32.totalorder %s51, 3
      %p497 = por %p495, %p496
      %p498 = scmp.ne.s32.totalorder %s487, %s488
      %p499 = scmp.eq.s32.totalorder %s51, 0
      %p500 = por %p498, %p499
      %p501 = scmp.ne.s32.totalorder %s487, %s488
      %p502 = scmp.eq.s32.totalorder %s52, 3
      %p503 = por %p501, %p502
      %p505 = scmp.ne.s32.totalorder %s488, %s504
      %p506 = scmp.eq.s32.totalorder %s52, 0
      %p507 = por %p505, %p506
      %s508 = ssub.s32 %s54, %s61
      %p509 = scmp.eq.s32.totalorder %s508, 0
      %s511 = sadd.s32 %s510, 1
      %s512 = scalar_select %p509, %s510, %s511
      %p515 = pneg %p509
      %p516 = scmp.eq.s32.totalorder %s46, 3
      %p517 = por %p515, %p516
      %p518 = scmp.ne.s32.totalorder %s510, %s513
      %p519 = scmp.eq.s32.totalorder %s46, 0
      %p520 = por %p518, %p519
      %p521 = scmp.ne.s32.totalorder %s510, %s513
      %p522 = scmp.eq.s32.totalorder %s51, 3
      %p523 = por %p521, %p522
      %p524 = scmp.ne.s32.totalorder %s513, %s514
      %p525 = scmp.eq.s32.totalorder %s51, 0
      %p526 = por %p524, %p525
      %p527 = scmp.ne.s32.totalorder %s513, %s514
      %p528 = scmp.eq.s32.totalorder %s52, 3
      %p529 = por %p527, %p528
      %p531 = scmp.ne.s32.totalorder %s514, %s530
      %p532 = scmp.eq.s32.totalorder %s52, 0
      %p533 = por %p531, %p532
      %s534 = ssub.s32 %s54, %s61
      %p535 = scmp.eq.s32.totalorder %s534, 0
      %s537 = sadd.s32 %s536, 1
      %s538 = scalar_select %p535, %s536, %s537
      %p541 = pneg %p535
      %p542 = scmp.eq.s32.totalorder %s46, 3
      %p543 = por %p541, %p542
      %p544 = scmp.ne.s32.totalorder %s536, %s539
      %p545 = scmp.eq.s32.totalorder %s46, 0
      %p546 = por %p544, %p545
      %p547 = scmp.ne.s32.totalorder %s536, %s539
      %p548 = scmp.eq.s32.totalorder %s51, 3
      %p549 = por %p547, %p548
      %p550 = scmp.ne.s32.totalorder %s539, %s540
      %p551 = scmp.eq.s32.totalorder %s51, 0
      %p552 = por %p550, %p551
      %p553 = scmp.ne.s32.totalorder %s539, %s540
      %p554 = scmp.eq.s32.totalorder %s52, 3
      %p555 = por %p553, %p554
      %p557 = scmp.ne.s32.totalorder %s540, %s556
      %p558 = scmp.eq.s32.totalorder %s52, 0
      %p559 = por %p557, %p558
      %s560 = ssub.s32 %s54, %s61
      %p561 = scmp.eq.s32.totalorder %s560, 0
      %s563 = sadd.s32 %s562, 1
      %s564 = scalar_select %p561, %s562, %s563
      %p567 = pneg %p561
      %p568 = scmp.eq.s32.totalorder %s46, 3
      %p569 = por %p567, %p568
      %p570 = scmp.ne.s32.totalorder %s562, %s565
      %p571 = scmp.eq.s32.totalorder %s46, 0
      %p572 = por %p570, %p571
      %p573 = scmp.ne.s32.totalorder %s562, %s565
      %p574 = scmp.eq.s32.totalorder %s51, 3
      %p575 = por %p573, %p574
      %p576 = scmp.ne.s32.totalorder %s565, %s566
      %p577 = scmp.eq.s32.totalorder %s51, 0
      %p578 = por %p576, %p577
      %p579 = scmp.ne.s32.totalorder %s565, %s566
      %p580 = scmp.eq.s32.totalorder %s52, 3
      %p581 = por %p579, %p580
      %p583 = scmp.ne.s32.totalorder %s566, %s582
      %p584 = scmp.eq.s32.totalorder %s52, 0
      %p585 = por %p583, %p584
      %s586 = ssub.s32 %s54, %s61
      %p587 = scmp.eq.s32.totalorder %s586, 0
      %s589 = sadd.s32 %s588, 1
      %s590 = scalar_select %p587, %s588, %s589
      %p593 = pneg %p587
      %p594 = scmp.eq.s32.totalorder %s46, 3
      %p595 = por %p593, %p594
      %p596 = scmp.ne.s32.totalorder %s588, %s591
      %p597 = scmp.eq.s32.totalorder %s46, 0
      %p598 = por %p596, %p597
      %p599 = scmp.ne.s32.totalorder %s588, %s591
      %p600 = scmp.eq.s32.totalorder %s51, 3
      %p601 = por %p599, %p600
      %p602 = scmp.ne.s32.totalorder %s591, %s592
      %p603 = scmp.eq.s32.totalorder %s51, 0
      %p604 = por %p602, %p603
      %p605 = scmp.ne.s32.totalorder %s591, %s592
      %p606 = scmp.eq.s32.totalorder %s52, 3
      %p607 = por %p605, %p606
      %p609 = scmp.ne.s32.totalorder %s592, %s608
      %p610 = scmp.eq.s32.totalorder %s52, 0
      %p611 = por %p609, %p610
      %s612 = ssub.s32 %s54, %s61
      %p613 = scmp.eq.s32.totalorder %s612, 0
      %s615 = sadd.s32 %s614, 1
      %s616 = scalar_select %p613, %s614, %s615
      %p619 = pneg %p613
      %p620 = scmp.eq.s32.totalorder %s46, 3
      %p621 = por %p619, %p620
      %p622 = scmp.ne.s32.totalorder %s614, %s617
      %p623 = scmp.eq.s32.totalorder %s46, 0
      %p624 = por %p622, %p623
      %p625 = scmp.ne.s32.totalorder %s614, %s617
      %p626 = scmp.eq.s32.totalorder %s51, 3
      %p627 = por %p625, %p626
      %p628 = scmp.ne.s32.totalorder %s617, %s618
      %p629 = scmp.eq.s32.totalorder %s51, 0
      %p630 = por %p628, %p629
      %p631 = scmp.ne.s32.totalorder %s617, %s618
      %p632 = scmp.eq.s32.totalorder %s52, 3
      %p633 = por %p631, %p632
      %p635 = scmp.ne.s32.totalorder %s618, %s634
      %p636 = scmp.eq.s32.totalorder %s52, 0
      %p637 = por %p635, %p636
      %s639 = sadd.s32 %s638, 1
      %p642 = scmp.eq.s32.totalorder %s46, 3
      %p643 = scmp.ne.s32.totalorder %s638, %s640
      %p644 = scmp.eq.s32.totalorder %s46, 0
      %p645 = por %p643, %p644
      %p646 = scmp.ne.s32.totalorder %s638, %s640
      %p647 = scmp.eq.s32.totalorder %s51, 3
      %p648 = por %p646, %p647
      %p649 = scmp.ne.s32.totalorder %s640, %s641
      %p650 = scmp.eq.s32.totalorder %s51, 0
      %p651 = por %p649, %p650
      %p652 = scmp.ne.s32.totalorder %s640, %s641
      %p653 = scmp.eq.s32.totalorder %s52, 3
      %p654 = por %p652, %p653
      %p656 = scmp.ne.s32.totalorder %s641, %s655
      %p657 = scmp.eq.s32.totalorder %s52, 0
      %p658 = por %p656, %p657
      %s660 = sadd.s32 %s659, 1
      %p663 = scmp.eq.s32.totalorder %s46, 3
      %p664 = scmp.ne.s32.totalorder %s659, %s661
      %p665 = scmp.eq.s32.totalorder %s46, 0
      %p666 = por %p664, %p665
      %p667 = scmp.ne.s32.totalorder %s659, %s661
      %p668 = scmp.eq.s32.totalorder %s51, 3
      %p669 = por %p667, %p668
      %p670 = scmp.ne.s32.totalorder %s661, %s662
      %p671 = scmp.eq.s32.totalorder %s51, 0
      %p672 = por %p670, %p671
      %p673 = scmp.ne.s32.totalorder %s661, %s662
      %p674 = scmp.eq.s32.totalorder %s52, 3
      %p675 = por %p673, %p674
      %p677 = scmp.ne.s32.totalorder %s662, %s676
      %p678 = scmp.eq.s32.totalorder %s52, 0
      %p679 = por %p677, %p678
      %s680 = ssub.s32 %s53, %s65
      %p681 = scmp.eq.s32.totalorder %s680, 0
      %s683 = sadd.s32 %s682, 1
      %s684 = scalar_select %p681, %s682, %s683
      %p687 = pneg %p681
      %p688 = scmp.eq.s32.totalorder %s46, 3
      %p689 = por %p687, %p688
      %p690 = scmp.ne.s32.totalorder %s682, %s685
      %p691 = scmp.eq.s32.totalorder %s46, 0
      %p692 = por %p690, %p691
      %p693 = scmp.ne.s32.totalorder %s682, %s685
      %p694 = scmp.eq.s32.totalorder %s51, 3
      %p695 = por %p693, %p694
      %p696 = scmp.ne.s32.totalorder %s685, %s686
      %p697 = scmp.eq.s32.totalorder %s51, 0
      %p698 = por %p696, %p697
      %p699 = scmp.ne.s32.totalorder %s685, %s686
      %p700 = scmp.eq.s32.totalorder %s52, 3
      %p701 = por %p699, %p700
      %p703 = scmp.ne.s32.totalorder %s686, %s702
      %p704 = scmp.eq.s32.totalorder %s52, 0
      %p705 = por %p703, %p704
      %p706 = scmp.le.s32.totalorder 1, %s46
      %p707 = scmp.lt.s32.totalorder %s46, 5
      %p708 = pnand %p706, %p707
      %p709 = pneg %p708
      // Predicated region
      $region9: #{forward.1} parent=5 // pred_check
        _
      $region10: #{forward.1} parent=5 // pred_check_branch
        %711 = sbr.rel (%p708) target = $region12
      $region11: #{forward.1} parent=5 // pred_region
        %s712 = ssub.s32 %s46, 1
        // Predicated region
        $region13: #{forward.1} parent=11 // pred_check
          %p713 = pneg %p651
        $region14: #{forward.1} parent=11 // pred_check_branch
          %715 = sbr.rel (%p713) target = $region16
        $region15: #{forward.1} parent=11 // pred_region
          %717 = vsyncadd [#allocation15], 0
          %s719 = sshll.u32 %s22, 4
          %s720 = int_to_ptr.hbm [resolvable:$true] %s719
          %s721 = sshll.u32 [#allocation16], 4
          %s722 = int_to_ptr.vmem [resolvable:$true] %s721
          %724 = dma.hbm_to_vmem [thread:$0]  %s720, 16, %s722, [#allocation15]
        $region16: #{forward.1} parent=11 // pred_fallthru
          _
        // Predicated region
        $region17: #{forward.1} parent=11 // pred_check
          %p725 = pneg %p672
        $region18: #{forward.1} parent=11 // pred_check_branch
          %727 = sbr.rel (%p725) target = $region20
        $region19: #{forward.1} parent=11 // pred_region
          %729 = vsyncadd [#allocation18], 0
          %s731 = sshll.u32 %s23, 4
          %s732 = int_to_ptr.hbm [resolvable:$true] %s731
          %s733 = sshll.u32 [#allocation17], 4
          %s734 = int_to_ptr.vmem [resolvable:$true] %s733
          %736 = dma.hbm_to_vmem [thread:$0]  %s732, 16, %s734, [#allocation18]
        $region20: #{forward.1} parent=11 // pred_fallthru
          _
      $region12: #{forward.1} parent=5 // pred_fallthru
        _
      %p737 = scmp.lt.s32.totalorder %s46, 4
      // Predicated region
      $region21: #{forward.1} parent=5 // pred_check
        %p738 = pneg %p737
      $region22: #{forward.1} parent=5 // pred_check_branch
        %740 = sbr.rel (%p738) target = $region24
      $region23: #{forward.1} parent=5 // pred_region
        // Predicated region
        $region25: #{forward.1} parent=23 // pred_check
          %p741 = pneg %p78
        $region26: #{forward.1} parent=23 // pred_check_branch
          %743 = sbr.rel (%p741) target = $region28
        $region27: #{forward.1} parent=23 // pred_region
          %p744 = scmp.lt.s32.totalorder %s53, 1
          %s745 = scalar_select %p744, %s53, 1
          %s746 = smul.addr %s745, 8
          %s747 = scalar_lea.vmem %s0, %s746
        $region28: #{forward.1} parent=23 // pred_fallthru
          _
        // Predicated region
        $region29: #{forward.1} parent=23 // pred_check
          %p748 = pneg %p104
        $region30: #{forward.1} parent=23 // pred_check_branch
          %750 = sbr.rel (%p748) target = $region32
        $region31: #{forward.1} parent=23 // pred_region
          %p751 = scmp.lt.s32.totalorder %s53, 1
          %s752 = scalar_select %p751, %s53, 1
          %s753 = smul.addr %s752, 8
          %s754 = scalar_lea.vmem %s1, %s753
        $region32: #{forward.1} parent=23 // pred_fallthru
          _
        // Predicated region
        $region33: #{forward.1} parent=23 // pred_check
          %p755 = pneg %p130
        $region34: #{forward.1} parent=23 // pred_check_branch
          %757 = sbr.rel (%p755) target = $region36
        $region35: #{forward.1} parent=23 // pred_region
          %p758 = scmp.lt.s32.totalorder %s54, 1
          %s759 = scalar_select %p758, %s54, 1
          %s760 = smul.addr %s759, 4
          %s761 = smul.addr %s760, 8
          %s762 = scalar_lea.vmem %s2, %s761
        $region36: #{forward.1} parent=23 // pred_fallthru
          _
        // Predicated region
        $region37: #{forward.1} parent=23 // pred_check
          %p763 = pneg %p156
        $region38: #{forward.1} parent=23 // pred_check_branch
          %765 = sbr.rel (%p763) target = $region40
        $region39: #{forward.1} parent=23 // pred_region
          %p766 = scmp.lt.s32.totalorder %s54, 1
          %s767 = scalar_select %p766, %s54, 1
          %s768 = scalar_lea.vmem %s3, %s767
        $region40: #{forward.1} parent=23 // pred_fallthru
          _
        // Predicated region
        $region41: #{forward.1} parent=23 // pred_check
          %p769 = pneg %p182
        $region42: #{forward.1} parent=23 // pred_check_branch
          %771 = sbr.rel (%p769) target = $region44
        $region43: #{forward.1} parent=23 // pred_region
          %p772 = scmp.lt.s32.totalorder %s54, 1
          %s773 = scalar_select %p772, %s54, 1
          %s774 = smul.addr %s773, 4
          %s775 = smul.addr %s774, 8
          %s776 = scalar_lea.vmem %s4, %s775
        $region44: #{forward.1} parent=23 // pred_fallthru
          _
        // Predicated region
        $region45: #{forward.1} parent=23 // pred_check
          %p777 = pneg %p208
        $region46: #{forward.1} parent=23 // pred_check_branch
          %779 = sbr.rel (%p777) target = $region48
        $region47: #{forward.1} parent=23 // pred_region
          %p780 = scmp.lt.s32.totalorder %s54, 1
          %s781 = scalar_select %p780, %s54, 1
          %s782 = scalar_lea.vmem %s5, %s781
        $region48: #{forward.1} parent=23 // pred_fallthru
          _
        // Predicated region
        $region49: #{forward.1} parent=23 // pred_check
          %p783 = pneg %p234
        $region50: #{forward.1} parent=23 // pred_check_branch
          %785 = sbr.rel (%p783) target = $region52
        $region51: #{forward.1} parent=23 // pred_region
          %p786 = scmp.lt.s32.totalorder %s54, 1
          %s787 = scalar_select %p786, %s54, 1
          %s788 = scalar_lea.vmem %s6, %s787
        $region52: #{forward.1} parent=23 // pred_fallthru
          _
        // Predicated region
        $region53: #{forward.1} parent=23 // pred_check
          %p789 = pneg %p260
        $region54: #{forward.1} parent=23 // pred_check_branch
          %791 = sbr.rel (%p789) target = $region56
        $region55: #{forward.1} parent=23 // pred_region
          %p792 = scmp.lt.s32.totalorder %s54, 1
          %s793 = scalar_select %p792, %s54, 1
          %s794 = scalar_lea.vmem %s7, %s793
        $region56: #{forward.1} parent=23 // pred_fallthru
          _
        // Predicated region
        $region57: #{forward.1} parent=23 // pred_check
          %p795 = pneg %p286
        $region58: #{forward.1} parent=23 // pred_check_branch
          %797 = sbr.rel (%p795) target = $region60
        $region59: #{forward.1} parent=23 // pred_region
          %p798 = scmp.lt.s32.totalorder %s54, 1
          %s799 = scalar_select %p798, %s54, 1
          %s800 = smul.addr %s799, 4
          %s801 = smul.addr %s800, 8
          %s802 = scalar_lea.vmem %s8, %s801
        $region60: #{forward.1} parent=23 // pred_fallthru
          _
        // Predicated region
        $region61: #{forward.1} parent=23 // pred_check
          %p803 = pneg %p312
        $region62: #{forward.1} parent=23 // pred_check_branch
          %805 = sbr.rel (%p803) target = $region64
        $region63: #{forward.1} parent=23 // pred_region
          %p806 = scmp.lt.s32.totalorder %s54, 1
          %s807 = scalar_select %p806, %s54, 1
          %s808 = scalar_lea.vmem %s9, %s807
        $region64: #{forward.1} parent=23 // pred_fallthru
          _
        // Predicated region
        $region65: #{forward.1} parent=23 // pred_check
          %p809 = pneg %p338
        $region66: #{forward.1} parent=23 // pred_check_branch
          %811 = sbr.rel (%p809) target = $region68
        $region67: #{forward.1} parent=23 // pred_region
          %s812 = sand.u32 %s328, 1
          %s813 = scalar_lea.sflag [#allocation4], %s812
          %s814 = sand.u32 %s328, 1
          %s815 = smul.addr %s814, 32
          %s816 = scalar_lea.vmem [#allocation3], %s815
          %818 = vsyncadd %s813, 0
          %s819 = smul.addr %s54, 4
          %s820 = smul.addr %s819, 8
          %s821 = scalar_lea.hbm %s10, %s820
          %s822 = sshll.u32 %s821, 4
          %s823 = int_to_ptr.hbm [resolvable:$true] %s822
          %s824 = sshll.u32 %s816, 4
          %s825 = int_to_ptr.vmem [resolvable:$true] %s824
          %830 = dma.hbm_to_vmem [thread:$0]  %s823, 512, %s825, %s813, 128, 128, 8
        $region68: #{forward.1} parent=23 // pred_fallthru
          _
        // Predicated region
        $region69: #{forward.1} parent=23 // pred_check
          %p831 = pneg %p364
        $region70: #{forward.1} parent=23 // pred_check_branch
          %833 = sbr.rel (%p831) target = $region72
        $region71: #{forward.1} parent=23 // pred_region
          %s834 = sand.u32 %s46, 1
          %s835 = scalar_lea.sflag [#allocation6], %s834
          %s836 = sand.u32 %s354, 1
          %s837 = scalar_lea.vmem [#allocation5], %s836
          %839 = vsyncadd %s835, 0
          %s840 = scalar_lea.hbm %s11, %s54
          %s842 = sshll.u32 %s840, 4
          %s843 = int_to_ptr.hbm [resolvable:$true] %s842
          %s844 = sshll.u32 %s837, 4
          %s845 = int_to_ptr.vmem [resolvable:$true] %s844
          %847 = dma.hbm_to_vmem [thread:$0]  %s843, 16, %s845, %s835
        $region72: #{forward.1} parent=23 // pred_fallthru
          _
        // Predicated region
        $region73: #{forward.1} parent=23 // pred_check
          %p848 = pneg %p390
        $region74: #{forward.1} parent=23 // pred_check_branch
          %850 = sbr.rel (%p848) target = $region76
        $region75: #{forward.1} parent=23 // pred_region
          %s851 = sand.u32 %s46, 1
          %s852 = scalar_lea.sflag [#allocation6], %s851
          %s853 = sand.u32 %s380, 1
          %s854 = smul.addr %s853, 32
          %s855 = scalar_lea.vmem [#allocation7], %s854
          %857 = vsyncadd %s852, 0
          %s858 = smul.addr %s54, 4
          %s859 = smul.addr %s858, 8
          %s860 = scalar_lea.hbm %s12, %s859
          %s861 = sshll.u32 %s860, 4
          %s862 = int_to_ptr.hbm [resolvable:$true] %s861
          %s863 = sshll.u32 %s855, 4
          %s864 = int_to_ptr.vmem [resolvable:$true] %s863
          %869 = dma.hbm_to_vmem [thread:$0]  %s862, 512, %s864, %s852, 128, 128, 8
        $region76: #{forward.1} parent=23 // pred_fallthru
          _
        // Predicated region
        $region77: #{forward.1} parent=23 // pred_check
          %p870 = pneg %p416
        $region78: #{forward.1} parent=23 // pred_check_branch
          %872 = sbr.rel (%p870) target = $region80
        $region79: #{forward.1} parent=23 // pred_region
          %s873 = sand.u32 %s46, 1
          %s874 = scalar_lea.sflag [#allocation9], %s873
          %s875 = sand.u32 %s406, 1
          %s876 = scalar_lea.vmem [#allocation8], %s875
          %878 = vsyncadd %s874, 0
          %s879 = scalar_lea.hbm %s13, %s54
          %s881 = sshll.u32 %s879, 4
          %s882 = int_to_ptr.hbm [resolvable:$true] %s881
          %s883 = sshll.u32 %s876, 4
          %s884 = int_to_ptr.vmem [resolvable:$true] %s883
          %886 = dma.hbm_to_vmem [thread:$0]  %s882, 16, %s884, %s874
        $region80: #{forward.1} parent=23 // pred_fallthru
          _
        // Predicated region
        $region81: #{forward.1} parent=23 // pred_check
          %p887 = pneg %p442
        $region82: #{forward.1} parent=23 // pred_check_branch
          %889 = sbr.rel (%p887) target = $region84
        $region83: #{forward.1} parent=23 // pred_region
          %p890 = scmp.lt.s32.totalorder %s54, 1
          %s891 = scalar_select %p890, %s54, 1
          %s892 = scalar_lea.vmem %s14, %s891
        $region84: #{forward.1} parent=23 // pred_fallthru
          _
        // Predicated region
        $region85: #{forward.1} parent=23 // pred_check
          %p893 = pneg %p468
        $region86: #{forward.1} parent=23 // pred_check_branch
          %895 = sbr.rel (%p893) target = $region88
        $region87: #{forward.1} parent=23 // pred_region
          %p896 = scmp.lt.s32.totalorder %s54, 1
          %s897 = scalar_select %p896, %s54, 1
          %s898 = scalar_lea.vmem %s15, %s897
        $region88: #{forward.1} parent=23 // pred_fallthru
          _
        // Predicated region
        $region89: #{forward.1} parent=23 // pred_check
          %p899 = pneg %p494
        $region90: #{forward.1} parent=23 // pred_check_branch
          %901 = sbr.rel (%p899) target = $region92
        $region91: #{forward.1} parent=23 // pred_region
          %s902 = sand.u32 %s46, 1
          %s903 = scalar_lea.sflag [#allocation9], %s902
          %s904 = sand.u32 %s484, 1
          %s905 = smul.addr %s904, 32
          %s906 = scalar_lea.vmem [#allocation10], %s905
          %908 = vsyncadd %s903, 0
          %s909 = smul.addr %s54, 4
          %s910 = smul.addr %s909, 8
          %s911 = scalar_lea.hbm %s16, %s910
          %s912 = sshll.u32 %s911, 4
          %s913 = int_to_ptr.hbm [resolvable:$true] %s912
          %s914 = sshll.u32 %s906, 4
          %s915 = int_to_ptr.vmem [resolvable:$true] %s914
          %920 = dma.hbm_to_vmem [thread:$0]  %s913, 512, %s915, %s903, 128, 128, 8
        $region92: #{forward.1} parent=23 // pred_fallthru
          _
        // Predicated region
        $region93: #{forward.1} parent=23 // pred_check
          %p921 = pneg %p520
        $region94: #{forward.1} parent=23 // pred_check_branch
          %923 = sbr.rel (%p921) target = $region96
        $region95: #{forward.1} parent=23 // pred_region
          %s924 = sand.u32 %s46, 1
          %s925 = scalar_lea.sflag [#allocation12], %s924
          %s926 = sand.u32 %s510, 1
          %s927 = scalar_lea.vmem [#allocation11], %s926
          %929 = vsyncadd %s925, 0
          %s930 = scalar_lea.hbm %s17, %s54
          %s932 = sshll.u32 %s930, 4
          %s933 = int_to_ptr.hbm [resolvable:$true] %s932
          %s934 = sshll.u32 %s927, 4
          %s935 = int_to_ptr.vmem [resolvable:$true] %s934
          %937 = dma.hbm_to_vmem [thread:$0]  %s933, 16, %s935, %s925
        $region96: #{forward.1} parent=23 // pred_fallthru
          _
        // Predicated region
        $region97: #{forward.1} parent=23 // pred_check
          %p938 = pneg %p546
        $region98: #{forward.1} parent=23 // pred_check_branch
          %940 = sbr.rel (%p938) target = $region100
        $region99: #{forward.1} parent=23 // pred_region
          %p941 = scmp.lt.s32.totalorder %s54, 1
          %s942 = scalar_select %p941, %s54, 1
          %s943 = smul.addr %s942, 8
          %s944 = smul.addr %s943, 8
          %s945 = scalar_lea.vmem %s18, %s944
        $region100: #{forward.1} parent=23 // pred_fallthru
          _
        // Predicated region
        $region101: #{forward.1} parent=23 // pred_check
          %p946 = pneg %p572
        $region102: #{forward.1} parent=23 // pred_check_branch
          %948 = sbr.rel (%p946) target = $region104
        $region103: #{forward.1} parent=23 // pred_region
          %s949 = sand.u32 %s46, 1
          %s950 = scalar_lea.sflag [#allocation12], %s949
          %s951 = sand.u32 %s562, 1
          %s952 = scalar_lea.vmem [#allocation13], %s951
          %954 = vsyncadd %s950, 0
          %s955 = scalar_lea.hbm %s19, %s54
          %s957 = sshll.u32 %s955, 4
          %s958 = int_to_ptr.hbm [resolvable:$true] %s957
          %s959 = sshll.u32 %s952, 4
          %s960 = int_to_ptr.vmem [resolvable:$true] %s959
          %962 = dma.hbm_to_vmem [thread:$0]  %s958, 16, %s960, %s950
        $region104: #{forward.1} parent=23 // pred_fallthru
          _
        // Predicated region
        $region105: #{forward.1} parent=23 // pred_check
          %p963 = pneg %p598
        $region106: #{forward.1} parent=23 // pred_check_branch
          %965 = sbr.rel (%p963) target = $region108
        $region107: #{forward.1} parent=23 // pred_region
          %p966 = scmp.lt.s32.totalorder %s54, 1
          %s967 = scalar_select %p966, %s54, 1
          %s968 = scalar_lea.vmem %s20, %s967
        $region108: #{forward.1} parent=23 // pred_fallthru
          _
        // Predicated region
        $region109: #{forward.1} parent=23 // pred_check
          %p969 = pneg %p624
        $region110: #{forward.1} parent=23 // pred_check_branch
          %971 = sbr.rel (%p969) target = $region112
        $region111: #{forward.1} parent=23 // pred_region
          %s972 = sand.u32 %s46, 1
          %s973 = scalar_lea.sflag [#allocation15], %s972
          %s974 = sand.u32 %s614, 1
          %s975 = scalar_lea.vmem [#allocation14], %s974
          %977 = vsyncadd %s973, 0
          %s978 = scalar_lea.hbm %s21, %s54
          %s980 = sshll.u32 %s978, 4
          %s981 = int_to_ptr.hbm [resolvable:$true] %s980
          %s982 = sshll.u32 %s975, 4
          %s983 = int_to_ptr.vmem [resolvable:$true] %s982
          %985 = dma.hbm_to_vmem [thread:$0]  %s981, 16, %s983, %s973
        $region112: #{forward.1} parent=23 // pred_fallthru
          _
      $region24: #{forward.1} parent=5 // pred_fallthru
        _
      %p986 = scmp.le.s32.totalorder 1, %s46
      %p987 = scmp.lt.s32.totalorder %s46, 5
      %p988 = pnand %p986, %p987
      %p989 = pneg %p988
      // Predicated region
      $region113: #{forward.1} parent=5 // pred_check
        _
      $region114: #{forward.1} parent=5 // pred_check_branch
        %991 = sbr.rel (%p988) target = $region116
      $region115: #{forward.1} parent=5 // pred_region
        %s992 = ssub.s32 %s46, 1
        %s993 = sand.u32 %s331, 1
        %s994 = scalar_lea.sflag [#allocation4], %s993
        %s995 = sand.u32 %s331, 1
        %s996 = smul.addr %s995, 32
        %s997 = scalar_lea.vmem [#allocation3], %s996
        // Predicated region
        $region117: #{forward.1} parent=115 // pred_check
          %p998 = pneg %p344
        $region118: #{forward.1} parent=115 // pred_check_branch
          %1000 = sbr.rel (%p998) target = $region120
        $region119: #{forward.1} parent=115 // pred_region
          %1002 = dma.done %s994, 512
        $region120: #{forward.1} parent=115 // pred_fallthru
          _
        %s1003 = sand.u32 %s51, 1
        %s1004 = scalar_lea.sflag [#allocation6], %s1003
        %s1005 = sand.u32 %s357, 1
        %s1006 = scalar_lea.vmem [#allocation5], %s1005
        // Predicated region
        $region121: #{forward.1} parent=115 // pred_check
          %p1007 = pneg %p370
        $region122: #{forward.1} parent=115 // pred_check_branch
          %1009 = sbr.rel (%p1007) target = $region124
        $region123: #{forward.1} parent=115 // pred_region
          %1011 = dma.done %s1004, 16
        $region124: #{forward.1} parent=115 // pred_fallthru
          _
        %s1012 = sand.u32 %s51, 1
        %s1013 = scalar_lea.sflag [#allocation6], %s1012
        %s1014 = sand.u32 %s383, 1
        %s1015 = smul.addr %s1014, 32
        %s1016 = scalar_lea.vmem [#allocation7], %s1015
        // Predicated region
        $region125: #{forward.1} parent=115 // pred_check
          %p1017 = pneg %p396
        $region126: #{forward.1} parent=115 // pred_check_branch
          %1019 = sbr.rel (%p1017) target = $region128
        $region127: #{forward.1} parent=115 // pred_region
          %1021 = dma.done %s1013, 512
        $region128: #{forward.1} parent=115 // pred_fallthru
          _
        %s1022 = sand.u32 %s51, 1
        %s1023 = scalar_lea.sflag [#allocation9], %s1022
        %s1024 = sand.u32 %s409, 1
        %s1025 = scalar_lea.vmem [#allocation8], %s1024
        // Predicated region
        $region129: #{forward.1} parent=115 // pred_check
          %p1026 = pneg %p422
        $region130: #{forward.1} parent=115 // pred_check_branch
          %1028 = sbr.rel (%p1026) target = $region132
        $region131: #{forward.1} parent=115 // pred_region
          %1030 = dma.done %s1023, 16
        $region132: #{forward.1} parent=115 // pred_fallthru
          _
        %s1031 = sand.u32 %s51, 1
        %s1032 = scalar_lea.sflag [#allocation9], %s1031
        %s1033 = sand.u32 %s487, 1
        %s1034 = smul.addr %s1033, 32
        %s1035 = scalar_lea.vmem [#allocation10], %s1034
        // Predicated region
        $region133: #{forward.1} parent=115 // pred_check
          %p1036 = pneg %p500
        $region134: #{forward.1} parent=115 // pred_check_branch
          %1038 = sbr.rel (%p1036) target = $region136
        $region135: #{forward.1} parent=115 // pred_region
          %1040 = dma.done %s1032, 512
        $region136: #{forward.1} parent=115 // pred_fallthru
          _
        %s1041 = sand.u32 %s51, 1
        %s1042 = scalar_lea.sflag [#allocation12], %s1041
        %s1043 = sand.u32 %s513, 1
        %s1044 = scalar_lea.vmem [#allocation11], %s1043
        // Predicated region
        $region137: #{forward.1} parent=115 // pred_check
          %p1045 = pneg %p526
        $region138: #{forward.1} parent=115 // pred_check_branch
          %1047 = sbr.rel (%p1045) target = $region140
        $region139: #{forward.1} parent=115 // pred_region
          %1049 = dma.done %s1042, 16
        $region140: #{forward.1} parent=115 // pred_fallthru
          _
        %s1050 = sand.u32 %s51, 1
        %s1051 = scalar_lea.sflag [#allocation12], %s1050
        %s1052 = sand.u32 %s565, 1
        %s1053 = scalar_lea.vmem [#allocation13], %s1052
        // Predicated region
        $region141: #{forward.1} parent=115 // pred_check
          %p1054 = pneg %p578
        $region142: #{forward.1} parent=115 // pred_check_branch
          %1056 = sbr.rel (%p1054) target = $region144
        $region143: #{forward.1} parent=115 // pred_region
          %1058 = dma.done %s1051, 16
        $region144: #{forward.1} parent=115 // pred_fallthru
          _
        %s1059 = sand.u32 %s51, 1
        %s1060 = scalar_lea.sflag [#allocation15], %s1059
        %s1061 = sand.u32 %s617, 1
        %s1062 = scalar_lea.vmem [#allocation14], %s1061
        // Predicated region
        $region145: #{forward.1} parent=115 // pred_check
          %p1063 = pneg %p630
        $region146: #{forward.1} parent=115 // pred_check_branch
          %1065 = sbr.rel (%p1063) target = $region148
        $region147: #{forward.1} parent=115 // pred_region
          %1067 = dma.done %s1060, 16
        $region148: #{forward.1} parent=115 // pred_fallthru
          _
        // Predicated region
        $region149: #{forward.1} parent=115 // pred_check
          %p1068 = pneg %p651
        $region150: #{forward.1} parent=115 // pred_check_branch
          %1070 = sbr.rel (%p1068) target = $region152
        $region151: #{forward.1} parent=115 // pred_region
          %1072 = dma.done [#allocation15], 16
        $region152: #{forward.1} parent=115 // pred_fallthru
          _
        // Predicated region
        $region153: #{forward.1} parent=115 // pred_check
          %p1073 = pneg %p672
        $region154: #{forward.1} parent=115 // pred_check_branch
          %1075 = sbr.rel (%p1073) target = $region156
        $region155: #{forward.1} parent=115 // pred_region
          %1077 = dma.done [#allocation18], 16
        $region156: #{forward.1} parent=115 // pred_fallthru
          _
        %p1078 = scmp.lt.s32.totalorder %s55, 1
        %s1079 = scalar_select %p1078, %s55, 1
        %s1080 = smul.addr %s1079, 8
        %s1081 = scalar_lea.vmem %s0, %s1080
        %p1082 = pneg %p84
        %p1083 = pneg %p81
        %p1084 = scmp.lt.s32.totalorder %s55, 1
        %s1085 = scalar_select %p1084, %s55, 1
        %s1086 = smul.addr %s1085, 8
        %s1087 = scalar_lea.vmem %s1, %s1086
        %p1088 = pneg %p110
        %p1089 = pneg %p107
        %p1090 = scmp.lt.s32.totalorder %s56, 1
        %s1091 = scalar_select %p1090, %s56, 1
        %s1092 = smul.addr %s1091, 4
        %s1093 = smul.addr %s1092, 8
        %s1094 = scalar_lea.vmem %s2, %s1093
        %p1095 = pneg %p136
        %p1096 = pneg %p133
        %p1097 = scmp.lt.s32.totalorder %s56, 1
        %s1098 = scalar_select %p1097, %s56, 1
        %s1099 = scalar_lea.vmem %s3, %s1098
        %p1100 = pneg %p162
        %p1101 = pneg %p159
        %p1102 = scmp.lt.s32.totalorder %s56, 1
        %s1103 = scalar_select %p1102, %s56, 1
        %s1104 = smul.addr %s1103, 4
        %s1105 = smul.addr %s1104, 8
        %s1106 = scalar_lea.vmem %s4, %s1105
        %p1107 = pneg %p188
        %p1108 = pneg %p185
        %p1109 = scmp.lt.s32.totalorder %s56, 1
        %s1110 = scalar_select %p1109, %s56, 1
        %s1111 = scalar_lea.vmem %s5, %s1110
        %p1112 = pneg %p214
        %p1113 = pneg %p211
        %p1114 = scmp.lt.s32.totalorder %s56, 1
        %s1115 = scalar_select %p1114, %s56, 1
        %s1116 = scalar_lea.vmem %s6, %s1115
        %p1117 = pneg %p240
        %p1118 = pneg %p237
        %p1119 = scmp.lt.s32.totalorder %s56, 1
        %s1120 = scalar_select %p1119, %s56, 1
        %s1121 = scalar_lea.vmem %s7, %s1120
        %p1122 = pneg %p266
        %p1123 = pneg %p263
        %p1124 = scmp.lt.s32.totalorder %s56, 1
        %s1125 = scalar_select %p1124, %s56, 1
        %s1126 = smul.addr %s1125, 4
        %s1127 = smul.addr %s1126, 8
        %s1128 = scalar_lea.vmem %s8, %s1127
        %p1129 = pneg %p292
        %p1130 = pneg %p289
        %p1131 = scmp.lt.s32.totalorder %s56, 1
        %s1132 = scalar_select %p1131, %s56, 1
        %s1133 = scalar_lea.vmem %s9, %s1132
        %p1134 = pneg %p318
        %p1135 = pneg %p315
        %s1136 = sand.u32 %s331, 1
        %s1137 = scalar_lea.sflag [#allocation4], %s1136
        %s1138 = sand.u32 %s331, 1
        %s1139 = smul.addr %s1138, 32
        %s1140 = scalar_lea.vmem [#allocation3], %s1139
        %p1141 = pneg %p344
        %p1142 = pneg %p341
        %s1143 = sand.u32 %s51, 1
        %s1144 = scalar_lea.sflag [#allocation6], %s1143
        %s1145 = sand.u32 %s357, 1
        %s1146 = scalar_lea.vmem [#allocation5], %s1145
        %p1147 = pneg %p370
        %p1148 = pneg %p367
        %s1149 = sand.u32 %s51, 1
        %s1150 = scalar_lea.sflag [#allocation6], %s1149
        %s1151 = sand.u32 %s383, 1
        %s1152 = smul.addr %s1151, 32
        %s1153 = scalar_lea.vmem [#allocation7], %s1152
        %p1154 = pneg %p396
        %p1155 = pneg %p393
        %s1156 = sand.u32 %s51, 1
        %s1157 = scalar_lea.sflag [#allocation9], %s1156
        %s1158 = sand.u32 %s409, 1
        %s1159 = scalar_lea.vmem [#allocation8], %s1158
        %p1160 = pneg %p422
        %p1161 = pneg %p419
        %p1162 = scmp.lt.s32.totalorder %s56, 1
        %s1163 = scalar_select %p1162, %s56, 1
        %s1164 = scalar_lea.vmem %s14, %s1163
        %p1165 = pneg %p448
        %p1166 = pneg %p445
        %p1167 = scmp.lt.s32.totalorder %s56, 1
        %s1168 = scalar_select %p1167, %s56, 1
        %s1169 = scalar_lea.vmem %s15, %s1168
        %p1170 = pneg %p474
        %p1171 = pneg %p471
        %s1172 = sand.u32 %s51, 1
        %s1173 = scalar_lea.sflag [#allocation9], %s1172
        %s1174 = sand.u32 %s487, 1
        %s1175 = smul.addr %s1174, 32
        %s1176 = scalar_lea.vmem [#allocation10], %s1175
        %p1177 = pneg %p500
        %p1178 = pneg %p497
        %s1179 = sand.u32 %s51, 1
        %s1180 = scalar_lea.sflag [#allocation12], %s1179
        %s1181 = sand.u32 %s513, 1
        %s1182 = scalar_lea.vmem [#allocation11], %s1181
        %p1183 = pneg %p526
        %p1184 = pneg %p523
        %p1185 = scmp.lt.s32.totalorder %s56, 1
        %s1186 = scalar_select %p1185, %s56, 1
        %s1187 = smul.addr %s1186, 8
        %s1188 = smul.addr %s1187, 8
        %s1189 = scalar_lea.vmem %s18, %s1188
        %p1190 = pneg %p552
        %p1191 = pneg %p549
        %s1192 = sand.u32 %s51, 1
        %s1193 = scalar_lea.sflag [#allocation12], %s1192
        %s1194 = sand.u32 %s565, 1
        %s1195 = scalar_lea.vmem [#allocation13], %s1194
        %p1196 = pneg %p578
        %p1197 = pneg %p575
        %p1198 = scmp.lt.s32.totalorder %s56, 1
        %s1199 = scalar_select %p1198, %s56, 1
        %s1200 = scalar_lea.vmem %s20, %s1199
        %p1201 = pneg %p604
        %p1202 = pneg %p601
        %s1203 = sand.u32 %s51, 1
        %s1204 = scalar_lea.sflag [#allocation15], %s1203
        %s1205 = sand.u32 %s617, 1
        %s1206 = scalar_lea.vmem [#allocation14], %s1205
        %p1207 = pneg %p630
        %p1208 = pneg %p627
        %p1209 = pneg %p651
        %p1210 = pneg %p648
        %p1211 = pneg %p672
        %p1212 = pneg %p669
        %p1213 = pneg %p698
        %p1214 = pneg %p695
        %p1215 = scmp.lt.s32.totalorder %s55, 1
        %s1216 = scalar_select %p1215, %s55, 1
        %s1217 = smul.addr %s1216, 8
        %s1218 = scalar_lea.vmem %s24, %s1217
        %p1219 = scmp.lt.s32.totalorder %s55, 1
        %s1220 = scalar_select %p1219, %s55, 1
        %s1221 = smul.addr %s1220, 8
        %s1222 = scalar_lea.vmem %s0, %s1221
        %p1223 = scmp.lt.s32.totalorder %s55, 1
        %s1224 = scalar_select %p1223, %s55, 1
        %s1225 = smul.addr %s1224, 8
        %s1226 = scalar_lea.vmem %s1, %s1225
        %p1227 = scmp.lt.s32.totalorder %s56, 1
        %s1228 = scalar_select %p1227, %s56, 1
        %s1229 = smul.addr %s1228, 4
        %s1230 = smul.addr %s1229, 8
        %s1231 = scalar_lea.vmem %s2, %s1230
        %p1232 = scmp.lt.s32.totalorder %s56, 1
        %s1233 = scalar_select %p1232, %s56, 1
        %s1234 = scalar_lea.vmem %s3, %s1233
        %p1235 = scmp.lt.s32.totalorder %s56, 1
        %s1236 = scalar_select %p1235, %s56, 1
        %s1237 = smul.addr %s1236, 4
        %s1238 = smul.addr %s1237, 8
        %s1239 = scalar_lea.vmem %s4, %s1238
        %p1240 = scmp.lt.s32.totalorder %s56, 1
        %s1241 = scalar_select %p1240, %s56, 1
        %s1242 = scalar_lea.vmem %s5, %s1241
        %p1243 = scmp.lt.s32.totalorder %s56, 1
        %s1244 = scalar_select %p1243, %s56, 1
        %s1245 = scalar_lea.vmem %s6, %s1244
        %p1246 = scmp.lt.s32.totalorder %s56, 1
        %s1247 = scalar_select %p1246, %s56, 1
        %s1248 = scalar_lea.vmem %s7, %s1247
        %p1249 = scmp.lt.s32.totalorder %s56, 1
        %s1250 = scalar_select %p1249, %s56, 1
        %s1251 = smul.addr %s1250, 4
        %s1252 = smul.addr %s1251, 8
        %s1253 = scalar_lea.vmem %s8, %s1252
        %p1254 = scmp.lt.s32.totalorder %s56, 1
        %s1255 = scalar_select %p1254, %s56, 1
        %s1256 = scalar_lea.vmem %s9, %s1255
        %p1257 = scmp.lt.s32.totalorder %s56, 1
        %s1258 = scalar_select %p1257, %s56, 1
        %s1259 = scalar_lea.vmem %s14, %s1258
        %p1260 = scmp.lt.s32.totalorder %s56, 1
        %s1261 = scalar_select %p1260, %s56, 1
        %s1262 = scalar_lea.vmem %s15, %s1261
        %p1263 = scmp.lt.s32.totalorder %s56, 1
        %s1264 = scalar_select %p1263, %s56, 1
        %s1265 = smul.addr %s1264, 8
        %s1266 = smul.addr %s1265, 8
        %s1267 = scalar_lea.vmem %s18, %s1266
        %p1268 = scmp.lt.s32.totalorder %s56, 1
        %s1269 = scalar_select %p1268, %s56, 1
        %s1270 = scalar_lea.vmem %s20, %s1269
        %p1271 = scmp.lt.s32.totalorder %s55, 1
        %s1272 = scalar_select %p1271, %s55, 1
        %s1273 = smul.addr %s1272, 8
        %s1274 = scalar_lea.vmem %s24, %s1273
        %p1275 = scmp.eq.s32.totalorder %s56, 0
        // Predicated region
        $region157: #{forward.1} parent=115 // pred_check
          %p1276 = pneg %p1275
        $region158: #{forward.1} parent=115 // pred_check_branch
          %1278 = sbr.rel (%p1276) target = $region160
        $region159: #{forward.1} parent=115 // pred_region
          %v1279 = vld [vmem:[%s1222] sm:$0xff]
          %vm1280 = vcmask 261120
          %1281 = vst.msk [vmem:[#allocation2] sm:$0xff] %vm1280, %v1279
        $region160: #{forward.1} parent=115 // pred_fallthru
          _
        %v1282 = vld [vmem:[#allocation2] sm:$0xff]
        %v1283 = vld [vmem:[%s1226] sm:$0xff]
        %v1284 = vld [vmem:[%s1231] sm:$0xff]
        %v1285 = vld [vmem:[%s1231 + $0x8] sm:$0xff]
        %v1286 = vld [vmem:[%s1231 + $0x10] sm:$0xff]
        %v1287 = vld [vmem:[%s1231 + $0x18] sm:$0xff]
        %v1288 = vld [vmem:[%s1234] sm:$0x1]
        %v1290 = vperm.slane %v1288, 0
        %vm1292 = vcmask 261120
        %v1294 = vsel %vm1292, %v1282, 0
        %1296 = vmatpush.msra.mxu0 0.0
        %1297 = vmatpush.msra.mxu0 0.0
        %1298 = vmatpush.msra.mxu0 0.0
        %1299 = vmatpush.msra.mxu0 0.0
        %1300 = vmatpush.msra.mxu0 0.0
        %1301 = vmatpush.msra.mxu0 0.0
        %1302 = vmatpush.msra.mxu0 0.0
        %1303 = vmatpush.msra.mxu0 0.0
        %1304 = vmatpush.msra.mxu0 0.0
        %1305 = vmatpush.msra.mxu0 0.0
        %1306 = vmatpush.msra.mxu0 0.0
        %1307 = vmatpush.msra.mxu0 0.0
        %1308 = vmatpush.msra.mxu0 %v1287
        %1309 = vmatpush.msra.mxu0 %v1286
        %1310 = vmatpush.msra.mxu0 %v1285
        %1311 = vmatpush.msra.mxu0 %v1284
        %1312 = vmatmul.f32.gmra.mxu0 %v1294
        %v1313 = vpop.f32.mrf.mxu0
        %v1314 = vadd.f32 %v1290, %v1313
        %1315 = vdwg.mxu0
        %v1316 = vld [vmem:[%s1239] sm:$0xff]
        %v1317 = vld [vmem:[%s1239 + $0x8] sm:$0xff]
        %v1318 = vld [vmem:[%s1239 + $0x10] sm:$0xff]
        %v1319 = vld [vmem:[%s1239 + $0x18] sm:$0xff]
        %v1320 = vld [vmem:[%s1242] sm:$0x1]
        %1322 = vrot.lane.b32.xlu0 %v1314, 96
        %v1323 = vpop.permute.xlu0 %1322
        %vm1324 = vcmask 64512
        %v1325 = vsel %vm1324, %v1314, 0
        %v1327 = vsel %vm1324, %v1323, 0
        %1329 = vmatpush.xpose.msra.mxu0 0.0
        %1330 = vmatpush.xpose.msra.mxu0 0.0
        %1331 = vmatpush.xpose.msra.mxu0 0.0
        %1332 = vmatpush.xpose.msra.mxu0 0.0
        %1333 = vmatpush.xpose.msra.mxu0 0.0
        %1334 = vmatpush.xpose.msra.mxu0 0.0
        %1335 = vmatpush.xpose.msra.mxu0 0.0
        %1336 = vmatpush.xpose.msra.mxu0 0.0
        %1337 = vmatpush.xpose.msra.mxu0 0.0
        %1338 = vmatpush.xpose.msra.mxu0 0.0
        %1339 = vmatpush.xpose.msra.mxu0 0.0
        %1340 = vmatpush.xpose.msra.mxu0 0.0
        %1341 = vmatpush.xpose.msra.mxu0 0.0
        %1342 = vmatpush.xpose.msra.mxu0 0.0
        %1343 = vmatpush.xpose.msra.mxu0 0.0
        %1344 = vmatpush.xpose.msra.mxu0 %v1327
        %1345 = vmatmul.f32.gmra.mxu0 %v1325
        %v1346 = vpop.f32.mrf.mxu0
        %v1347 = vadd.f32 0.0, %v1346
        %1348 = vdwg.mxu0
        %v1349 = vsel %vm1324, %v1347, -inf
        %1350 = vmax.xlane.f32.xlu0 %v1349
        %v1351 = vpop.xlane.xlu0 %1350
        %v1352 = vsub.f32 %v1347, %v1351
        %v1353 = vmul.f32 %v1352, 1.442695
        %v1354 = vpow.pop %v1353
        %v1355 = vsel %vm1324, %v1354, 0.0
        %1356 = vadd.xlane.f32.xlu0 %v1355
        %v1357 = vpop.xlane.xlu0 %1356
        %v1358 = vrcp.pop %v1357
        %v1359 = vmul.f32 %v1354, %v1358
        %1360 = vrot.lane.b32.xlu0 %v1314, 64
        %v1361 = vpop.permute.xlu0 %1360
        %v1364 = vsel %vm1324, %v1359, 0
        %1366 = vmatpush.msra.mxu0 0.0
        %1367 = vmatpush.msra.mxu0 0.0
        %1368 = vmatpush.msra.mxu0 0.0
        %1369 = vmatpush.msra.mxu0 0.0
        %1370 = vmatpush.msra.mxu0 0.0
        %1371 = vmatpush.msra.mxu0 0.0
        %1372 = vmatpush.msra.mxu0 0.0
        %1373 = vmatpush.msra.mxu0 0.0
        %1374 = vmatpush.msra.mxu0 0.0
        %1375 = vmatpush.msra.mxu0 0.0
        %1376 = vmatpush.msra.mxu0 0.0
        %1377 = vmatpush.msra.mxu0 0.0
        %1378 = vmatpush.msra.mxu0 0.0
        %1379 = vmatpush.msra.mxu0 0.0
        %1380 = vmatpush.msra.mxu0 0.0
        %1381 = vmatpush.msra.mxu0 %v1361
        %1382 = vmatmul.f32.gmra.mxu0 %v1364
        %v1383 = vpop.f32.mrf.mxu0
        %v1384 = vadd.f32 0.0, %v1383
        %1385 = vdwg.mxu0
        %1386 = vrot.lane.b32.xlu0 %v1314, 120
        %v1387 = vpop.permute.xlu0 %1386
        %1388 = vrot.lane.b32.xlu0 %v1314, 88
        %v1389 = vpop.permute.xlu0 %1388
        %v1390 = vsel %vm1324, %v1387, 0
        %v1392 = vsel %vm1324, %v1389, 0
        %1394 = vmatpush.xpose.msra.mxu0 0.0
        %1395 = vmatpush.xpose.msra.mxu0 0.0
        %1396 = vmatpush.xpose.msra.mxu0 0.0
        %1397 = vmatpush.xpose.msra.mxu0 0.0
        %1398 = vmatpush.xpose.msra.mxu0 0.0
        %1399 = vmatpush.xpose.msra.mxu0 0.0
        %1400 = vmatpush.xpose.msra.mxu0 0.0
        %1401 = vmatpush.xpose.msra.mxu0 0.0
        %1402 = vmatpush.xpose.msra.mxu0 0.0
        %1403 = vmatpush.xpose.msra.mxu0 0.0
        %1404 = vmatpush.xpose.msra.mxu0 0.0
        %1405 = vmatpush.xpose.msra.mxu0 0.0
        %1406 = vmatpush.xpose.msra.mxu0 0.0
        %1407 = vmatpush.xpose.msra.mxu0 0.0
        %1408 = vmatpush.xpose.msra.mxu0 0.0
        %1409 = vmatpush.xpose.msra.mxu0 %v1392
        %1410 = vmatmul.f32.gmra.mxu0 %v1390
        %v1411 = vpop.f32.mrf.mxu0
        %v1412 = vadd.f32 0.0, %v1411
        %1413 = vdwg.mxu0
        %v1414 = vsel %vm1324, %v1412, -inf
        %1415 = vmax.xlane.f32.xlu0 %v1414
        %v1416 = vpop.xlane.xlu0 %1415
        %v1417 = vsub.f32 %v1412, %v1416
        %v1418 = vmul.f32 %v1417, 1.442695
        %v1419 = vpow.pop %v1418
        %v1420 = vsel %vm1324, %v1419, 0.0
        %1421 = vadd.xlane.f32.xlu0 %v1420
        %v1422 = vpop.xlane.xlu0 %1421
        %v1423 = vrcp.pop %v1422
        %v1424 = vmul.f32 %v1419, %v1423
        %1425 = vrot.lane.b32.xlu0 %v1314, 56
        %v1426 = vpop.permute.xlu0 %1425
        %v1429 = vsel %vm1324, %v1424, 0
        %1431 = vmatpush.msra.mxu0 0.0
        %1432 = vmatpush.msra.mxu0 0.0
        %1433 = vmatpush.msra.mxu0 0.0
        %1434 = vmatpush.msra.mxu0 0.0
        %1435 = vmatpush.msra.mxu0 0.0
        %1436 = vmatpush.msra.mxu0 0.0
        %1437 = vmatpush.msra.mxu0 0.0
        %1438 = vmatpush.msra.mxu0 0.0
        %1439 = vmatpush.msra.mxu0 0.0
        %1440 = vmatpush.msra.mxu0 0.0
        %1441 = vmatpush.msra.mxu0 0.0
        %1442 = vmatpush.msra.mxu0 0.0
        %1443 = vmatpush.msra.mxu0 0.0
        %1444 = vmatpush.msra.mxu0 0.0
        %1445 = vmatpush.msra.mxu0 0.0
        %1446 = vmatpush.msra.mxu0 %v1426
        %1447 = vmatmul.f32.gmra.mxu0 %v1429
        %v1448 = vpop.f32.mrf.mxu0
        %v1449 = vadd.f32 0.0, %v1448
        %1450 = vdwg.mxu0
        %v1452 = vsel %vm1324, %v1449, 0
        %1454 = vmatpush.msra.mxu0 0.0
        %1455 = vmatpush.msra.mxu0 0.0
        %1456 = vmatpush.msra.mxu0 0.0
        %1457 = vmatpush.msra.mxu0 0.0
        %1458 = vmatpush.msra.mxu0 0.0
        %1459 = vmatpush.msra.mxu0 0.0
        %1460 = vmatpush.msra.mxu0 0.0
        %1461 = vmatpush.msra.mxu0 0.0
        %1462 = vmatpush.msra.mxu0 0.0
        %1463 = vmatpush.msra.mxu0 0.0
        %1464 = vmatpush.msra.mxu0 0.0
        %1465 = vmatpush.msra.mxu0 0.0
        %1466 = vmatpush.msra.mxu0 0.0
        %1467 = vmatpush.msra.mxu0 0.0
        %1468 = vmatpush.msra.mxu0 0.0
        %1469 = vmatpush.msra.mxu0 %v1317
        %1470 = vmatmul.f32.gmra.mxu0 %v1452
        %v1471 = vpop.f32.mrf.mxu0
        %v1472 = vadd.f32 0.0, %v1471
        %1473 = vdwg.mxu0
        %v1475 = vsel %vm1324, %v1384, 0
        %1477 = vmatpush.msra.mxu0 0.0
        %1478 = vmatpush.msra.mxu0 0.0
        %1479 = vmatpush.msra.mxu0 0.0
        %1480 = vmatpush.msra.mxu0 0.0
        %1481 = vmatpush.msra.mxu0 0.0
        %1482 = vmatpush.msra.mxu0 0.0
        %1483 = vmatpush.msra.mxu0 0.0
        %1484 = vmatpush.msra.mxu0 0.0
        %1485 = vmatpush.msra.mxu0 0.0
        %1486 = vmatpush.msra.mxu0 0.0
        %1487 = vmatpush.msra.mxu0 0.0
        %1488 = vmatpush.msra.mxu0 0.0
        %1489 = vmatpush.msra.mxu0 0.0
        %1490 = vmatpush.msra.mxu0 0.0
        %1491 = vmatpush.msra.mxu0 0.0
        %1492 = vmatpush.msra.mxu0 %v1316
        %1493 = vmatmul.f32.gmra.mxu0 %v1475
        %v1494 = vpop.f32.mrf.mxu0
        %v1495 = vadd.f32 %v1472, %v1494
        %1496 = vdwg.mxu0
        %1497 = vrot.lane.b32.xlu0 %v1314, 112
        %v1498 = vpop.permute.xlu0 %1497
        %1499 = vrot.lane.b32.xlu0 %v1314, 80
        %v1500 = vpop.permute.xlu0 %1499
        %v1501 = vsel %vm1324, %v1498, 0
        %v1503 = vsel %vm1324, %v1500, 0
        %1505 = vmatpush.xpose.msra.mxu0 0.0
        %1506 = vmatpush.xpose.msra.mxu0 0.0
        %1507 = vmatpush.xpose.msra.mxu0 0.0
        %1508 = vmatpush.xpose.msra.mxu0 0.0
        %1509 = vmatpush.xpose.msra.mxu0 0.0
        %1510 = vmatpush.xpose.msra.mxu0 0.0
        %1511 = vmatpush.xpose.msra.mxu0 0.0
        %1512 = vmatpush.xpose.msra.mxu0 0.0
        %1513 = vmatpush.xpose.msra.mxu0 0.0
        %1514 = vmatpush.xpose.msra.mxu0 0.0
        %1515 = vmatpush.xpose.msra.mxu0 0.0
        %1516 = vmatpush.xpose.msra.mxu0 0.0
        %1517 = vmatpush.xpose.msra.mxu0 0.0
        %1518 = vmatpush.xpose.msra.mxu0 0.0
        %1519 = vmatpush.xpose.msra.mxu0 0.0
        %1520 = vmatpush.xpose.msra.mxu0 %v1503
        %1521 = vmatmul.f32.gmra.mxu0 %v1501
        %v1522 = vpop.f32.mrf.mxu0
        %v1523 = vadd.f32 0.0, %v1522
        %1524 = vdwg.mxu0
        %v1525 = vsel %vm1324, %v1523, -inf
        %1526 = vmax.xlane.f32.xlu0 %v1525
        %v1527 = vpop.xlane.xlu0 %1526
        %v1528 = vsub.f32 %v1523, %v1527
        %v1529 = vmul.f32 %v1528, 1.442695
        %v1530 = vpow.pop %v1529
        %v1531 = vsel %vm1324, %v1530, 0.0
        %1532 = vadd.xlane.f32.xlu0 %v1531
        %v1533 = vpop.xlane.xlu0 %1532
        %v1534 = vrcp.pop %v1533
        %v1535 = vmul.f32 %v1530, %v1534
        %1536 = vrot.lane.b32.xlu0 %v1314, 48
        %v1537 = vpop.permute.xlu0 %1536
        %v1540 = vsel %vm1324, %v1535, 0
        %1542 = vmatpush.msra.mxu0 0.0
        %1543 = vmatpush.msra.mxu0 0.0
        %1544 = vmatpush.msra.mxu0 0.0
        %1545 = vmatpush.msra.mxu0 0.0
        %1546 = vmatpush.msra.mxu0 0.0
        %1547 = vmatpush.msra.mxu0 0.0
        %1548 = vmatpush.msra.mxu0 0.0
        %1549 = vmatpush.msra.mxu0 0.0
        %1550 = vmatpush.msra.mxu0 0.0
        %1551 = vmatpush.msra.mxu0 0.0
        %1552 = vmatpush.msra.mxu0 0.0
        %1553 = vmatpush.msra.mxu0 0.0
        %1554 = vmatpush.msra.mxu0 0.0
        %1555 = vmatpush.msra.mxu0 0.0
        %1556 = vmatpush.msra.mxu0 0.0
        %1557 = vmatpush.msra.mxu0 %v1537
        %1558 = vmatmul.f32.gmra.mxu0 %v1540
        %v1559 = vpop.f32.mrf.mxu0
        %v1560 = vadd.f32 0.0, %v1559
        %1561 = vdwg.mxu0
        %v1563 = vsel %vm1324, %v1560, 0
        %1565 = vmatpush.msra.mxu0 0.0
        %1566 = vmatpush.msra.mxu0 0.0
        %1567 = vmatpush.msra.mxu0 0.0
        %1568 = vmatpush.msra.mxu0 0.0
        %1569 = vmatpush.msra.mxu0 0.0
        %1570 = vmatpush.msra.mxu0 0.0
        %1571 = vmatpush.msra.mxu0 0.0
        %1572 = vmatpush.msra.mxu0 0.0
        %1573 = vmatpush.msra.mxu0 0.0
        %1574 = vmatpush.msra.mxu0 0.0
        %1575 = vmatpush.msra.mxu0 0.0
        %1576 = vmatpush.msra.mxu0 0.0
        %1577 = vmatpush.msra.mxu0 0.0
        %1578 = vmatpush.msra.mxu0 0.0
        %1579 = vmatpush.msra.mxu0 0.0
        %1580 = vmatpush.msra.mxu0 %v1318
        %1581 = vmatmul.f32.gmra.mxu0 %v1563
        %v1582 = vpop.f32.mrf.mxu0
        %v1583 = vadd.f32 0.0, %v1582
        %1584 = vdwg.mxu0
        %v1585 = vadd.f32 %v1495, %v1583
        %1586 = vrot.lane.b32.xlu0 %v1314, 104
        %v1587 = vpop.permute.xlu0 %1586
        %1588 = vrot.lane.b32.xlu0 %v1314, 72
        %v1589 = vpop.permute.xlu0 %1588
        %v1590 = vsel %vm1324, %v1587, 0
        %v1592 = vsel %vm1324, %v1589, 0
        %1594 = vmatpush.xpose.msra.mxu0 0.0
        %1595 = vmatpush.xpose.msra.mxu0 0.0
        %1596 = vmatpush.xpose.msra.mxu0 0.0
        %1597 = vmatpush.xpose.msra.mxu0 0.0
        %1598 = vmatpush.xpose.msra.mxu0 0.0
        %1599 = vmatpush.xpose.msra.mxu0 0.0
        %1600 = vmatpush.xpose.msra.mxu0 0.0
        %1601 = vmatpush.xpose.msra.mxu0 0.0
        %1602 = vmatpush.xpose.msra.mxu0 0.0
        %1603 = vmatpush.xpose.msra.mxu0 0.0
        %1604 = vmatpush.xpose.msra.mxu0 0.0
        %1605 = vmatpush.xpose.msra.mxu0 0.0
        %1606 = vmatpush.xpose.msra.mxu0 0.0
        %1607 = vmatpush.xpose.msra.mxu0 0.0
        %1608 = vmatpush.xpose.msra.mxu0 0.0
        %1609 = vmatpush.xpose.msra.mxu0 %v1592
        %1610 = vmatmul.f32.gmra.mxu0 %v1590
        %v1611 = vpop.f32.mrf.mxu0
        %v1612 = vadd.f32 0.0, %v1611
        %1613 = vdwg.mxu0
        %v1614 = vsel %vm1324, %v1612, -inf
        %1615 = vmax.xlane.f32.xlu0 %v1614
        %v1616 = vpop.xlane.xlu0 %1615
        %v1617 = vsub.f32 %v1612, %v1616
        %v1618 = vmul.f32 %v1617, 1.442695
        %v1619 = vpow.pop %v1618
        %v1620 = vsel %vm1324, %v1619, 0.0
        %1621 = vadd.xlane.f32.xlu0 %v1620
        %v1622 = vpop.xlane.xlu0 %1621
        %v1623 = vrcp.pop %v1622
        %v1624 = vmul.f32 %v1619, %v1623
        %1625 = vrot.lane.b32.xlu0 %v1314, 40
        %v1626 = vpop.permute.xlu0 %1625
        %v1629 = vsel %vm1324, %v1624, 0
        %1631 = vmatpush.msra.mxu0 0.0
        %1632 = vmatpush.msra.mxu0 0.0
        %1633 = vmatpush.msra.mxu0 0.0
        %1634 = vmatpush.msra.mxu0 0.0
        %1635 = vmatpush.msra.mxu0 0.0
        %1636 = vmatpush.msra.mxu0 0.0
        %1637 = vmatpush.msra.mxu0 0.0
        %1638 = vmatpush.msra.mxu0 0.0
        %1639 = vmatpush.msra.mxu0 0.0
        %1640 = vmatpush.msra.mxu0 0.0
        %1641 = vmatpush.msra.mxu0 0.0
        %1642 = vmatpush.msra.mxu0 0.0
        %1643 = vmatpush.msra.mxu0 0.0
        %1644 = vmatpush.msra.mxu0 0.0
        %1645 = vmatpush.msra.mxu0 0.0
        %1646 = vmatpush.msra.mxu0 %v1626
        %1647 = vmatmul.f32.gmra.mxu0 %v1629
        %v1648 = vpop.f32.mrf.mxu0
        %v1649 = vadd.f32 0.0, %v1648
        %1650 = vdwg.mxu0
        %v1652 = vsel %vm1324, %v1649, 0
        %1654 = vmatpush.msra.mxu0 0.0
        %1655 = vmatpush.msra.mxu0 0.0
        %1656 = vmatpush.msra.mxu0 0.0
        %1657 = vmatpush.msra.mxu0 0.0
        %1658 = vmatpush.msra.mxu0 0.0
        %1659 = vmatpush.msra.mxu0 0.0
        %1660 = vmatpush.msra.mxu0 0.0
        %1661 = vmatpush.msra.mxu0 0.0
        %1662 = vmatpush.msra.mxu0 0.0
        %1663 = vmatpush.msra.mxu0 0.0
        %1664 = vmatpush.msra.mxu0 0.0
        %1665 = vmatpush.msra.mxu0 0.0
        %1666 = vmatpush.msra.mxu0 0.0
        %1667 = vmatpush.msra.mxu0 0.0
        %1668 = vmatpush.msra.mxu0 0.0
        %1669 = vmatpush.msra.mxu0 %v1319
        %1670 = vmatmul.f32.gmra.mxu0 %v1652
        %v1671 = vpop.f32.mrf.mxu0
        %v1672 = vadd.f32 0.0, %v1671
        %1673 = vdwg.mxu0
        %v1674 = vadd.f32 %v1585, %v1672
        %v1676 = vperm.slane %v1320, 0
        %v1678 = vadd.f32 %v1674, %v1676
        %v1679 = vadd.f32 %v1282, %v1678
        %v1680 = vsel %vm1292, %v1679, 0.0
        %1681 = vadd.xlane.f32.xlu0 %v1680
        %v1682 = vpop.xlane.xlu0 %1681
        %v1683 = vrcp.pop 32.0
        %v1684 = vmul.f32 32.0, %v1683
        %v1685 = vsub.f32 1.0, %v1684
        %v1686 = vmul.f32 %v1683, %v1685
        %v1687 = vadd.f32 %v1683, %v1686
        %vm1688 = vweird.f32 %v1683
        %v1689 = vsel %vm1688, %v1683, %v1687
        %v1690 = vmul.f32 %v1682, %v1689
        %v1691 = vsub.f32 %v1679, %v1690
        %v1692 = vmul.f32 %v1691, %v1691
        %v1693 = vsel %vm1292, %v1692, 0.0
        %1694 = vadd.xlane.f32.xlu0 %v1693
        %v1695 = vpop.xlane.xlu0 %1694
        %v1696 = vmul.f32 %v1695, %v1689
        %v1697 = vadd.f32 %v1696, 1e-05
        %v1698 = vrsqrt.pop %v1697
        %v1699 = vmul.f32 %v1698, %v1697
        %v1700 = vmul.f32 %v1699, %v1698
        %v1701 = vmul.f32 0.5, %v1700
        %v1702 = vsub.f32 1.5, %v1701
        %v1703 = vmul.f32 %v1698, %v1702
        %vm1704 = vweird.f32 %v1697
        %vm1705 = vweird.f32 %v1698
        %vm1706 = vmor %vm1704, %vm1705
        %v1707 = vsel %vm1706, %v1698, %v1703
        %v1708 = vmul.f32 %v1691, %v1707
        %v1709 = vld [vmem:[%s1245] sm:$0x1]
        %v1711 = vperm.slane %v1709, 0
        %v1713 = vmul.f32 %v1708, %v1711
        %v1714 = vld [vmem:[%s1248] sm:$0x1]
        %v1716 = vperm.slane %v1714, 0
        %v1718 = vadd.f32 %v1713, %v1716
        %v1719 = vld [vmem:[%s1253] sm:$0xff]
        %v1720 = vld [vmem:[%s1253 + $0x8] sm:$0xff]
        %v1721 = vld [vmem:[%s1253 + $0x10] sm:$0xff]
        %v1722 = vld [vmem:[%s1253 + $0x18] sm:$0xff]
        %v1723 = vld [vmem:[%s1256] sm:$0x1]
        %v1725 = vperm.slane %v1723, 0
        %v1728 = vsel %vm1292, %v1718, 0
        %1730 = vmatpush.msra.mxu0 0.0
        %1731 = vmatpush.msra.mxu0 0.0
        %1732 = vmatpush.msra.mxu0 0.0
        %1733 = vmatpush.msra.mxu0 0.0
        %1734 = vmatpush.msra.mxu0 0.0
        %1735 = vmatpush.msra.mxu0 0.0
        %1736 = vmatpush.msra.mxu0 0.0
        %1737 = vmatpush.msra.mxu0 0.0
        %1738 = vmatpush.msra.mxu0 0.0
        %1739 = vmatpush.msra.mxu0 0.0
        %1740 = vmatpush.msra.mxu0 0.0
        %1741 = vmatpush.msra.mxu0 0.0
        %1742 = vmatpush.msra.mxu0 %v1722
        %1743 = vmatpush.msra.mxu0 %v1721
        %1744 = vmatpush.msra.mxu0 %v1720
        %1745 = vmatpush.msra.mxu0 %v1719
        %1746 = vmatmul.f32.gmra.mxu0 %v1728
        %v1747 = vpop.f32.mrf.mxu0
        %v1748 = vadd.f32 %v1725, %v1747
        %1749 = vdwg.mxu0
        %v1750 = vld [vmem:[%s997] sm:$0xff]
        %v1751 = vld [vmem:[%s997 + $0x8] sm:$0xff]
        %v1752 = vld [vmem:[%s997 + $0x10] sm:$0xff]
        %v1753 = vld [vmem:[%s997 + $0x18] sm:$0xff]
        %v1754 = vld [vmem:[%s1006] sm:$0x1]
        %v1756 = vperm.slane %v1754, 0
        %v1759 = vsel %vm1292, %v1283, 0
        %1761 = vmatpush.msra.mxu0 0.0
        %1762 = vmatpush.msra.mxu0 0.0
        %1763 = vmatpush.msra.mxu0 0.0
        %1764 = vmatpush.msra.mxu0 0.0
        %1765 = vmatpush.msra.mxu0 0.0
        %1766 = vmatpush.msra.mxu0 0.0
        %1767 = vmatpush.msra.mxu0 0.0
        %1768 = vmatpush.msra.mxu0 0.0
        %1769 = vmatpush.msra.mxu0 0.0
        %1770 = vmatpush.msra.mxu0 0.0
        %1771 = vmatpush.msra.mxu0 0.0
        %1772 = vmatpush.msra.mxu0 0.0
        %1773 = vmatpush.msra.mxu0 %v1753
        %1774 = vmatpush.msra.mxu0 %v1752
        %1775 = vmatpush.msra.mxu0 %v1751
        %1776 = vmatpush.msra.mxu0 %v1750
        %1777 = vmatmul.f32.gmra.mxu0 %v1759
        %v1778 = vpop.f32.mrf.mxu0
        %v1779 = vadd.f32 %v1756, %v1778
        %1780 = vdwg.mxu0
        %v1781 = vld [vmem:[%s1016] sm:$0xff]
        %v1782 = vld [vmem:[%s1016 + $0x8] sm:$0xff]
        %v1783 = vld [vmem:[%s1016 + $0x10] sm:$0xff]
        %v1784 = vld [vmem:[%s1016 + $0x18] sm:$0xff]
        %v1785 = vld [vmem:[%s1025] sm:$0x1]
        %v1787 = vsel %vm1324, %v1748, 0
        %v1790 = vsel %vm1324, %v1779, 0
        %1792 = vmatpush.xpose.msra.mxu0 0.0
        %1793 = vmatpush.xpose.msra.mxu0 0.0
        %1794 = vmatpush.xpose.msra.mxu0 0.0
        %1795 = vmatpush.xpose.msra.mxu0 0.0
        %1796 = vmatpush.xpose.msra.mxu0 0.0
        %1797 = vmatpush.xpose.msra.mxu0 0.0
        %1798 = vmatpush.xpose.msra.mxu0 0.0
        %1799 = vmatpush.xpose.msra.mxu0 0.0
        %1800 = vmatpush.xpose.msra.mxu0 0.0
        %1801 = vmatpush.xpose.msra.mxu0 0.0
        %1802 = vmatpush.xpose.msra.mxu0 0.0
        %1803 = vmatpush.xpose.msra.mxu0 0.0
        %1804 = vmatpush.xpose.msra.mxu0 0.0
        %1805 = vmatpush.xpose.msra.mxu0 0.0
        %1806 = vmatpush.xpose.msra.mxu0 0.0
        %1807 = vmatpush.xpose.msra.mxu0 %v1790
        %1808 = vmatmul.f32.gmra.mxu0 %v1787
        %v1809 = vpop.f32.mrf.mxu0
        %v1810 = vadd.f32 0.0, %v1809
        %1811 = vdwg.mxu0
        %v1812 = vsel %vm1324, %v1810, -inf
        %1813 = vmax.xlane.f32.xlu0 %v1812
        %v1814 = vpop.xlane.xlu0 %1813
        %v1815 = vsub.f32 %v1810, %v1814
        %v1816 = vmul.f32 %v1815, 1.442695
        %v1817 = vpow.pop %v1816
        %v1818 = vsel %vm1324, %v1817, 0.0
        %1819 = vadd.xlane.f32.xlu0 %v1818
        %v1820 = vpop.xlane.xlu0 %1819
        %v1821 = vrcp.pop %v1820
        %v1822 = vmul.f32 %v1817, %v1821
        %1823 = vrot.lane.b32.xlu0 %v1779, 96
        %v1824 = vpop.permute.xlu0 %1823
        %v1827 = vsel %vm1324, %v1822, 0
        %1829 = vmatpush.msra.mxu0 0.0
        %1830 = vmatpush.msra.mxu0 0.0
        %1831 = vmatpush.msra.mxu0 0.0
        %1832 = vmatpush.msra.mxu0 0.0
        %1833 = vmatpush.msra.mxu0 0.0
        %1834 = vmatpush.msra.mxu0 0.0
        %1835 = vmatpush.msra.mxu0 0.0
        %1836 = vmatpush.msra.mxu0 0.0
        %1837 = vmatpush.msra.mxu0 0.0
        %1838 = vmatpush.msra.mxu0 0.0
        %1839 = vmatpush.msra.mxu0 0.0
        %1840 = vmatpush.msra.mxu0 0.0
        %1841 = vmatpush.msra.mxu0 0.0
        %1842 = vmatpush.msra.mxu0 0.0
        %1843 = vmatpush.msra.mxu0 0.0
        %1844 = vmatpush.msra.mxu0 %v1824
        %1845 = vmatmul.f32.gmra.mxu0 %v1827
        %v1846 = vpop.f32.mrf.mxu0
        %v1847 = vadd.f32 0.0, %v1846
        %1848 = vdwg.mxu0
        %1849 = vrot.lane.b32.xlu0 %v1748, 120
        %v1850 = vpop.permute.xlu0 %1849
        %1851 = vrot.lane.b32.xlu0 %v1779, 120
        %v1852 = vpop.permute.xlu0 %1851
        %v1853 = vsel %vm1324, %v1850, 0
        %v1855 = vsel %vm1324, %v1852, 0
        %1857 = vmatpush.xpose.msra.mxu0 0.0
        %1858 = vmatpush.xpose.msra.mxu0 0.0
        %1859 = vmatpush.xpose.msra.mxu0 0.0
        %1860 = vmatpush.xpose.msra.mxu0 0.0
        %1861 = vmatpush.xpose.msra.mxu0 0.0
        %1862 = vmatpush.xpose.msra.mxu0 0.0
        %1863 = vmatpush.xpose.msra.mxu0 0.0
        %1864 = vmatpush.xpose.msra.mxu0 0.0
        %1865 = vmatpush.xpose.msra.mxu0 0.0
        %1866 = vmatpush.xpose.msra.mxu0 0.0
        %1867 = vmatpush.xpose.msra.mxu0 0.0
        %1868 = vmatpush.xpose.msra.mxu0 0.0
        %1869 = vmatpush.xpose.msra.mxu0 0.0
        %1870 = vmatpush.xpose.msra.mxu0 0.0
        %1871 = vmatpush.xpose.msra.mxu0 0.0
        %1872 = vmatpush.xpose.msra.mxu0 %v1855
        %1873 = vmatmul.f32.gmra.mxu0 %v1853
        %v1874 = vpop.f32.mrf.mxu0
        %v1875 = vadd.f32 0.0, %v1874
        %1876 = vdwg.mxu0
        %v1877 = vsel %vm1324, %v1875, -inf
        %1878 = vmax.xlane.f32.xlu0 %v1877
        %v1879 = vpop.xlane.xlu0 %1878
        %v1880 = vsub.f32 %v1875, %v1879
        %v1881 = vmul.f32 %v1880, 1.442695
        %v1882 = vpow.pop %v1881
        %v1883 = vsel %vm1324, %v1882, 0.0
        %1884 = vadd.xlane.f32.xlu0 %v1883
        %v1885 = vpop.xlane.xlu0 %1884
        %v1886 = vrcp.pop %v1885
        %v1887 = vmul.f32 %v1882, %v1886
        %1888 = vrot.lane.b32.xlu0 %v1779, 88
        %v1889 = vpop.permute.xlu0 %1888
        %v1892 = vsel %vm1324, %v1887, 0
        %1894 = vmatpush.msra.mxu0 0.0
        %1895 = vmatpush.msra.mxu0 0.0
        %1896 = vmatpush.msra.mxu0 0.0
        %1897 = vmatpush.msra.mxu0 0.0
        %1898 = vmatpush.msra.mxu0 0.0
        %1899 = vmatpush.msra.mxu0 0.0
        %1900 = vmatpush.msra.mxu0 0.0
        %1901 = vmatpush.msra.mxu0 0.0
        %1902 = vmatpush.msra.mxu0 0.0
        %1903 = vmatpush.msra.mxu0 0.0
        %1904 = vmatpush.msra.mxu0 0.0
        %1905 = vmatpush.msra.mxu0 0.0
        %1906 = vmatpush.msra.mxu0 0.0
        %1907 = vmatpush.msra.mxu0 0.0
        %1908 = vmatpush.msra.mxu0 0.0
        %1909 = vmatpush.msra.mxu0 %v1889
        %1910 = vmatmul.f32.gmra.mxu0 %v1892
        %v1911 = vpop.f32.mrf.mxu0
        %v1912 = vadd.f32 0.0, %v1911
        %1913 = vdwg.mxu0
        %v1915 = vsel %vm1324, %v1912, 0
        %1917 = vmatpush.msra.mxu0 0.0
        %1918 = vmatpush.msra.mxu0 0.0
        %1919 = vmatpush.msra.mxu0 0.0
        %1920 = vmatpush.msra.mxu0 0.0
        %1921 = vmatpush.msra.mxu0 0.0
        %1922 = vmatpush.msra.mxu0 0.0
        %1923 = vmatpush.msra.mxu0 0.0
        %1924 = vmatpush.msra.mxu0 0.0
        %1925 = vmatpush.msra.mxu0 0.0
        %1926 = vmatpush.msra.mxu0 0.0
        %1927 = vmatpush.msra.mxu0 0.0
        %1928 = vmatpush.msra.mxu0 0.0
        %1929 = vmatpush.msra.mxu0 0.0
        %1930 = vmatpush.msra.mxu0 0.0
        %1931 = vmatpush.msra.mxu0 0.0
        %1932 = vmatpush.msra.mxu0 %v1782
        %1933 = vmatmul.f32.gmra.mxu0 %v1915
        %v1934 = vpop.f32.mrf.mxu0
        %v1935 = vadd.f32 0.0, %v1934
        %1936 = vdwg.mxu0
        %v1938 = vsel %vm1324, %v1847, 0
        %1940 = vmatpush.msra.mxu0 0.0
        %1941 = vmatpush.msra.mxu0 0.0
        %1942 = vmatpush.msra.mxu0 0.0
        %1943 = vmatpush.msra.mxu0 0.0
        %1944 = vmatpush.msra.mxu0 0.0
        %1945 = vmatpush.msra.mxu0 0.0
        %1946 = vmatpush.msra.mxu0 0.0
        %1947 = vmatpush.msra.mxu0 0.0
        %1948 = vmatpush.msra.mxu0 0.0
        %1949 = vmatpush.msra.mxu0 0.0
        %1950 = vmatpush.msra.mxu0 0.0
        %1951 = vmatpush.msra.mxu0 0.0
        %1952 = vmatpush.msra.mxu0 0.0
        %1953 = vmatpush.msra.mxu0 0.0
        %1954 = vmatpush.msra.mxu0 0.0
        %1955 = vmatpush.msra.mxu0 %v1781
        %1956 = vmatmul.f32.gmra.mxu0 %v1938
        %v1957 = vpop.f32.mrf.mxu0
        %v1958 = vadd.f32 %v1935, %v1957
        %1959 = vdwg.mxu0
        %1960 = vrot.lane.b32.xlu0 %v1748, 112
        %v1961 = vpop.permute.xlu0 %1960
        %1962 = vrot.lane.b32.xlu0 %v1779, 112
        %v1963 = vpop.permute.xlu0 %1962
        %v1964 = vsel %vm1324, %v1961, 0
        %v1966 = vsel %vm1324, %v1963, 0
        %1968 = vmatpush.xpose.msra.mxu0 0.0
        %1969 = vmatpush.xpose.msra.mxu0 0.0
        %1970 = vmatpush.xpose.msra.mxu0 0.0
        %1971 = vmatpush.xpose.msra.mxu0 0.0
        %1972 = vmatpush.xpose.msra.mxu0 0.0
        %1973 = vmatpush.xpose.msra.mxu0 0.0
        %1974 = vmatpush.xpose.msra.mxu0 0.0
        %1975 = vmatpush.xpose.msra.mxu0 0.0
        %1976 = vmatpush.xpose.msra.mxu0 0.0
        %1977 = vmatpush.xpose.msra.mxu0 0.0
        %1978 = vmatpush.xpose.msra.mxu0 0.0
        %1979 = vmatpush.xpose.msra.mxu0 0.0
        %1980 = vmatpush.xpose.msra.mxu0 0.0
        %1981 = vmatpush.xpose.msra.mxu0 0.0
        %1982 = vmatpush.xpose.msra.mxu0 0.0
        %1983 = vmatpush.xpose.msra.mxu0 %v1966
        %1984 = vmatmul.f32.gmra.mxu0 %v1964
        %v1985 = vpop.f32.mrf.mxu0
        %v1986 = vadd.f32 0.0, %v1985
        %1987 = vdwg.mxu0
        %v1988 = vsel %vm1324, %v1986, -inf
        %1989 = vmax.xlane.f32.xlu0 %v1988
        %v1990 = vpop.xlane.xlu0 %1989
        %v1991 = vsub.f32 %v1986, %v1990
        %v1992 = vmul.f32 %v1991, 1.442695
        %v1993 = vpow.pop %v1992
        %v1994 = vsel %vm1324, %v1993, 0.0
        %1995 = vadd.xlane.f32.xlu0 %v1994
        %v1996 = vpop.xlane.xlu0 %1995
        %v1997 = vrcp.pop %v1996
        %v1998 = vmul.f32 %v1993, %v1997
        %1999 = vrot.lane.b32.xlu0 %v1779, 80
        %v2000 = vpop.permute.xlu0 %1999
        %v2003 = vsel %vm1324, %v1998, 0
        %2005 = vmatpush.msra.mxu0 0.0
        %2006 = vmatpush.msra.mxu0 0.0
        %2007 = vmatpush.msra.mxu0 0.0
        %2008 = vmatpush.msra.mxu0 0.0
        %2009 = vmatpush.msra.mxu0 0.0
        %2010 = vmatpush.msra.mxu0 0.0
        %2011 = vmatpush.msra.mxu0 0.0
        %2012 = vmatpush.msra.mxu0 0.0
        %2013 = vmatpush.msra.mxu0 0.0
        %2014 = vmatpush.msra.mxu0 0.0
        %2015 = vmatpush.msra.mxu0 0.0
        %2016 = vmatpush.msra.mxu0 0.0
        %2017 = vmatpush.msra.mxu0 0.0
        %2018 = vmatpush.msra.mxu0 0.0
        %2019 = vmatpush.msra.mxu0 0.0
        %2020 = vmatpush.msra.mxu0 %v2000
        %2021 = vmatmul.f32.gmra.mxu0 %v2003
        %v2022 = vpop.f32.mrf.mxu0
        %v2023 = vadd.f32 0.0, %v2022
        %2024 = vdwg.mxu0
        %v2026 = vsel %vm1324, %v2023, 0
        %2028 = vmatpush.msra.mxu0 0.0
        %2029 = vmatpush.msra.mxu0 0.0
        %2030 = vmatpush.msra.mxu0 0.0
        %2031 = vmatpush.msra.mxu0 0.0
        %2032 = vmatpush.msra.mxu0 0.0
        %2033 = vmatpush.msra.mxu0 0.0
        %2034 = vmatpush.msra.mxu0 0.0
        %2035 = vmatpush.msra.mxu0 0.0
        %2036 = vmatpush.msra.mxu0 0.0
        %2037 = vmatpush.msra.mxu0 0.0
        %2038 = vmatpush.msra.mxu0 0.0
        %2039 = vmatpush.msra.mxu0 0.0
        %2040 = vmatpush.msra.mxu0 0.0
        %2041 = vmatpush.msra.mxu0 0.0
        %2042 = vmatpush.msra.mxu0 0.0
        %2043 = vmatpush.msra.mxu0 %v1783
        %2044 = vmatmul.f32.gmra.mxu0 %v2026
        %v2045 = vpop.f32.mrf.mxu0
        %v2046 = vadd.f32 0.0, %v2045
        %2047 = vdwg.mxu0
        %v2048 = vadd.f32 %v1958, %v2046
        %2049 = vrot.lane.b32.xlu0 %v1748, 104
        %v2050 = vpop.permute.xlu0 %2049
        %2051 = vrot.lane.b32.xlu0 %v1779, 104
        %v2052 = vpop.permute.xlu0 %2051
        %v2053 = vsel %vm1324, %v2050, 0
        %v2055 = vsel %vm1324, %v2052, 0
        %2057 = vmatpush.xpose.msra.mxu0 0.0
        %2058 = vmatpush.xpose.msra.mxu0 0.0
        %2059 = vmatpush.xpose.msra.mxu0 0.0
        %2060 = vmatpush.xpose.msra.mxu0 0.0
        %2061 = vmatpush.xpose.msra.mxu0 0.0
        %2062 = vmatpush.xpose.msra.mxu0 0.0
        %2063 = vmatpush.xpose.msra.mxu0 0.0
        %2064 = vmatpush.xpose.msra.mxu0 0.0
        %2065 = vmatpush.xpose.msra.mxu0 0.0
        %2066 = vmatpush.xpose.msra.mxu0 0.0
        %2067 = vmatpush.xpose.msra.mxu0 0.0
        %2068 = vmatpush.xpose.msra.mxu0 0.0
        %2069 = vmatpush.xpose.msra.mxu0 0.0
        %2070 = vmatpush.xpose.msra.mxu0 0.0
        %2071 = vmatpush.xpose.msra.mxu0 0.0
        %2072 = vmatpush.xpose.msra.mxu0 %v2055
        %2073 = vmatmul.f32.gmra.mxu0 %v2053
        %v2074 = vpop.f32.mrf.mxu0
        %v2075 = vadd.f32 0.0, %v2074
        %2076 = vdwg.mxu0
        %v2077 = vsel %vm1324, %v2075, -inf
        %2078 = vmax.xlane.f32.xlu0 %v2077
        %v2079 = vpop.xlane.xlu0 %2078
        %v2080 = vsub.f32 %v2075, %v2079
        %v2081 = vmul.f32 %v2080, 1.442695
        %v2082 = vpow.pop %v2081
        %v2083 = vsel %vm1324, %v2082, 0.0
        %2084 = vadd.xlane.f32.xlu0 %v2083
        %v2085 = vpop.xlane.xlu0 %2084
        %v2086 = vrcp.pop %v2085
        %v2087 = vmul.f32 %v2082, %v2086
        %2088 = vrot.lane.b32.xlu0 %v1779, 72
        %v2089 = vpop.permute.xlu0 %2088
        %v2092 = vsel %vm1324, %v2087, 0
        %2094 = vmatpush.msra.mxu0 0.0
        %2095 = vmatpush.msra.mxu0 0.0
        %2096 = vmatpush.msra.mxu0 0.0
        %2097 = vmatpush.msra.mxu0 0.0
        %2098 = vmatpush.msra.mxu0 0.0
        %2099 = vmatpush.msra.mxu0 0.0
        %2100 = vmatpush.msra.mxu0 0.0
        %2101 = vmatpush.msra.mxu0 0.0
        %2102 = vmatpush.msra.mxu0 0.0
        %2103 = vmatpush.msra.mxu0 0.0
        %2104 = vmatpush.msra.mxu0 0.0
        %2105 = vmatpush.msra.mxu0 0.0
        %2106 = vmatpush.msra.mxu0 0.0
        %2107 = vmatpush.msra.mxu0 0.0
        %2108 = vmatpush.msra.mxu0 0.0
        %2109 = vmatpush.msra.mxu0 %v2089
        %2110 = vmatmul.f32.gmra.mxu0 %v2092
        %v2111 = vpop.f32.mrf.mxu0
        %v2112 = vadd.f32 0.0, %v2111
        %2113 = vdwg.mxu0
        %v2115 = vsel %vm1324, %v2112, 0
        %2117 = vmatpush.msra.mxu0 0.0
        %2118 = vmatpush.msra.mxu0 0.0
        %2119 = vmatpush.msra.mxu0 0.0
        %2120 = vmatpush.msra.mxu0 0.0
        %2121 = vmatpush.msra.mxu0 0.0
        %2122 = vmatpush.msra.mxu0 0.0
        %2123 = vmatpush.msra.mxu0 0.0
        %2124 = vmatpush.msra.mxu0 0.0
        %2125 = vmatpush.msra.mxu0 0.0
        %2126 = vmatpush.msra.mxu0 0.0
        %2127 = vmatpush.msra.mxu0 0.0
        %2128 = vmatpush.msra.mxu0 0.0
        %2129 = vmatpush.msra.mxu0 0.0
        %2130 = vmatpush.msra.mxu0 0.0
        %2131 = vmatpush.msra.mxu0 0.0
        %2132 = vmatpush.msra.mxu0 %v1784
        %2133 = vmatmul.f32.gmra.mxu0 %v2115
        %v2134 = vpop.f32.mrf.mxu0
        %v2135 = vadd.f32 0.0, %v2134
        %2136 = vdwg.mxu0
        %v2137 = vadd.f32 %v2048, %v2135
        %v2139 = vperm.slane %v1785, 0
        %v2141 = vadd.f32 %v2137, %v2139
        %v2142 = vadd.f32 %v1718, %v2141
        %v2143 = vsel %vm1292, %v2142, 0.0
        %2144 = vadd.xlane.f32.xlu0 %v2143
        %v2145 = vpop.xlane.xlu0 %2144
        %v2146 = vmul.f32 %v2145, %v1689
        %v2147 = vsub.f32 %v2142, %v2146
        %v2148 = vmul.f32 %v2147, %v2147
        %v2149 = vsel %vm1292, %v2148, 0.0
        %2150 = vadd.xlane.f32.xlu0 %v2149
        %v2151 = vpop.xlane.xlu0 %2150
        %v2152 = vmul.f32 %v2151, %v1689
        %v2153 = vadd.f32 %v2152, 1e-05
        %v2154 = vrsqrt.pop %v2153
        %v2155 = vmul.f32 %v2154, %v2153
        %v2156 = vmul.f32 %v2155, %v2154
        %v2157 = vmul.f32 0.5, %v2156
        %v2158 = vsub.f32 1.5, %v2157
        %v2159 = vmul.f32 %v2154, %v2158
        %vm2160 = vweird.f32 %v2153
        %vm2161 = vweird.f32 %v2154
        %vm2162 = vmor %vm2160, %vm2161
        %v2163 = vsel %vm2162, %v2154, %v2159
        %v2164 = vmul.f32 %v2147, %v2163
        %v2165 = vld [vmem:[%s1259] sm:$0x1]
        %v2167 = vperm.slane %v2165, 0
        %v2169 = vmul.f32 %v2164, %v2167
        %v2170 = vld [vmem:[%s1262] sm:$0x1]
        %v2172 = vperm.slane %v2170, 0
        %v2174 = vadd.f32 %v2169, %v2172
        %v2175 = vld [vmem:[%s1035] sm:$0xff]
        %v2176 = vld [vmem:[%s1035 + $0x8] sm:$0xff]
        %v2177 = vld [vmem:[%s1035 + $0x10] sm:$0xff]
        %v2178 = vld [vmem:[%s1035 + $0x18] sm:$0xff]
        %v2179 = vld [vmem:[%s1044] sm:$0x1]
        %v2181 = vperm.slane %v2179, 0
        %v2184 = vsel %vm1292, %v2174, 0
        %2186 = vmatpush.msra.mxu0 0.0
        %2187 = vmatpush.msra.mxu0 0.0
        %2188 = vmatpush.msra.mxu0 0.0
        %2189 = vmatpush.msra.mxu0 0.0
        %2190 = vmatpush.msra.mxu0 0.0
        %2191 = vmatpush.msra.mxu0 0.0
        %2192 = vmatpush.msra.mxu0 0.0
        %2193 = vmatpush.msra.mxu0 0.0
        %2194 = vmatpush.msra.mxu0 0.0
        %2195 = vmatpush.msra.mxu0 0.0
        %2196 = vmatpush.msra.mxu0 0.0
        %2197 = vmatpush.msra.mxu0 0.0
        %2198 = vmatpush.msra.mxu0 %v2178
        %2199 = vmatpush.msra.mxu0 %v2177
        %2200 = vmatpush.msra.mxu0 %v2176
        %2201 = vmatpush.msra.mxu0 %v2175
        %2202 = vmatmul.f32.gmra.mxu0 %v2184
        %v2203 = vpop.f32.mrf.mxu0
        %v2204 = vadd.f32 %v2181, %v2203
        %2205 = vdwg.mxu0
        %v2206 = vmax.f32 %v2204, 0.0
        %v2207 = vld [vmem:[%s1267] sm:$0xff]
        %v2208 = vld [vmem:[%s1267 + $0x8] sm:$0xff]
        %v2209 = vld [vmem:[%s1267 + $0x10] sm:$0xff]
        %v2210 = vld [vmem:[%s1267 + $0x18] sm:$0xff]
        %v2211 = vld [vmem:[%s1267 + $0x20] sm:$0xff]
        %v2212 = vld [vmem:[%s1267 + $0x28] sm:$0xff]
        %v2213 = vld [vmem:[%s1267 + $0x30] sm:$0xff]
        %v2214 = vld [vmem:[%s1267 + $0x38] sm:$0xff]
        %v2215 = vld [vmem:[%s1053] sm:$0x1]
        %v2217 = vperm.slane %v2215, 0
        %vm2219 = vcmask 523264
        %v2221 = vsel %vm2219, %v2206, 0
        %2223 = vmatpush.msra.mxu0 0.0
        %2224 = vmatpush.msra.mxu0 0.0
        %2225 = vmatpush.msra.mxu0 0.0
        %2226 = vmatpush.msra.mxu0 0.0
        %2227 = vmatpush.msra.mxu0 0.0
        %2228 = vmatpush.msra.mxu0 0.0
        %2229 = vmatpush.msra.mxu0 0.0
        %2230 = vmatpush.msra.mxu0 0.0
        %2231 = vmatpush.msra.mxu0 %v2214
        %2232 = vmatpush.msra.mxu0 %v2213
        %2233 = vmatpush.msra.mxu0 %v2212
        %2234 = vmatpush.msra.mxu0 %v2211
        %2235 = vmatpush.msra.mxu0 %v2210
        %2236 = vmatpush.msra.mxu0 %v2209
        %2237 = vmatpush.msra.mxu0 %v2208
        %2238 = vmatpush.msra.mxu0 %v2207
        %2239 = vmatmul.f32.gmra.mxu0 %v2221
        %v2240 = vpop.f32.mrf.mxu0
        %v2241 = vadd.f32 %v2217, %v2240
        %2242 = vdwg.mxu0
        %v2243 = vadd.f32 %v2174, %v2241
        %v2244 = vsel %vm1292, %v2243, 0.0
        %2245 = vadd.xlane.f32.xlu0 %v2244
        %v2246 = vpop.xlane.xlu0 %2245
        %v2247 = vmul.f32 %v2246, %v1689
        %v2248 = vsub.f32 %v2243, %v2247
        %v2249 = vmul.f32 %v2248, %v2248
        %v2250 = vsel %vm1292, %v2249, 0.0
        %2251 = vadd.xlane.f32.xlu0 %v2250
        %v2252 = vpop.xlane.xlu0 %2251
        %v2253 = vmul.f32 %v2252, %v1689
        %v2254 = vadd.f32 %v2253, 1e-05
        %v2255 = vrsqrt.pop %v2254
        %v2256 = vmul.f32 %v2255, %v2254
        %v2257 = vmul.f32 %v2256, %v2255
        %v2258 = vmul.f32 0.5, %v2257
        %v2259 = vsub.f32 1.5, %v2258
        %v2260 = vmul.f32 %v2255, %v2259
        %vm2261 = vweird.f32 %v2254
        %vm2262 = vweird.f32 %v2255
        %vm2263 = vmor %vm2261, %vm2262
        %v2264 = vsel %vm2263, %v2255, %v2260
        %v2265 = vmul.f32 %v2248, %v2264
        %v2266 = vld [vmem:[%s1270] sm:$0x1]
        %v2268 = vperm.slane %v2266, 0
        %v2270 = vmul.f32 %v2265, %v2268
        %v2271 = vld [vmem:[%s1062] sm:$0x1]
        %v2273 = vperm.slane %v2271, 0
        %v2275 = vadd.f32 %v2270, %v2273
        %2276 = vst.msk [vmem:[#allocation2] sm:$0xff] %vm1292, %v2275
        %p2277 = scmp.eq.s32.totalorder %s56, 1
        // Predicated region
        $region161: #{forward.1} parent=115 // pred_check
          %p2278 = pneg %p2277
        $region162: #{forward.1} parent=115 // pred_check_branch
          %2280 = sbr.rel (%p2278) target = $region164
        $region163: #{forward.1} parent=115 // pred_region
          %v2281 = vsel %vm1292, %v2275, 0.0
          %2282 = vadd.xlane.f32.xlu0 %v2281
          %v2283 = vpop.xlane.xlu0 %2282
          %v2284 = vmul.f32 %v2283, %v1689
          %v2285 = vsub.f32 %v2275, %v2284
          %v2286 = vmul.f32 %v2285, %v2285
          %v2287 = vsel %vm1292, %v2286, 0.0
          %2288 = vadd.xlane.f32.xlu0 %v2287
          %v2289 = vpop.xlane.xlu0 %2288
          %v2290 = vmul.f32 %v2289, %v1689
          %v2291 = vadd.f32 %v2290, 1e-05
          %v2292 = vrsqrt.pop %v2291
          %v2293 = vmul.f32 %v2292, %v2291
          %v2294 = vmul.f32 %v2293, %v2292
          %v2295 = vmul.f32 0.5, %v2294
          %v2296 = vsub.f32 1.5, %v2295
          %v2297 = vmul.f32 %v2292, %v2296
          %vm2298 = vweird.f32 %v2291
          %vm2299 = vweird.f32 %v2292
          %vm2300 = vmor %vm2298, %vm2299
          %v2301 = vsel %vm2300, %v2292, %v2297
          %v2302 = vmul.f32 %v2285, %v2301
          %v2303 = vld [vmem:[#allocation16] sm:$0x1]
          %v2305 = vperm.slane %v2303, 0
          %v2307 = vmul.f32 %v2302, %v2305
          %v2308 = vld [vmem:[#allocation17] sm:$0x1]
          %v2310 = vperm.slane %v2308, 0
          %v2312 = vadd.f32 %v2307, %v2310
          %2313 = vst.msk [vmem:[%s1274] sm:$0xff] %vm1292, %v2312
        $region164: #{forward.1} parent=115 // pred_fallthru
          _
        %p2314 = scmp.lt.s32.totalorder %s55, 1
        %s2315 = scalar_select %p2314, %s55, 1
        %s2316 = smul.addr %s2315, 8
        %s2317 = scalar_lea.vmem %s24, %s2316
        // Predicated region
        $region165: #{forward.1} parent=115 // pred_check
          %p2318 = pneg %p695
        $region166: #{forward.1} parent=115 // pred_check_branch
          %2320 = sbr.rel (%p2318) target = $region168
        $region167: #{forward.1} parent=115 // pred_region
          _
        $region168: #{forward.1} parent=115 // pred_fallthru
          _
      $region116: #{forward.1} parent=5 // pred_fallthru
        _
      %p2321 = scmp.le.s32.totalorder 2, %s46
      // Predicated region
      $region169: #{forward.1} parent=5 // pred_check
        %p2322 = pneg %p2321
      $region170: #{forward.1} parent=5 // pred_check_branch
        %2324 = sbr.rel (%p2322) target = $region172
      $region171: #{forward.1} parent=5 // pred_region
        %s2325 = ssub.s32 %s46, 2
        // Predicated region
        $region173: #{forward.1} parent=171 // pred_check
          %p2326 = pneg %p701
        $region174: #{forward.1} parent=171 // pred_check_branch
          %2328 = sbr.rel (%p2326) target = $region176
        $region175: #{forward.1} parent=171 // pred_region
          %p2329 = scmp.lt.s32.totalorder %s57, 1
          %s2330 = scalar_select %p2329, %s57, 1
          %s2331 = smul.addr %s2330, 8
          %s2332 = scalar_lea.vmem %s24, %s2331
        $region176: #{forward.1} parent=171 // pred_fallthru
          _
      $region172: #{forward.1} parent=5 // pred_fallthru
        _
    $region6: #{forward.1} parent=1 // loop_footer
      %s50 = sadd.s32 1, %s46
    $region7: #{forward.1} parent=1 // loop_footer_branch
      %45 = sbr.rel target = $region3
    $region8: #{forward.1} parent=1 // loop_exit
      _
    %2333 = vsyncpa [#allocation4], 1
    %s2334 = scalar_lea.sflag [#allocation4], 1
    %2335 = vsyncpa %s2334, 1
    %2336 = vsyncpa [#allocation6], 1
    %s2337 = scalar_lea.sflag [#allocation6], 1
    %2338 = vsyncpa %s2337, 1
    %2339 = vsyncpa [#allocation9], 1
    %s2340 = scalar_lea.sflag [#allocation9], 1
    %2341 = vsyncpa %s2340, 1
    %2342 = vsyncpa [#allocation12], 1
    %s2343 = scalar_lea.sflag [#allocation12], 1
    %2344 = vsyncpa %s2343, 1
    %2345 = vsyncpa [#allocation15], 1
    %s2346 = scalar_lea.sflag [#allocation15], 1
    %2347 = vsyncpa %s2346, 1
    %2348 = vsyncpa [#allocation18], 1

</llo_original>
